<compile_context>
chip_gen: v5e
topology: v5e:2x2
jax: 0.10.0
libtpu: 0.0.40
codegen_flags: <defaults>
</compile_context>

<pallas_src>
import functools

import jax
import jax.numpy as jnp
from jax import lax
from jax.experimental import pallas as pl
from jax.experimental.pallas import tpu as pltpu

_LANE = 128
_EPS = 1e-5


def _round_up(x, m):
    return (x + m - 1) // m * m


def _tpu_budget():
    """(tile_rows_target, vmem_limit_bytes) derived from the TPU generation."""
    try:
        vmem = pltpu.get_tpu_info().vmem_capacity_bytes
    except Exception:                       # unknown chip / interpret mode
        vmem = 64 << 20
    limit = min(int(vmem * 0.72), 100 << 20)        # leave headroom under physical
    rows = 2048 if vmem >= (100 << 20) else 1024    # v5e/v6e (128 MiB) vs v7x (64 MiB)
    return rows, limit


def _pick_tile_h(ho, wo, target_rows):
    """Largest divisor th of ho with th*wo <= target_rows, preferring aligned M."""
    divs = [d for d in range(1, ho + 1) if ho % d == 0]
    fits = [d for d in divs if d * wo <= target_rows] or [1]
    for align in (256, 8, 1):               # MXU-friendly, then sublane-aligned M
        cand = [d for d in fits if (d * wo) % align == 0]
        if cand:
            return max(cand)
    # TODO(synk): ragged last tile (pl.cdiv grid + masking) for awkward spatial sizes.
    return max(fits)


def _conv3x3_dots(pad_ref, w_ref, th, wo, c):
    """3x3 'same' conv on the zero-bordered (th+2, wo+2, c) block as 9 accumulated
    MXU dots with f32 accumulation (no 9*C im2col concatenate slab)."""
    m = th * wo
    acc = jnp.zeros((m, w_ref.shape[-1]), jnp.float32)
    for dy in range(3):
        for dx in range(3):
            k = dy * 3 + dx
            tap = pad_ref[dy:dy + th, dx:dx + wo, :].reshape(m, c)
            acc = acc + jnp.dot(tap, w_ref[k * c:(k + 1) * c, :],
                                preferred_element_type=jnp.float32)
    return acc


def _phase_a_kernel(xm_ref, xt_ref, xb_ref, w_ref, h1_ref, st_ref, pad_ref,
                    *, th, wo, cin_p):
    """Fused 2x2 max-pool + conv1 (3x3 same) + per-batch BN1 statistics."""
    t = pl.program_id(1)
    nt = pl.num_programs(1)

    @pl.when(t == 0)          # per-batch init: no cross-batch sequential dependency
    def _init():
        pad_ref[...] = jnp.zeros_like(pad_ref)   # zero border persists across this batch's tiles
        st_ref[...] = jnp.zeros_like(st_ref)

    def pool(x):              # (2r, wo, 2*cin_p) bf16 -> (r, wo, cin_p) f32
        x = x.astype(jnp.float32)                            # f32 vregs (v5e-friendly)
        x = jnp.maximum(x[:, :, :cin_p], x[:, :, cin_p:])    # pool along W (lane slice)
        x = x.reshape(x.shape[0] // 2, 2, wo, cin_p)
        return jnp.maximum(x[:, 0], x[:, 1])                 # pool along H

    # interior rows: pool straight into the persistent zero-bordered scratch
    pad_ref[1:th + 1, 1:wo + 1, :] = pool(xm_ref[0]).astype(pad_ref.dtype)
    # halo rows (zero outside the image)
    top = pool(xt_ref[0])
    bot = pool(xb_ref[0])
    zero = jnp.zeros_like(top)
    pad_ref[0:1, 1:wo + 1, :] = jnp.where(t > 0, top, zero).astype(pad_ref.dtype)
    pad_ref[th + 1:th + 2, 1:wo + 1, :] = \
        jnp.where(t < nt - 1, bot, zero).astype(pad_ref.dtype)

    h = _conv3x3_dots(pad_ref, w_ref, th, wo, cin_p)         # (th*wo, cout_p) f32
    cout_p = h.shape[-1]
    h1_ref[0] = h.reshape(th, wo, cout_p).astype(h1_ref.dtype)
    st_ref[0:1, 0:1, :] += jnp.sum(h, axis=0, keepdims=True).reshape(1, 1, cout_p)
    st_ref[0:1, 1:2, :] += jnp.sum(h * h, axis=0, keepdims=True).reshape(1, 1, cout_p)


def _phase_b_kernel(m_ref, t_ref, b_ref, bn_ref, w_ref, h2_ref, st_ref, pad_ref,
                    *, th, wo, c_p):
    """BN1 + ReLU + conv2 (3x3 same) + per-batch BN2 statistics."""
    t = pl.program_id(1)
    nt = pl.num_programs(1)

    @pl.when(t == 0)
    def _init():
        pad_ref[...] = jnp.zeros_like(pad_ref)
        st_ref[...] = jnp.zeros_like(st_ref)

    scale = bn_ref[0:1, :].reshape(1, 1, c_p)
    shift = bn_ref[1:2, :].reshape(1, 1, c_p)

    def bn_relu(x):           # f32 elementwise; bf16 only at the MXU-operand store
        y = x.astype(jnp.float32) * scale + shift
        return jnp.maximum(y, 0.0)

    pad_ref[1:th + 1, 1:wo + 1, :] = bn_relu(m_ref[0]).astype(pad_ref.dtype)
    top = bn_relu(t_ref[0])
    bot = bn_relu(b_ref[0])
    zero = jnp.zeros_like(top)
    pad_ref[0:1, 1:wo + 1, :] = jnp.where(t > 0, top, zero).astype(pad_ref.dtype)
    pad_ref[th + 1:th + 2, 1:wo + 1, :] = \
        jnp.where(t < nt - 1, bot, zero).astype(pad_ref.dtype)

    h = _conv3x3_dots(pad_ref, w_ref, th, wo, c_p)           # (th*wo, cout_p) f32
    cout_p = h.shape[-1]
    h2_ref[0] = h.reshape(th, wo, cout_p).astype(h2_ref.dtype)
    st_ref[0:1, 0:1, :] += jnp.sum(h, axis=0, keepdims=True).reshape(1, 1, cout_p)
    st_ref[0:1, 1:2, :] += jnp.sum(h * h, axis=0, keepdims=True).reshape(1, 1, cout_p)


def _phase_c_kernel(h2_ref, bn_ref, o_ref, *, c_p, cout):
    """BN2 + ReLU; writes the UNpadded channels-last f32 output directly."""
    scale = bn_ref[0:1, :].reshape(1, 1, c_p)
    shift = bn_ref[1:2, :].reshape(1, 1, c_p)
    y = h2_ref[0].astype(jnp.float32) * scale + shift
    y = jnp.maximum(y, 0.0)
    o_ref[0] = y[:, :, :cout]


def down_block_forward(x_nchw, params, *, tile_rows_target=None):
    """Pallas implementation of Down_block.forward.  x_nchw: (N, Cin, H, W)."""
    w1, b1, g1, be1, w2, b2, g2, be2 = params
    del b1, b2   # conv biases are exactly cancelled by training-mode BatchNorm

    n, cin, h, w = x_nchw.shape
    assert h % 2 == 0 and w % 2 == 0  # TODO(synk): odd spatial sizes (MaxPool floor) unsupported
    ho, wo = h // 2, w // 2
    cout = w1.shape[0]
    cin_p = _round_up(cin, _LANE)
    cout_p = _round_up(cout, _LANE)

    default_rows, vmem_limit = _tpu_budget()
    if tile_rows_target is None:
        tile_rows_target = default_rows
    th = _pick_tile_h(ho, wo, tile_rows_target)
    nt = ho // th
    m_rows = n * ho * wo
    f32, bf16 = jnp.float32, jnp.bfloat16

    # ---- XLA glue (layout only): NCHW -> channels-last bf16, lane-pad channels.
    # TODO(synk): disappears entirely if the surrounding network stays channels-last.
    x_nhwc = jnp.transpose(x_nchw, (0, 2, 3, 1)).astype(bf16)
    x_nhwc = jnp.pad(x_nhwc, ((0, 0), (0, 0), (0, 0), (0, cin_p - cin)))
    x_r = x_nhwc.reshape(n, h, wo, 2 * cin_p)      # free reshape: W pairs on the lane axis

    def conv_mat(wgt, ci, ci_p):
        co = wgt.shape[0]
        m = jnp.transpose(wgt, (2, 3, 1, 0))       # (3, 3, ci, co): k = dy*3 + dx order
        m = jnp.pad(m, ((0, 0), (0, 0), (0, ci_p - ci), (0, cout_p - co)))
        return m.reshape(9 * ci_p, cout_p).astype(bf16)

    w1_mat = conv_mat(w1, cin, cin_p)
    w2_mat = conv_mat(w2, cout, cout_p)

    acc_params = pltpu.CompilerParams(
        dimension_semantics=("parallel", "arbitrary"),  # batch parallel (v7x), tiles carry stats
        vmem_limit_bytes=vmem_limit)
    par_params = pltpu.CompilerParams(
        dimension_semantics=("parallel", "parallel"),
        vmem_limit_bytes=vmem_limit)

    resident = pl.Buffered(1)   # grid-invariant operands: single VMEM buffer, no re-DMA

    # ---------- phase A: max-pool + conv1 + BN1 statistics ----------
    halo_a = n * nt * 2 * (2 * wo * 2 * cin_p) * 2
    h1, s1p = pl.pallas_call(
        functools.partial(_phase_a_kernel, th=th, wo=wo, cin_p=cin_p),
        grid=(n, nt),
        in_specs=[
            pl.BlockSpec((1, 2 * th, wo, 2 * cin_p), lambda i, t: (i, t, 0, 0)),
            pl.BlockSpec((1, 2, wo, 2 * cin_p),
                         lambda i, t: (i, jnp.maximum(t * th - 1, 0), 0, 0)),
            pl.BlockSpec((1, 2, wo, 2 * cin_p),
                         lambda i, t: (i, jnp.minimum((t + 1) * th, ho - 1), 0, 0)),
            pl.BlockSpec((9 * cin_p, cout_p), lambda i, t: (0, 0),
                         pipeline_mode=resident),
        ],
        out_specs=(
            pl.BlockSpec((1, th, wo, cout_p), lambda i, t: (i, t, 0, 0)),
            pl.BlockSpec((1, 2, cout_p), lambda i, t: (i, 0, 0)),
        ),
        out_shape=(
            jax.ShapeDtypeStruct((n, ho, wo, cout_p), bf16),
            jax.ShapeDtypeStruct((n, 2, cout_p), f32),
        ),
        scratch_shapes=[pltpu.VMEM((th + 2, wo + 2, cin_p), bf16)],
        compiler_params=acc_params,
        cost_estimate=pl.CostEstimate(
            flops=2 * m_rows * 9 * cin_p * cout_p,
            transcendentals=0,
            bytes_accessed=(n * h * wo * 2 * cin_p * 2 + halo_a
                            + 9 * cin_p * cout_p * 2
                            + m_rows * cout_p * 2 + n * 2 * cout_p * 4)),
    )(x_r, x_r, x_r, w1_mat)

    def bn_affine(stats_parts, gamma, beta):
        stats = jnp.sum(stats_parts, axis=0)            # reduce per-batch partials
        mean = stats[0] / m_rows
        var = jnp.maximum(stats[1] / m_rows - mean * mean, 0.0)
        g_p = jnp.pad(gamma.astype(f32), (0, cout_p - cout))
        b_p = jnp.pad(beta.astype(f32), (0, cout_p - cout))
        scale = g_p * lax.rsqrt(var + _EPS)
        shift = b_p - mean * scale
        return jnp.stack([scale, shift], axis=0)        # (2, cout_p)

    bn1 = bn_affine(s1p, g1, be1)

    # ---------- phase B: BN1 + ReLU + conv2 + BN2 statistics ----------
    halo_b = n * nt * 2 * (wo * cout_p) * 2
    h2, s2p = pl.pallas_call(
        functools.partial(_phase_b_kernel, th=th, wo=wo, c_p=cout_p),
        grid=(n, nt),
        in_specs=[
            pl.BlockSpec((1, th, wo, cout_p), lambda i, t: (i, t, 0, 0)),
            pl.BlockSpec((1, 1, wo, cout_p),
                         lambda i, t: (i, jnp.maximum(t * th - 1, 0), 0, 0)),
            pl.BlockSpec((1, 1, wo, cout_p),
                         lambda i, t: (i, jnp.minimum((t + 1) * th, ho - 1), 0, 0)),
            pl.BlockSpec((2, cout_p), lambda i, t: (0, 0), pipeline_mode=resident),
            pl.BlockSpec((9 * cout_p, cout_p), lambda i, t: (0, 0),
                         pipeline_mode=resident),
        ],
        out_specs=(
            pl.BlockSpec((1, th, wo, cout_p), lambda i, t: (i, t, 0, 0)),
            pl.BlockSpec((1, 2, cout_p), lambda i, t: (i, 0, 0)),
        ),
        out_shape=(
            jax.ShapeDtypeStruct((n, ho, wo, cout_p), bf16),
            jax.ShapeDtypeStruct((n, 2, cout_p), f32),
        ),
        scratch_shapes=[pltpu.VMEM((th + 2, wo + 2, cout_p), bf16)],
        compiler_params=acc_params,
        cost_estimate=pl.CostEstimate(
            flops=2 * m_rows * 9 * cout_p * cout_p,
            transcendentals=0,
            bytes_accessed=(m_rows * cout_p * 2 + halo_b
                            + 9 * cout_p * cout_p * 2 + 2 * cout_p * 4
                            + m_rows * cout_p * 2 + n * 2 * cout_p * 4)),
    )(h1, h1, h1, bn1, w2_mat)

    bn2 = bn_affine(s2p, g2, be2)

    # ---------- phase C: BN2 + ReLU write-back (unpadded channels-last) ----------
    out_nhwc = pl.pallas_call(
        functools.partial(_phase_c_kernel, c_p=cout_p, cout=cout),
        grid=(n, nt),
        in_specs=[
            pl.BlockSpec((1, th, wo, cout_p), lambda i, t: (i, t, 0, 0)),
            pl.BlockSpec((2, cout_p), lambda i, t: (0, 0), pipeline_mode=resident),
        ],
        out_specs=pl.BlockSpec((1, th, wo, cout), lambda i, t: (i, t, 0, 0)),
        out_shape=jax.ShapeDtypeStruct((n, ho, wo, cout), f32),
        compiler_params=par_params,
        cost_estimate=pl.CostEstimate(
            flops=2 * m_rows * cout_p,
            transcendentals=0,
            bytes_accessed=m_rows * cout_p * 2 + 2 * cout_p * 4 + m_rows * cout * 4),
    )(h2, bn2)

    # layout glue back to the module's NCHW contract (true channel count only).
    # TODO(synk): return out_nhwc directly if the consumer accepts channels-last.
    return jnp.transpose(out_nhwc, (0, 3, 1, 2))


def _reference(x, params):
    """Pure-JAX reference (training-mode BatchNorm), computed in f32."""
    w1, b1, g1, be1, w2, b2, g2, be2 = params
    p = lax.reduce_window(x, -jnp.inf, lax.max, (1, 1, 2, 2), (1, 1, 2, 2), 'VALID')

    def conv_bn_relu(z, wgt, b, g, be):
        y = lax.conv_general_dilated(z, wgt, (1, 1), 'SAME',
                                     dimension_numbers=('NCHW', 'OIHW', 'NCHW'))
        y = y + b[None, :, None, None]
        mu = y.mean(axis=(0, 2, 3), keepdims=True)
        var = ((y - mu) ** 2).mean(axis=(0, 2, 3), keepdims=True)
        y = (y - mu) * lax.rsqrt(var + _EPS) * g[None, :, None, None] \
            + be[None, :, None, None]
        return jnp.maximum(y, 0.0)

    z = conv_bn_relu(p, w1, b1, g1, be1)
    z = conv_bn_relu(z, w2, b2, g2, be2)
    return z


if __name__ == "__main__":
    N, IN_CH, OUT_CH, H, W = 2, 4, 8, 16, 16
    key = jax.random.PRNGKey(0)
    ks = jax.random.split(key, 9)

    x = jax.random.normal(ks[0], (N, IN_CH, H, W), jnp.float32)
    w1 = 0.1 * jax.random.normal(ks[1], (OUT_CH, IN_CH, 3, 3), jnp.float32)
    b1 = 0.05 * jax.random.normal(ks[2], (OUT_CH,), jnp.float32)
    g1 = 1.0 + 0.1 * jax.random.normal(ks[3], (OUT_CH,), jnp.float32)
    be1 = 0.1 * jax.random.normal(ks[4], (OUT_CH,), jnp.float32)
    w2 = 0.1 * jax.random.normal(ks[5], (OUT_CH, OUT_CH, 3, 3), jnp.float32)
    b2 = 0.05 * jax.random.normal(ks[6], (OUT_CH,), jnp.float32)
    g2 = 1.0 + 0.1 * jax.random.normal(ks[7], (OUT_CH,), jnp.float32)
    be2 = 0.1 * jax.random.normal(ks[8], (OUT_CH,), jnp.float32)
    params = (w1, b1, g1, be1, w2, b2, g2, be2)

    # small tile target so the demo exercises multiple H-tiles + halo handling
    fwd = jax.jit(lambda xx, pp: down_block_forward(xx, pp, tile_rows_target=32))
    out = jax.block_until_ready(fwd(x, params))
    assert out.shape == (N, OUT_CH, H // 2, W // 2), out.shape

    ref = _reference(x, params)
    max_err = float(jnp.max(jnp.abs(out - ref)))
    assert max_err < 5e-2, f"mismatch vs reference: {max_err}"

    print("KERNEL_OK")
</pallas_src>

<mosaic_0001>
module attributes {stable_mosaic.version = 11 : i64} {
  func.func @_phase_a_kernel(%arg0: i32, %arg1: i32, %arg2: memref<1x8x8x256xbf16, #tpu.memory_space<vmem>>, %arg3: memref<1x2x8x256xbf16, #tpu.memory_space<vmem>>, %arg4: memref<1x2x8x256xbf16, #tpu.memory_space<vmem>>, %arg5: memref<1152x128xbf16, #tpu.memory_space<vmem>>, %arg6: memref<1x4x8x128xbf16, #tpu.memory_space<vmem>>, %arg7: memref<1x2x128xf32, #tpu.memory_space<vmem>>, %arg8: memref<6x10x128xbf16, #tpu.memory_space<vmem>>) attributes {dimension_semantics = [#tpu.dimension_semantics<parallel>, #tpu.dimension_semantics<arbitrary>], iteration_bounds = array<i64: 2, 2>, scalar_prefetch = 0 : i64, scratch_operands = 1 : i64, tpu.core_type = #tpu.core_type<tc>, window_params = [{transform_indices = @transform_0, window_bounds = array<i64: 1, 8, 8, 256>}, {transform_indices = @transform_1, window_bounds = array<i64: 1, 2, 8, 256>}, {transform_indices = @transform_2, window_bounds = array<i64: 1, 2, 8, 256>}, {pipeline_mode = #tpu.pipeline_mode<synchronous>, transform_indices = @transform_3, window_bounds = array<i64: 1152, 128>}, {transform_indices = @transform_4, window_bounds = array<i64: 1, 4, 8, 128>}, {transform_indices = @transform_5, window_bounds = array<i64: 1, 2, 128>}]} {
    %c0_i32 = arith.constant 0 : i32
    %0 = arith.cmpi eq, %arg1, %c0_i32 : i32
    %1 = arith.extui %0 : i1 to i32
    %c0_i32_0 = arith.constant 0 : i32
    %2 = arith.cmpi ne, %1, %c0_i32_0 : i32
    scf.if %2 {
      %cst_84 = arith.constant 0.000000e+00 : bf16
      %114 = vector.broadcast %cst_84 : bf16 to vector<6x10x128xbf16>
      %c0_85 = arith.constant 0 : index
      %c0_86 = arith.constant 0 : index
      %c0_87 = arith.constant 0 : index
      %115 = vector.load %arg8[%c0_85, %c0_86, %c0_87] : memref<6x10x128xbf16, #tpu.memory_space<vmem>>, vector<6x10x128xbf16>
      tpu.vector_store %arg8[%c0_85, %c0_86, %c0_87], %114 {strides = array<i32>} : memref<6x10x128xbf16, #tpu.memory_space<vmem>>, vector<6x10x128xbf16>,
      %cst_88 = arith.constant 0.000000e+00 : f32
      %116 = vector.broadcast %cst_88 : f32 to vector<1x2x128xf32>
      %c0_89 = arith.constant 0 : index
      %c0_90 = arith.constant 0 : index
      %c0_91 = arith.constant 0 : index
      %117 = vector.load %arg7[%c0_89, %c0_90, %c0_91] : memref<1x2x128xf32, #tpu.memory_space<vmem>>, vector<1x2x128xf32>
      tpu.vector_store %arg7[%c0_89, %c0_90, %c0_91], %116 {strides = array<i32>} : memref<1x2x128xf32, #tpu.memory_space<vmem>>, vector<1x2x128xf32>,
    } else {
    }
    %c0 = arith.constant 0 : index
    %c0_1 = arith.constant 0 : index
    %c0_2 = arith.constant 0 : index
    %c0_3 = arith.constant 0 : index
    %3 = vector.load %arg2[%c0, %c0_1, %c0_2, %c0_3] : memref<1x8x8x256xbf16, #tpu.memory_space<vmem>>, vector<1x8x8x256xbf16>
    %4 = vector.shape_cast %3 : vector<1x8x8x256xbf16> to vector<8x8x256xbf16>
    %5 = arith.extf %4 : vector<8x8x256xbf16> to vector<8x8x256xf32>
    %6 = vector.extract_strided_slice %5 {offsets = [0, 0, 0], sizes = [8, 8, 128], strides = [1, 1, 1]} : vector<8x8x256xf32> to vector<8x8x128xf32>
    %7 = vector.extract_strided_slice %5 {offsets = [0, 0, 128], sizes = [8, 8, 128], strides = [1, 1, 1]} : vector<8x8x256xf32> to vector<8x8x128xf32>
    %8 = arith.maximumf %6, %7 : vector<8x8x128xf32>
    %9 = vector.shape_cast %8 : vector<8x8x128xf32> to vector<4x2x8x128xf32>
    %10 = vector.extract_strided_slice %9 {offsets = [0, 0, 0, 0], sizes = [4, 1, 8, 128], strides = [1, 1, 1, 1]} : vector<4x2x8x128xf32> to vector<4x1x8x128xf32>
    %11 = vector.shape_cast %10 : vector<4x1x8x128xf32> to vector<4x8x128xf32>
    %12 = vector.extract_strided_slice %9 {offsets = [0, 1, 0, 0], sizes = [4, 1, 8, 128], strides = [1, 1, 1, 1]} : vector<4x2x8x128xf32> to vector<4x1x8x128xf32>
    %13 = vector.shape_cast %12 : vector<4x1x8x128xf32> to vector<4x8x128xf32>
    %14 = arith.maximumf %11, %13 : vector<4x8x128xf32>
    %15 = arith.truncf %14 : vector<4x8x128xf32> to vector<4x8x128xbf16>
    %c1 = arith.constant 1 : index
    %c1_4 = arith.constant 1 : index
    %c0_5 = arith.constant 0 : index
    %16 = vector.load %arg8[%c1, %c1_4, %c0_5] : memref<6x10x128xbf16, #tpu.memory_space<vmem>>, vector<4x8x128xbf16>
    tpu.vector_store %arg8[%c1, %c1_4, %c0_5], %15 {strides = array<i32>} : memref<6x10x128xbf16, #tpu.memory_space<vmem>>, vector<4x8x128xbf16>,
    %c0_6 = arith.constant 0 : index
    %c0_7 = arith.constant 0 : index
    %c0_8 = arith.constant 0 : index
    %c0_9 = arith.constant 0 : index
    %17 = vector.load %arg3[%c0_6, %c0_7, %c0_8, %c0_9] : memref<1x2x8x256xbf16, #tpu.memory_space<vmem>>, vector<1x2x8x256xbf16>
    %18 = vector.shape_cast %17 : vector<1x2x8x256xbf16> to vector<2x8x256xbf16>
    %19 = arith.extf %18 : vector<2x8x256xbf16> to vector<2x8x256xf32>
    %20 = vector.extract_strided_slice %19 {offsets = [0, 0, 0], sizes = [2, 8, 128], strides = [1, 1, 1]} : vector<2x8x256xf32> to vector<2x8x128xf32>
    %21 = vector.extract_strided_slice %19 {offsets = [0, 0, 128], sizes = [2, 8, 128], strides = [1, 1, 1]} : vector<2x8x256xf32> to vector<2x8x128xf32>
    %22 = arith.maximumf %20, %21 : vector<2x8x128xf32>
    %23 = vector.shape_cast %22 : vector<2x8x128xf32> to vector<1x2x8x128xf32>
    %24 = vector.extract_strided_slice %23 {offsets = [0, 0, 0, 0], sizes = [1, 1, 8, 128], strides = [1, 1, 1, 1]} : vector<1x2x8x128xf32> to vector<1x1x8x128xf32>
    %25 = vector.shape_cast %24 : vector<1x1x8x128xf32> to vector<1x8x128xf32>
    %26 = vector.extract_strided_slice %23 {offsets = [0, 1, 0, 0], sizes = [1, 1, 8, 128], strides = [1, 1, 1, 1]} : vector<1x2x8x128xf32> to vector<1x1x8x128xf32>
    %27 = vector.shape_cast %26 : vector<1x1x8x128xf32> to vector<1x8x128xf32>
    %28 = arith.maximumf %25, %27 : vector<1x8x128xf32>
    %c0_10 = arith.constant 0 : index
    %c0_11 = arith.constant 0 : index
    %c0_12 = arith.constant 0 : index
    %c0_13 = arith.constant 0 : index
    %29 = vector.load %arg4[%c0_10, %c0_11, %c0_12, %c0_13] : memref<1x2x8x256xbf16, #tpu.memory_space<vmem>>, vector<1x2x8x256xbf16>
    %30 = vector.shape_cast %29 : vector<1x2x8x256xbf16> to vector<2x8x256xbf16>
    %31 = arith.extf %30 : vector<2x8x256xbf16> to vector<2x8x256xf32>
    %32 = vector.extract_strided_slice %31 {offsets = [0, 0, 0], sizes = [2, 8, 128], strides = [1, 1, 1]} : vector<2x8x256xf32> to vector<2x8x128xf32>
    %33 = vector.extract_strided_slice %31 {offsets = [0, 0, 128], sizes = [2, 8, 128], strides = [1, 1, 1]} : vector<2x8x256xf32> to vector<2x8x128xf32>
    %34 = arith.maximumf %32, %33 : vector<2x8x128xf32>
    %35 = vector.shape_cast %34 : vector<2x8x128xf32> to vector<1x2x8x128xf32>
    %36 = vector.extract_strided_slice %35 {offsets = [0, 0, 0, 0], sizes = [1, 1, 8, 128], strides = [1, 1, 1, 1]} : vector<1x2x8x128xf32> to vector<1x1x8x128xf32>
    %37 = vector.shape_cast %36 : vector<1x1x8x128xf32> to vector<1x8x128xf32>
    %38 = vector.extract_strided_slice %35 {offsets = [0, 1, 0, 0], sizes = [1, 1, 8, 128], strides = [1, 1, 1, 1]} : vector<1x2x8x128xf32> to vector<1x1x8x128xf32>
    %39 = vector.shape_cast %38 : vector<1x1x8x128xf32> to vector<1x8x128xf32>
    %40 = arith.maximumf %37, %39 : vector<1x8x128xf32>
    %cst = arith.constant 0.000000e+00 : f32
    %41 = vector.broadcast %cst : f32 to vector<1x8x128xf32>
    %c0_i32_14 = arith.constant 0 : i32
    %42 = arith.cmpi sgt, %arg1, %c0_i32_14 : i32
    %43 = arith.select %42, %28, %41 : vector<1x8x128xf32>
    %44 = arith.truncf %43 : vector<1x8x128xf32> to vector<1x8x128xbf16>
    %c0_15 = arith.constant 0 : index
    %c1_16 = arith.constant 1 : index
    %c0_17 = arith.constant 0 : index
    %45 = vector.load %arg8[%c0_15, %c1_16, %c0_17] : memref<6x10x128xbf16, #tpu.memory_space<vmem>>, vector<1x8x128xbf16>
    tpu.vector_store %arg8[%c0_15, %c1_16, %c0_17], %44 {strides = array<i32>} : memref<6x10x128xbf16, #tpu.memory_space<vmem>>, vector<1x8x128xbf16>,
    %c1_i32 = arith.constant 1 : i32
    %46 = arith.cmpi slt, %arg1, %c1_i32 : i32
    %47 = arith.select %46, %40, %41 : vector<1x8x128xf32>
    %48 = arith.truncf %47 : vector<1x8x128xf32> to vector<1x8x128xbf16>
    %c5 = arith.constant 5 : index
    %c1_18 = arith.constant 1 : index
    %c0_19 = arith.constant 0 : index
    %49 = vector.load %arg8[%c5, %c1_18, %c0_19] : memref<6x10x128xbf16, #tpu.memory_space<vmem>>, vector<1x8x128xbf16>
    tpu.vector_store %arg8[%c5, %c1_18, %c0_19], %48 {strides = array<i32>} : memref<6x10x128xbf16, #tpu.memory_space<vmem>>, vector<1x8x128xbf16>,
    %cst_20 = arith.constant 0.000000e+00 : f32
    %50 = vector.broadcast %cst_20 : f32 to vector<32x128xf32>
    %c0_21 = arith.constant 0 : index
    %c0_22 = arith.constant 0 : index
    %c0_23 = arith.constant 0 : index
    %51 = vector.load %arg8[%c0_21, %c0_22, %c0_23] : memref<6x10x128xbf16, #tpu.memory_space<vmem>>, vector<4x8x128xbf16>
    %52 = vector.shape_cast %51 : vector<4x8x128xbf16> to vector<32x128xbf16>
    %c0_24 = arith.constant 0 : index
    %c0_25 = arith.constant 0 : index
    %53 = vector.load %arg5[%c0_24, %c0_25] : memref<1152x128xbf16, #tpu.memory_space<vmem>>, vector<128x128xbf16>
    %cst_26 = arith.constant dense<0.000000e+00> : vector<32x128xf32>
    %54 = tpu.matmul %52, %53, %cst_26 {dimension_numbers = #tpu.dot_dimension_numbers<[1], [0], [0], [1], [0, 0, 1, 1], [], []>} : vector<32x128xbf16>, vector<128x128xbf16>, vector<32x128xf32> -> vector<32x128xf32>
    %55 = arith.addf %50, %54 : vector<32x128xf32>
    %c0_27 = arith.constant 0 : index
    %c1_28 = arith.constant 1 : index
    %c0_29 = arith.constant 0 : index
    %56 = vector.load %arg8[%c0_27, %c1_28, %c0_29] : memref<6x10x128xbf16, #tpu.memory_space<vmem>>, vector<4x8x128xbf16>
    %57 = vector.shape_cast %56 : vector<4x8x128xbf16> to vector<32x128xbf16>
    %c128 = arith.constant 128 : index
    %c0_30 = arith.constant 0 : index
    %58 = vector.load %arg5[%c128, %c0_30] : memref<1152x128xbf16, #tpu.memory_space<vmem>>, vector<128x128xbf16>
    %cst_31 = arith.constant dense<0.000000e+00> : vector<32x128xf32>
    %59 = tpu.matmul %57, %58, %cst_31 {dimension_numbers = #tpu.dot_dimension_numbers<[1], [0], [0], [1], [0, 0, 1, 1], [], []>} : vector<32x128xbf16>, vector<128x128xbf16>, vector<32x128xf32> -> vector<32x128xf32>
    %60 = arith.addf %55, %59 : vector<32x128xf32>
    %c0_32 = arith.constant 0 : index
    %c2 = arith.constant 2 : index
    %c0_33 = arith.constant 0 : index
    %61 = vector.load %arg8[%c0_32, %c2, %c0_33] : memref<6x10x128xbf16, #tpu.memory_space<vmem>>, vector<4x8x128xbf16>
    %62 = vector.shape_cast %61 : vector<4x8x128xbf16> to vector<32x128xbf16>
    %c256 = arith.constant 256 : index
    %c0_34 = arith.constant 0 : index
    %63 = vector.load %arg5[%c256, %c0_34] : memref<1152x128xbf16, #tpu.memory_space<vmem>>, vector<128x128xbf16>
    %cst_35 = arith.constant dense<0.000000e+00> : vector<32x128xf32>
    %64 = tpu.matmul %62, %63, %cst_35 {dimension_numbers = #tpu.dot_dimension_numbers<[1], [0], [0], [1], [0, 0, 1, 1], [], []>} : vector<32x128xbf16>, vector<128x128xbf16>, vector<32x128xf32> -> vector<32x128xf32>
    %65 = arith.addf %60, %64 : vector<32x128xf32>
    %c1_36 = arith.constant 1 : index
    %c0_37 = arith.constant 0 : index
    %c0_38 = arith.constant 0 : index
    %66 = vector.load %arg8[%c1_36, %c0_37, %c0_38] : memref<6x10x128xbf16, #tpu.memory_space<vmem>>, vector<4x8x128xbf16>
    %67 = vector.shape_cast %66 : vector<4x8x128xbf16> to vector<32x128xbf16>
    %c384 = arith.constant 384 : index
    %c0_39 = arith.constant 0 : index
    %68 = vector.load %arg5[%c384, %c0_39] : memref<1152x128xbf16, #tpu.memory_space<vmem>>, vector<128x128xbf16>
    %cst_40 = arith.constant dense<0.000000e+00> : vector<32x128xf32>
    %69 = tpu.matmul %67, %68, %cst_40 {dimension_numbers = #tpu.dot_dimension_numbers<[1], [0], [0], [1], [0, 0, 1, 1], [], []>} : vector<32x128xbf16>, vector<128x128xbf16>, vector<32x128xf32> -> vector<32x128xf32>
    %70 = arith.addf %65, %69 : vector<32x128xf32>
    %c1_41 = arith.constant 1 : index
    %c1_42 = arith.constant 1 : index
    %c0_43 = arith.constant 0 : index
    %71 = vector.load %arg8[%c1_41, %c1_42, %c0_43] : memref<6x10x128xbf16, #tpu.memory_space<vmem>>, vector<4x8x128xbf16>
    %72 = vector.shape_cast %71 : vector<4x8x128xbf16> to vector<32x128xbf16>
    %c512 = arith.constant 512 : index
    %c0_44 = arith.constant 0 : index
    %73 = vector.load %arg5[%c512, %c0_44] : memref<1152x128xbf16, #tpu.memory_space<vmem>>, vector<128x128xbf16>
    %cst_45 = arith.constant dense<0.000000e+00> : vector<32x128xf32>
    %74 = tpu.matmul %72, %73, %cst_45 {dimension_numbers = #tpu.dot_dimension_numbers<[1], [0], [0], [1], [0, 0, 1, 1], [], []>} : vector<32x128xbf16>, vector<128x128xbf16>, vector<32x128xf32> -> vector<32x128xf32>
    %75 = arith.addf %70, %74 : vector<32x128xf32>
    %c1_46 = arith.constant 1 : index
    %c2_47 = arith.constant 2 : index
    %c0_48 = arith.constant 0 : index
    %76 = vector.load %arg8[%c1_46, %c2_47, %c0_48] : memref<6x10x128xbf16, #tpu.memory_space<vmem>>, vector<4x8x128xbf16>
    %77 = vector.shape_cast %76 : vector<4x8x128xbf16> to vector<32x128xbf16>
    %c640 = arith.constant 640 : index
    %c0_49 = arith.constant 0 : index
    %78 = vector.load %arg5[%c640, %c0_49] : memref<1152x128xbf16, #tpu.memory_space<vmem>>, vector<128x128xbf16>
    %cst_50 = arith.constant dense<0.000000e+00> : vector<32x128xf32>
    %79 = tpu.matmul %77, %78, %cst_50 {dimension_numbers = #tpu.dot_dimension_numbers<[1], [0], [0], [1], [0, 0, 1, 1], [], []>} : vector<32x128xbf16>, vector<128x128xbf16>, vector<32x128xf32> -> vector<32x128xf32>
    %80 = arith.addf %75, %79 : vector<32x128xf32>
    %c2_51 = arith.constant 2 : index
    %c0_52 = arith.constant 0 : index
    %c0_53 = arith.constant 0 : index
    %81 = vector.load %arg8[%c2_51, %c0_52, %c0_53] : memref<6x10x128xbf16, #tpu.memory_space<vmem>>, vector<4x8x128xbf16>
    %82 = vector.shape_cast %81 : vector<4x8x128xbf16> to vector<32x128xbf16>
    %c768 = arith.constant 768 : index
    %c0_54 = arith.constant 0 : index
    %83 = vector.load %arg5[%c768, %c0_54] : memref<1152x128xbf16, #tpu.memory_space<vmem>>, vector<128x128xbf16>
    %cst_55 = arith.constant dense<0.000000e+00> : vector<32x128xf32>
    %84 = tpu.matmul %82, %83, %cst_55 {dimension_numbers = #tpu.dot_dimension_numbers<[1], [0], [0], [1], [0, 0, 1, 1], [], []>} : vector<32x128xbf16>, vector<128x128xbf16>, vector<32x128xf32> -> vector<32x128xf32>
    %85 = arith.addf %80, %84 : vector<32x128xf32>
    %c2_56 = arith.constant 2 : index
    %c1_57 = arith.constant 1 : index
    %c0_58 = arith.constant 0 : index
    %86 = vector.load %arg8[%c2_56, %c1_57, %c0_58] : memref<6x10x128xbf16, #tpu.memory_space<vmem>>, vector<4x8x128xbf16>
    %87 = vector.shape_cast %86 : vector<4x8x128xbf16> to vector<32x128xbf16>
    %c896 = arith.constant 896 : index
    %c0_59 = arith.constant 0 : index
    %88 = vector.load %arg5[%c896, %c0_59] : memref<1152x128xbf16, #tpu.memory_space<vmem>>, vector<128x128xbf16>
    %cst_60 = arith.constant dense<0.000000e+00> : vector<32x128xf32>
    %89 = tpu.matmul %87, %88, %cst_60 {dimension_numbers = #tpu.dot_dimension_numbers<[1], [0], [0], [1], [0, 0, 1, 1], [], []>} : vector<32x128xbf16>, vector<128x128xbf16>, vector<32x128xf32> -> vector<32x128xf32>
    %90 = arith.addf %85, %89 : vector<32x128xf32>
    %c2_61 = arith.constant 2 : index
    %c2_62 = arith.constant 2 : index
    %c0_63 = arith.constant 0 : index
    %91 = vector.load %arg8[%c2_61, %c2_62, %c0_63] : memref<6x10x128xbf16, #tpu.memory_space<vmem>>, vector<4x8x128xbf16>
    %92 = vector.shape_cast %91 : vector<4x8x128xbf16> to vector<32x128xbf16>
    %c1024 = arith.constant 1024 : index
    %c0_64 = arith.constant 0 : index
    %93 = vector.load %arg5[%c1024, %c0_64] : memref<1152x128xbf16, #tpu.memory_space<vmem>>, vector<128x128xbf16>
    %cst_65 = arith.constant dense<0.000000e+00> : vector<32x128xf32>
    %94 = tpu.matmul %92, %93, %cst_65 {dimension_numbers = #tpu.dot_dimension_numbers<[1], [0], [0], [1], [0, 0, 1, 1], [], []>} : vector<32x128xbf16>, vector<128x128xbf16>, vector<32x128xf32> -> vector<32x128xf32>
    %95 = arith.addf %90, %94 : vector<32x128xf32>
    %96 = vector.shape_cast %95 : vector<32x128xf32> to vector<4x8x128xf32>
    %97 = arith.truncf %96 : vector<4x8x128xf32> to vector<4x8x128xbf16>
    %c0_66 = arith.constant 0 : index
    %c0_67 = arith.constant 0 : index
    %c0_68 = arith.constant 0 : index
    %c0_69 = arith.constant 0 : index
    %98 = vector.load %arg6[%c0_66, %c0_67, %c0_68, %c0_69] : memref<1x4x8x128xbf16, #tpu.memory_space<vmem>>, vector<1x4x8x128xbf16>
    %99 = vector.shape_cast %98 : vector<1x4x8x128xbf16> to vector<4x8x128xbf16>
    %100 = vector.shape_cast %97 : vector<4x8x128xbf16> to vector<1x4x8x128xbf16>
    tpu.vector_store %arg6[%c0_66, %c0_67, %c0_68, %c0_69], %100 {strides = array<i32>} : memref<1x4x8x128xbf16, #tpu.memory_space<vmem>>, vector<1x4x8x128xbf16>,
    %c0_70 = arith.constant 0 : index
    %c0_71 = arith.constant 0 : index
    %c0_72 = arith.constant 0 : index
    %101 = vector.load %arg7[%c0_70, %c0_71, %c0_72] : memref<1x2x128xf32, #tpu.memory_space<vmem>>, vector<1x1x128xf32>
    %cst_73 = arith.constant dense<0.000000e+00> : vector<128xf32>
    %102 = vector.multi_reduction <add>, %95, %cst_73 [0] : vector<32x128xf32> to vector<128xf32>
    %103 = vector.shape_cast %102 : vector<128xf32> to vector<1x128xf32>
    %104 = vector.shape_cast %103 : vector<1x128xf32> to vector<1x1x128xf32>
    %105 = arith.addf %101, %104 : vector<1x1x128xf32>
    %c0_74 = arith.constant 0 : index
    %c0_75 = arith.constant 0 : index
    %c0_76 = arith.constant 0 : index
    %106 = vector.load %arg7[%c0_74, %c0_75, %c0_76] : memref<1x2x128xf32, #tpu.memory_space<vmem>>, vector<1x1x128xf32>
    tpu.vector_store %arg7[%c0_74, %c0_75, %c0_76], %105 {strides = array<i32>} : memref<1x2x128xf32, #tpu.memory_space<vmem>>, vector<1x1x128xf32>,
    %c0_77 = arith.constant 0 : index
    %c1_78 = arith.constant 1 : index
    %c0_79 = arith.constant 0 : index
    %107 = vector.load %arg7[%c0_77, %c1_78, %c0_79] : memref<1x2x128xf32, #tpu.memory_space<vmem>>, vector<1x1x128xf32>
    %108 = arith.mulf %95, %95 : vector<32x128xf32>
    %cst_80 = arith.constant dense<0.000000e+00> : vector<128xf32>
    %109 = vector.multi_reduction <add>, %108, %cst_80 [0] : vector<32x128xf32> to vector<128xf32>
    %110 = vector.shape_cast %109 : vector<128xf32> to vector<1x128xf32>
    %111 = vector.shape_cast %110 : vector<1x128xf32> to vector<1x1x128xf32>
    %112 = arith.addf %107, %111 : vector<1x1x128xf32>
    %c0_81 = arith.constant 0 : index
    %c1_82 = arith.constant 1 : index
    %c0_83 = arith.constant 0 : index
    %113 = vector.load %arg7[%c0_81, %c1_82, %c0_83] : memref<1x2x128xf32, #tpu.memory_space<vmem>>, vector<1x1x128xf32>
    tpu.vector_store %arg7[%c0_81, %c1_82, %c0_83], %112 {strides = array<i32>} : memref<1x2x128xf32, #tpu.memory_space<vmem>>, vector<1x1x128xf32>,
    return
  }
  func.func @transform_0(%arg0: i32, %arg1: i32) -> (i32, i32, i32, i32) {
    %c0_i32 = arith.constant 0 : i32
    %c0_i32_0 = arith.constant 0 : i32
    %c0_i32_1 = arith.constant 0 : i32
    return %arg0, %arg1, %c0_i32, %c0_i32_0 : i32, i32, i32, i32
  }
  func.func @transform_1(%arg0: i32, %arg1: i32) -> (i32, i32, i32, i32) {
    %c4_i32 = arith.constant 4 : i32
    %0 = arith.muli %arg1, %c4_i32 : i32
    %c1_i32 = arith.constant 1 : i32
    %1 = arith.subi %0, %c1_i32 : i32
    %c0_i32 = arith.constant 0 : i32
    %2 = arith.maxsi %1, %c0_i32 : i32
    %c0_i32_0 = arith.constant 0 : i32
    %c0_i32_1 = arith.constant 0 : i32
    %c0_i32_2 = arith.constant 0 : i32
    return %arg0, %2, %c0_i32_0, %c0_i32_1 : i32, i32, i32, i32
  }
  func.func @transform_2(%arg0: i32, %arg1: i32) -> (i32, i32, i32, i32) {
    %c1_i32 = arith.constant 1 : i32
    %0 = arith.addi %arg1, %c1_i32 : i32
    %c4_i32 = arith.constant 4 : i32
    %1 = arith.muli %0, %c4_i32 : i32
    %c7_i32 = arith.constant 7 : i32
    %2 = arith.minsi %1, %c7_i32 : i32
    %c0_i32 = arith.constant 0 : i32
    %c0_i32_0 = arith.constant 0 : i32
    %c0_i32_1 = arith.constant 0 : i32
    return %arg0, %2, %c0_i32, %c0_i32_0 : i32, i32, i32, i32
  }
  func.func @transform_3(%arg0: i32, %arg1: i32) -> (i32, i32) {
    %c0_i32 = arith.constant 0 : i32
    %c0_i32_0 = arith.constant 0 : i32
    %c0_i32_1 = arith.constant 0 : i32
    return %c0_i32, %c0_i32_0 : i32, i32
  }
  func.func @transform_4(%arg0: i32, %arg1: i32) -> (i32, i32, i32, i32) {
    %c0_i32 = arith.constant 0 : i32
    %c0_i32_0 = arith.constant 0 : i32
    %c0_i32_1 = arith.constant 0 : i32
    return %arg0, %arg1, %c0_i32, %c0_i32_0 : i32, i32, i32, i32
  }
  func.func @transform_5(%arg0: i32, %arg1: i32) -> (i32, i32, i32) {
    %c0_i32 = arith.constant 0 : i32
    %c0_i32_0 = arith.constant 0 : i32
    %c0_i32_1 = arith.constant 0 : i32
    return %arg0, %c0_i32, %c0_i32_0 : i32, i32, i32
  }
}

module attributes {stable_mosaic.version = 11 : i64} {
  func.func @_phase_c_kernel(%arg0: i32, %arg1: i32, %arg2: memref<1x4x8x128xbf16, #tpu.memory_space<vmem>>, %arg3: memref<2x128xf32, #tpu.memory_space<vmem>>, %arg4: memref<1x4x8x8xf32, #tpu.memory_space<vmem>>) attributes {dimension_semantics = [#tpu.dimension_semantics<parallel>, #tpu.dimension_semantics<parallel>], iteration_bounds = array<i64: 2, 2>, scalar_prefetch = 0 : i64, scratch_operands = 0 : i64, tpu.core_type = #tpu.core_type<tc>, window_params = [{transform_indices = @transform_0, window_bounds = array<i64: 1, 4, 8, 128>}, {pipeline_mode = #tpu.pipeline_mode<synchronous>, transform_indices = @transform_1, window_bounds = array<i64: 2, 128>}, {transform_indices = @transform_2, window_bounds = array<i64: 1, 4, 8, 8>}]} {
    %c0 = arith.constant 0 : index
    %c0_0 = arith.constant 0 : index
    %0 = vector.load %arg3[%c0, %c0_0] : memref<2x128xf32, #tpu.memory_space<vmem>>, vector<1x128xf32>
    %1 = vector.shape_cast %0 : vector<1x128xf32> to vector<1x1x128xf32>
    %c1 = arith.constant 1 : index
    %c0_1 = arith.constant 0 : index
    %2 = vector.load %arg3[%c1, %c0_1] : memref<2x128xf32, #tpu.memory_space<vmem>>, vector<1x128xf32>
    %3 = vector.shape_cast %2 : vector<1x128xf32> to vector<1x1x128xf32>
    %c0_2 = arith.constant 0 : index
    %c0_3 = arith.constant 0 : index
    %c0_4 = arith.constant 0 : index
    %c0_5 = arith.constant 0 : index
    %4 = vector.load %arg2[%c0_2, %c0_3, %c0_4, %c0_5] : memref<1x4x8x128xbf16, #tpu.memory_space<vmem>>, vector<1x4x8x128xbf16>
    %5 = vector.shape_cast %4 : vector<1x4x8x128xbf16> to vector<4x8x128xbf16>
    %6 = arith.extf %5 : vector<4x8x128xbf16> to vector<4x8x128xf32>
    %7 = vector.broadcast %1 : vector<1x1x128xf32> to vector<4x8x128xf32>
    %8 = arith.mulf %6, %7 : vector<4x8x128xf32>
    %9 = vector.broadcast %3 : vector<1x1x128xf32> to vector<4x8x128xf32>
    %10 = arith.addf %8, %9 : vector<4x8x128xf32>
    %cst = arith.constant 0.000000e+00 : f32
    %11 = vector.broadcast %cst : f32 to vector<4x8x128xf32>
    %12 = arith.maximumf %10, %11 : vector<4x8x128xf32>
    %13 = vector.extract_strided_slice %12 {offsets = [0, 0, 0], sizes = [4, 8, 8], strides = [1, 1, 1]} : vector<4x8x128xf32> to vector<4x8x8xf32>
    %c0_6 = arith.constant 0 : index
    %c0_7 = arith.constant 0 : index
    %c0_8 = arith.constant 0 : index
    %c0_9 = arith.constant 0 : index
    %14 = vector.load %arg4[%c0_6, %c0_7, %c0_8, %c0_9] : memref<1x4x8x8xf32, #tpu.memory_space<vmem>>, vector<1x4x8x8xf32>
    %15 = vector.shape_cast %14 : vector<1x4x8x8xf32> to vector<4x8x8xf32>
    %16 = vector.shape_cast %13 : vector<4x8x8xf32> to vector<1x4x8x8xf32>
    tpu.vector_store %arg4[%c0_6, %c0_7, %c0_8, %c0_9], %16 {strides = array<i32>} : memref<1x4x8x8xf32, #tpu.memory_space<vmem>>, vector<1x4x8x8xf32>,
    return
  }
  func.func @transform_0(%arg0: i32, %arg1: i32) -> (i32, i32, i32, i32) {
    %c0_i32 = arith.constant 0 : i32
    %c0_i32_0 = arith.constant 0 : i32
    %c0_i32_1 = arith.constant 0 : i32
    return %arg0, %arg1, %c0_i32, %c0_i32_0 : i32, i32, i32, i32
  }
  func.func @transform_1(%arg0: i32, %arg1: i32) -> (i32, i32) {
    %c0_i32 = arith.constant 0 : i32
    %c0_i32_0 = arith.constant 0 : i32
    %c0_i32_1 = arith.constant 0 : i32
    return %c0_i32, %c0_i32_0 : i32, i32
  }
  func.func @transform_2(%arg0: i32, %arg1: i32) -> (i32, i32, i32, i32) {
    %c0_i32 = arith.constant 0 : i32
    %c0_i32_0 = arith.constant 0 : i32
    %c0_i32_1 = arith.constant 0 : i32
    return %arg0, %arg1, %c0_i32, %c0_i32_0 : i32, i32, i32, i32
  }
}

module attributes {stable_mosaic.version = 11 : i64} {
  func.func @_phase_b_kernel(%arg0: i32, %arg1: i32, %arg2: memref<1x4x8x128xbf16, #tpu.memory_space<vmem>>, %arg3: memref<1x1x8x128xbf16, #tpu.memory_space<vmem>>, %arg4: memref<1x1x8x128xbf16, #tpu.memory_space<vmem>>, %arg5: memref<2x128xf32, #tpu.memory_space<vmem>>, %arg6: memref<1152x128xbf16, #tpu.memory_space<vmem>>, %arg7: memref<1x4x8x128xbf16, #tpu.memory_space<vmem>>, %arg8: memref<1x2x128xf32, #tpu.memory_space<vmem>>, %arg9: memref<6x10x128xbf16, #tpu.memory_space<vmem>>) attributes {dimension_semantics = [#tpu.dimension_semantics<parallel>, #tpu.dimension_semantics<arbitrary>], iteration_bounds = array<i64: 2, 2>, scalar_prefetch = 0 : i64, scratch_operands = 1 : i64, tpu.core_type = #tpu.core_type<tc>, window_params = [{transform_indices = @transform_0, window_bounds = array<i64: 1, 4, 8, 128>}, {transform_indices = @transform_1, window_bounds = array<i64: 1, 1, 8, 128>}, {transform_indices = @transform_2, window_bounds = array<i64: 1, 1, 8, 128>}, {pipeline_mode = #tpu.pipeline_mode<synchronous>, transform_indices = @transform_3, window_bounds = array<i64: 2, 128>}, {pipeline_mode = #tpu.pipeline_mode<synchronous>, transform_indices = @transform_4, window_bounds = array<i64: 1152, 128>}, {transform_indices = @transform_5, window_bounds = array<i64: 1, 4, 8, 128>}, {transform_indices = @transform_6, window_bounds = array<i64: 1, 2, 128>}]} {
    %c0_i32 = arith.constant 0 : i32
    %0 = arith.cmpi eq, %arg1, %c0_i32 : i32
    %1 = arith.extui %0 : i1 to i32
    %c0_i32_0 = arith.constant 0 : i32
    %2 = arith.cmpi ne, %1, %c0_i32_0 : i32
    scf.if %2 {
      %cst_91 = arith.constant 0.000000e+00 : bf16
      %109 = vector.broadcast %cst_91 : bf16 to vector<6x10x128xbf16>
      %c0_92 = arith.constant 0 : index
      %c0_93 = arith.constant 0 : index
      %c0_94 = arith.constant 0 : index
      %110 = vector.load %arg9[%c0_92, %c0_93, %c0_94] : memref<6x10x128xbf16, #tpu.memory_space<vmem>>, vector<6x10x128xbf16>
      tpu.vector_store %arg9[%c0_92, %c0_93, %c0_94], %109 {strides = array<i32>} : memref<6x10x128xbf16, #tpu.memory_space<vmem>>, vector<6x10x128xbf16>,
      %cst_95 = arith.constant 0.000000e+00 : f32
      %111 = vector.broadcast %cst_95 : f32 to vector<1x2x128xf32>
      %c0_96 = arith.constant 0 : index
      %c0_97 = arith.constant 0 : index
      %c0_98 = arith.constant 0 : index
      %112 = vector.load %arg8[%c0_96, %c0_97, %c0_98] : memref<1x2x128xf32, #tpu.memory_space<vmem>>, vector<1x2x128xf32>
      tpu.vector_store %arg8[%c0_96, %c0_97, %c0_98], %111 {strides = array<i32>} : memref<1x2x128xf32, #tpu.memory_space<vmem>>, vector<1x2x128xf32>,
    } else {
    }
    %c0 = arith.constant 0 : index
    %c0_1 = arith.constant 0 : index
    %3 = vector.load %arg5[%c0, %c0_1] : memref<2x128xf32, #tpu.memory_space<vmem>>, vector<1x128xf32>
    %4 = vector.shape_cast %3 : vector<1x128xf32> to vector<1x1x128xf32>
    %c1 = arith.constant 1 : index
    %c0_2 = arith.constant 0 : index
    %5 = vector.load %arg5[%c1, %c0_2] : memref<2x128xf32, #tpu.memory_space<vmem>>, vector<1x128xf32>
    %6 = vector.shape_cast %5 : vector<1x128xf32> to vector<1x1x128xf32>
    %c0_3 = arith.constant 0 : index
    %c0_4 = arith.constant 0 : index
    %c0_5 = arith.constant 0 : index
    %c0_6 = arith.constant 0 : index
    %7 = vector.load %arg2[%c0_3, %c0_4, %c0_5, %c0_6] : memref<1x4x8x128xbf16, #tpu.memory_space<vmem>>, vector<1x4x8x128xbf16>
    %8 = vector.shape_cast %7 : vector<1x4x8x128xbf16> to vector<4x8x128xbf16>
    %9 = arith.extf %8 : vector<4x8x128xbf16> to vector<4x8x128xf32>
    %10 = vector.broadcast %4 : vector<1x1x128xf32> to vector<4x8x128xf32>
    %11 = arith.mulf %9, %10 : vector<4x8x128xf32>
    %12 = vector.broadcast %6 : vector<1x1x128xf32> to vector<4x8x128xf32>
    %13 = arith.addf %11, %12 : vector<4x8x128xf32>
    %cst = arith.constant 0.000000e+00 : f32
    %14 = vector.broadcast %cst : f32 to vector<4x8x128xf32>
    %15 = arith.maximumf %13, %14 : vector<4x8x128xf32>
    %16 = arith.truncf %15 : vector<4x8x128xf32> to vector<4x8x128xbf16>
    %c1_7 = arith.constant 1 : index
    %c1_8 = arith.constant 1 : index
    %c0_9 = arith.constant 0 : index
    %17 = vector.load %arg9[%c1_7, %c1_8, %c0_9] : memref<6x10x128xbf16, #tpu.memory_space<vmem>>, vector<4x8x128xbf16>
    tpu.vector_store %arg9[%c1_7, %c1_8, %c0_9], %16 {strides = array<i32>} : memref<6x10x128xbf16, #tpu.memory_space<vmem>>, vector<4x8x128xbf16>,
    %c0_10 = arith.constant 0 : index
    %c0_11 = arith.constant 0 : index
    %c0_12 = arith.constant 0 : index
    %c0_13 = arith.constant 0 : index
    %18 = vector.load %arg3[%c0_10, %c0_11, %c0_12, %c0_13] : memref<1x1x8x128xbf16, #tpu.memory_space<vmem>>, vector<1x1x8x128xbf16>
    %19 = vector.shape_cast %18 : vector<1x1x8x128xbf16> to vector<1x8x128xbf16>
    %20 = arith.extf %19 : vector<1x8x128xbf16> to vector<1x8x128xf32>
    %21 = vector.broadcast %4 : vector<1x1x128xf32> to vector<1x8x128xf32>
    %22 = arith.mulf %20, %21 : vector<1x8x128xf32>
    %23 = vector.broadcast %6 : vector<1x1x128xf32> to vector<1x8x128xf32>
    %24 = arith.addf %22, %23 : vector<1x8x128xf32>
    %cst_14 = arith.constant 0.000000e+00 : f32
    %25 = vector.broadcast %cst_14 : f32 to vector<1x8x128xf32>
    %26 = arith.maximumf %24, %25 : vector<1x8x128xf32>
    %c0_15 = arith.constant 0 : index
    %c0_16 = arith.constant 0 : index
    %c0_17 = arith.constant 0 : index
    %c0_18 = arith.constant 0 : index
    %27 = vector.load %arg4[%c0_15, %c0_16, %c0_17, %c0_18] : memref<1x1x8x128xbf16, #tpu.memory_space<vmem>>, vector<1x1x8x128xbf16>
    %28 = vector.shape_cast %27 : vector<1x1x8x128xbf16> to vector<1x8x128xbf16>
    %29 = arith.extf %28 : vector<1x8x128xbf16> to vector<1x8x128xf32>
    %30 = vector.broadcast %4 : vector<1x1x128xf32> to vector<1x8x128xf32>
    %31 = arith.mulf %29, %30 : vector<1x8x128xf32>
    %32 = vector.broadcast %6 : vector<1x1x128xf32> to vector<1x8x128xf32>
    %33 = arith.addf %31, %32 : vector<1x8x128xf32>
    %cst_19 = arith.constant 0.000000e+00 : f32
    %34 = vector.broadcast %cst_19 : f32 to vector<1x8x128xf32>
    %35 = arith.maximumf %33, %34 : vector<1x8x128xf32>
    %cst_20 = arith.constant 0.000000e+00 : f32
    %36 = vector.broadcast %cst_20 : f32 to vector<1x8x128xf32>
    %c0_i32_21 = arith.constant 0 : i32
    %37 = arith.cmpi sgt, %arg1, %c0_i32_21 : i32
    %38 = arith.select %37, %26, %36 : vector<1x8x128xf32>
    %39 = arith.truncf %38 : vector<1x8x128xf32> to vector<1x8x128xbf16>
    %c0_22 = arith.constant 0 : index
    %c1_23 = arith.constant 1 : index
    %c0_24 = arith.constant 0 : index
    %40 = vector.load %arg9[%c0_22, %c1_23, %c0_24] : memref<6x10x128xbf16, #tpu.memory_space<vmem>>, vector<1x8x128xbf16>
    tpu.vector_store %arg9[%c0_22, %c1_23, %c0_24], %39 {strides = array<i32>} : memref<6x10x128xbf16, #tpu.memory_space<vmem>>, vector<1x8x128xbf16>,
    %c1_i32 = arith.constant 1 : i32
    %41 = arith.cmpi slt, %arg1, %c1_i32 : i32
    %42 = arith.select %41, %35, %36 : vector<1x8x128xf32>
    %43 = arith.truncf %42 : vector<1x8x128xf32> to vector<1x8x128xbf16>
    %c5 = arith.constant 5 : index
    %c1_25 = arith.constant 1 : index
    %c0_26 = arith.constant 0 : index
    %44 = vector.load %arg9[%c5, %c1_25, %c0_26] : memref<6x10x128xbf16, #tpu.memory_space<vmem>>, vector<1x8x128xbf16>
    tpu.vector_store %arg9[%c5, %c1_25, %c0_26], %43 {strides = array<i32>} : memref<6x10x128xbf16, #tpu.memory_space<vmem>>, vector<1x8x128xbf16>,
    %cst_27 = arith.constant 0.000000e+00 : f32
    %45 = vector.broadcast %cst_27 : f32 to vector<32x128xf32>
    %c0_28 = arith.constant 0 : index
    %c0_29 = arith.constant 0 : index
    %c0_30 = arith.constant 0 : index
    %46 = vector.load %arg9[%c0_28, %c0_29, %c0_30] : memref<6x10x128xbf16, #tpu.memory_space<vmem>>, vector<4x8x128xbf16>
    %47 = vector.shape_cast %46 : vector<4x8x128xbf16> to vector<32x128xbf16>
    %c0_31 = arith.constant 0 : index
    %c0_32 = arith.constant 0 : index
    %48 = vector.load %arg6[%c0_31, %c0_32] : memref<1152x128xbf16, #tpu.memory_space<vmem>>, vector<128x128xbf16>
    %cst_33 = arith.constant dense<0.000000e+00> : vector<32x128xf32>
    %49 = tpu.matmul %47, %48, %cst_33 {dimension_numbers = #tpu.dot_dimension_numbers<[1], [0], [0], [1], [0, 0, 1, 1], [], []>} : vector<32x128xbf16>, vector<128x128xbf16>, vector<32x128xf32> -> vector<32x128xf32>
    %50 = arith.addf %45, %49 : vector<32x128xf32>
    %c0_34 = arith.constant 0 : index
    %c1_35 = arith.constant 1 : index
    %c0_36 = arith.constant 0 : index
    %51 = vector.load %arg9[%c0_34, %c1_35, %c0_36] : memref<6x10x128xbf16, #tpu.memory_space<vmem>>, vector<4x8x128xbf16>
    %52 = vector.shape_cast %51 : vector<4x8x128xbf16> to vector<32x128xbf16>
    %c128 = arith.constant 128 : index
    %c0_37 = arith.constant 0 : index
    %53 = vector.load %arg6[%c128, %c0_37] : memref<1152x128xbf16, #tpu.memory_space<vmem>>, vector<128x128xbf16>
    %cst_38 = arith.constant dense<0.000000e+00> : vector<32x128xf32>
    %54 = tpu.matmul %52, %53, %cst_38 {dimension_numbers = #tpu.dot_dimension_numbers<[1], [0], [0], [1], [0, 0, 1, 1], [], []>} : vector<32x128xbf16>, vector<128x128xbf16>, vector<32x128xf32> -> vector<32x128xf32>
    %55 = arith.addf %50, %54 : vector<32x128xf32>
    %c0_39 = arith.constant 0 : index
    %c2 = arith.constant 2 : index
    %c0_40 = arith.constant 0 : index
    %56 = vector.load %arg9[%c0_39, %c2, %c0_40] : memref<6x10x128xbf16, #tpu.memory_space<vmem>>, vector<4x8x128xbf16>
    %57 = vector.shape_cast %56 : vector<4x8x128xbf16> to vector<32x128xbf16>
    %c256 = arith.constant 256 : index
    %c0_41 = arith.constant 0 : index
    %58 = vector.load %arg6[%c256, %c0_41] : memref<1152x128xbf16, #tpu.memory_space<vmem>>, vector<128x128xbf16>
    %cst_42 = arith.constant dense<0.000000e+00> : vector<32x128xf32>
    %59 = tpu.matmul %57, %58, %cst_42 {dimension_numbers = #tpu.dot_dimension_numbers<[1], [0], [0], [1], [0, 0, 1, 1], [], []>} : vector<32x128xbf16>, vector<128x128xbf16>, vector<32x128xf32> -> vector<32x128xf32>
    %60 = arith.addf %55, %59 : vector<32x128xf32>
    %c1_43 = arith.constant 1 : index
    %c0_44 = arith.constant 0 : index
    %c0_45 = arith.constant 0 : index
    %61 = vector.load %arg9[%c1_43, %c0_44, %c0_45] : memref<6x10x128xbf16, #tpu.memory_space<vmem>>, vector<4x8x128xbf16>
    %62 = vector.shape_cast %61 : vector<4x8x128xbf16> to vector<32x128xbf16>
    %c384 = arith.constant 384 : index
    %c0_46 = arith.constant 0 : index
    %63 = vector.load %arg6[%c384, %c0_46] : memref<1152x128xbf16, #tpu.memory_space<vmem>>, vector<128x128xbf16>
    %cst_47 = arith.constant dense<0.000000e+00> : vector<32x128xf32>
    %64 = tpu.matmul %62, %63, %cst_47 {dimension_numbers = #tpu.dot_dimension_numbers<[1], [0], [0], [1], [0, 0, 1, 1], [], []>} : vector<32x128xbf16>, vector<128x128xbf16>, vector<32x128xf32> -> vector<32x128xf32>
    %65 = arith.addf %60, %64 : vector<32x128xf32>
    %c1_48 = arith.constant 1 : index
    %c1_49 = arith.constant 1 : index
    %c0_50 = arith.constant 0 : index
    %66 = vector.load %arg9[%c1_48, %c1_49, %c0_50] : memref<6x10x128xbf16, #tpu.memory_space<vmem>>, vector<4x8x128xbf16>
    %67 = vector.shape_cast %66 : vector<4x8x128xbf16> to vector<32x128xbf16>
    %c512 = arith.constant 512 : index
    %c0_51 = arith.constant 0 : index
    %68 = vector.load %arg6[%c512, %c0_51] : memref<1152x128xbf16, #tpu.memory_space<vmem>>, vector<128x128xbf16>
    %cst_52 = arith.constant dense<0.000000e+00> : vector<32x128xf32>
    %69 = tpu.matmul %67, %68, %cst_52 {dimension_numbers = #tpu.dot_dimension_numbers<[1], [0], [0], [1], [0, 0, 1, 1], [], []>} : vector<32x128xbf16>, vector<128x128xbf16>, vector<32x128xf32> -> vector<32x128xf32>
    %70 = arith.addf %65, %69 : vector<32x128xf32>
    %c1_53 = arith.constant 1 : index
    %c2_54 = arith.constant 2 : index
    %c0_55 = arith.constant 0 : index
    %71 = vector.load %arg9[%c1_53, %c2_54, %c0_55] : memref<6x10x128xbf16, #tpu.memory_space<vmem>>, vector<4x8x128xbf16>
    %72 = vector.shape_cast %71 : vector<4x8x128xbf16> to vector<32x128xbf16>
    %c640 = arith.constant 640 : index
    %c0_56 = arith.constant 0 : index
    %73 = vector.load %arg6[%c640, %c0_56] : memref<1152x128xbf16, #tpu.memory_space<vmem>>, vector<128x128xbf16>
    %cst_57 = arith.constant dense<0.000000e+00> : vector<32x128xf32>
    %74 = tpu.matmul %72, %73, %cst_57 {dimension_numbers = #tpu.dot_dimension_numbers<[1], [0], [0], [1], [0, 0, 1, 1], [], []>} : vector<32x128xbf16>, vector<128x128xbf16>, vector<32x128xf32> -> vector<32x128xf32>
    %75 = arith.addf %70, %74 : vector<32x128xf32>
    %c2_58 = arith.constant 2 : index
    %c0_59 = arith.constant 0 : index
    %c0_60 = arith.constant 0 : index
    %76 = vector.load %arg9[%c2_58, %c0_59, %c0_60] : memref<6x10x128xbf16, #tpu.memory_space<vmem>>, vector<4x8x128xbf16>
    %77 = vector.shape_cast %76 : vector<4x8x128xbf16> to vector<32x128xbf16>
    %c768 = arith.constant 768 : index
    %c0_61 = arith.constant 0 : index
    %78 = vector.load %arg6[%c768, %c0_61] : memref<1152x128xbf16, #tpu.memory_space<vmem>>, vector<128x128xbf16>
    %cst_62 = arith.constant dense<0.000000e+00> : vector<32x128xf32>
    %79 = tpu.matmul %77, %78, %cst_62 {dimension_numbers = #tpu.dot_dimension_numbers<[1], [0], [0], [1], [0, 0, 1, 1], [], []>} : vector<32x128xbf16>, vector<128x128xbf16>, vector<32x128xf32> -> vector<32x128xf32>
    %80 = arith.addf %75, %79 : vector<32x128xf32>
    %c2_63 = arith.constant 2 : index
    %c1_64 = arith.constant 1 : index
    %c0_65 = arith.constant 0 : index
    %81 = vector.load %arg9[%c2_63, %c1_64, %c0_65] : memref<6x10x128xbf16, #tpu.memory_space<vmem>>, vector<4x8x128xbf16>
    %82 = vector.shape_cast %81 : vector<4x8x128xbf16> to vector<32x128xbf16>
    %c896 = arith.constant 896 : index
    %c0_66 = arith.constant 0 : index
    %83 = vector.load %arg6[%c896, %c0_66] : memref<1152x128xbf16, #tpu.memory_space<vmem>>, vector<128x128xbf16>
    %cst_67 = arith.constant dense<0.000000e+00> : vector<32x128xf32>
    %84 = tpu.matmul %82, %83, %cst_67 {dimension_numbers = #tpu.dot_dimension_numbers<[1], [0], [0], [1], [0, 0, 1, 1], [], []>} : vector<32x128xbf16>, vector<128x128xbf16>, vector<32x128xf32> -> vector<32x128xf32>
    %85 = arith.addf %80, %84 : vector<32x128xf32>
    %c2_68 = arith.constant 2 : index
    %c2_69 = arith.constant 2 : index
    %c0_70 = arith.constant 0 : index
    %86 = vector.load %arg9[%c2_68, %c2_69, %c0_70] : memref<6x10x128xbf16, #tpu.memory_space<vmem>>, vector<4x8x128xbf16>
    %87 = vector.shape_cast %86 : vector<4x8x128xbf16> to vector<32x128xbf16>
    %c1024 = arith.constant 1024 : index
    %c0_71 = arith.constant 0 : index
    %88 = vector.load %arg6[%c1024, %c0_71] : memref<1152x128xbf16, #tpu.memory_space<vmem>>, vector<128x128xbf16>
    %cst_72 = arith.constant dense<0.000000e+00> : vector<32x128xf32>
    %89 = tpu.matmul %87, %88, %cst_72 {dimension_numbers = #tpu.dot_dimension_numbers<[1], [0], [0], [1], [0, 0, 1, 1], [], []>} : vector<32x128xbf16>, vector<128x128xbf16>, vector<32x128xf32> -> vector<32x128xf32>
    %90 = arith.addf %85, %89 : vector<32x128xf32>
    %91 = vector.shape_cast %90 : vector<32x128xf32> to vector<4x8x128xf32>
    %92 = arith.truncf %91 : vector<4x8x128xf32> to vector<4x8x128xbf16>
    %c0_73 = arith.constant 0 : index
    %c0_74 = arith.constant 0 : index
    %c0_75 = arith.constant 0 : index
    %c0_76 = arith.constant 0 : index
    %93 = vector.load %arg7[%c0_73, %c0_74, %c0_75, %c0_76] : memref<1x4x8x128xbf16, #tpu.memory_space<vmem>>, vector<1x4x8x128xbf16>
    %94 = vector.shape_cast %93 : vector<1x4x8x128xbf16> to vector<4x8x128xbf16>
    %95 = vector.shape_cast %92 : vector<4x8x128xbf16> to vector<1x4x8x128xbf16>
    tpu.vector_store %arg7[%c0_73, %c0_74, %c0_75, %c0_76], %95 {strides = array<i32>} : memref<1x4x8x128xbf16, #tpu.memory_space<vmem>>, vector<1x4x8x128xbf16>,
    %c0_77 = arith.constant 0 : index
    %c0_78 = arith.constant 0 : index
    %c0_79 = arith.constant 0 : index
    %96 = vector.load %arg8[%c0_77, %c0_78, %c0_79] : memref<1x2x128xf32, #tpu.memory_space<vmem>>, vector<1x1x128xf32>
    %cst_80 = arith.constant dense<0.000000e+00> : vector<128xf32>
    %97 = vector.multi_reduction <add>, %90, %cst_80 [0] : vector<32x128xf32> to vector<128xf32>
    %98 = vector.shape_cast %97 : vector<128xf32> to vector<1x128xf32>
    %99 = vector.shape_cast %98 : vector<1x128xf32> to vector<1x1x128xf32>
    %100 = arith.addf %96, %99 : vector<1x1x128xf32>
    %c0_81 = arith.constant 0 : index
    %c0_82 = arith.constant 0 : index
    %c0_83 = arith.constant 0 : index
    %101 = vector.load %arg8[%c0_81, %c0_82, %c0_83] : memref<1x2x128xf32, #tpu.memory_space<vmem>>, vector<1x1x128xf32>
    tpu.vector_store %arg8[%c0_81, %c0_82, %c0_83], %100 {strides = array<i32>} : memref<1x2x128xf32, #tpu.memory_space<vmem>>, vector<1x1x128xf32>,
    %c0_84 = arith.constant 0 : index
    %c1_85 = arith.constant 1 : index
    %c0_86 = arith.constant 0 : index
    %102 = vector.load %arg8[%c0_84, %c1_85, %c0_86] : memref<1x2x128xf32, #tpu.memory_space<vmem>>, vector<1x1x128xf32>
    %103 = arith.mulf %90, %90 : vector<32x128xf32>
    %cst_87 = arith.constant dense<0.000000e+00> : vector<128xf32>
    %104 = vector.multi_reduction <add>, %103, %cst_87 [0] : vector<32x128xf32> to vector<128xf32>
    %105 = vector.shape_cast %104 : vector<128xf32> to vector<1x128xf32>
    %106 = vector.shape_cast %105 : vector<1x128xf32> to vector<1x1x128xf32>
    %107 = arith.addf %102, %106 : vector<1x1x128xf32>
    %c0_88 = arith.constant 0 : index
    %c1_89 = arith.constant 1 : index
    %c0_90 = arith.constant 0 : index
    %108 = vector.load %arg8[%c0_88, %c1_89, %c0_90] : memref<1x2x128xf32, #tpu.memory_space<vmem>>, vector<1x1x128xf32>
    tpu.vector_store %arg8[%c0_88, %c1_89, %c0_90], %107 {strides = array<i32>} : memref<1x2x128xf32, #tpu.memory_space<vmem>>, vector<1x1x128xf32>,
    return
  }
  func.func @transform_0(%arg0: i32, %arg1: i32) -> (i32, i32, i32, i32) {
    %c0_i32 = arith.constant 0 : i32
    %c0_i32_0 = arith.constant 0 : i32
    %c0_i32_1 = arith.constant 0 : i32
    return %arg0, %arg1, %c0_i32, %c0_i32_0 : i32, i32, i32, i32
  }
  func.func @transform_1(%arg0: i32, %arg1: i32) -> (i32, i32, i32, i32) {
    %c4_i32 = arith.constant 4 : i32
    %0 = arith.muli %arg1, %c4_i32 : i32
    %c1_i32 = arith.constant 1 : i32
    %1 = arith.subi %0, %c1_i32 : i32
    %c0_i32 = arith.constant 0 : i32
    %2 = arith.maxsi %1, %c0_i32 : i32
    %c0_i32_0 = arith.constant 0 : i32
    %c0_i32_1 = arith.constant 0 : i32
    %c0_i32_2 = arith.constant 0 : i32
    return %arg0, %2, %c0_i32_0, %c0_i32_1 : i32, i32, i32, i32
  }
  func.func @transform_2(%arg0: i32, %arg1: i32) -> (i32, i32, i32, i32) {
    %c1_i32 = arith.constant 1 : i32
    %0 = arith.addi %arg1, %c1_i32 : i32
    %c4_i32 = arith.constant 4 : i32
    %1 = arith.muli %0, %c4_i32 : i32
    %c7_i32 = arith.constant 7 : i32
    %2 = arith.minsi %1, %c7_i32 : i32
    %c0_i32 = arith.constant 0 : i32
    %c0_i32_0 = arith.constant 0 : i32
    %c0_i32_1 = arith.constant 0 : i32
    return %arg0, %2, %c0_i32, %c0_i32_0 : i32, i32, i32, i32
  }
  func.func @transform_3(%arg0: i32, %arg1: i32) -> (i32, i32) {
    %c0_i32 = arith.constant 0 : i32
    %c0_i32_0 = arith.constant 0 : i32
    %c0_i32_1 = arith.constant 0 : i32
    return %c0_i32, %c0_i32_0 : i32, i32
  }
  func.func @transform_4(%arg0: i32, %arg1: i32) -> (i32, i32) {
    %c0_i32 = arith.constant 0 : i32
    %c0_i32_0 = arith.constant 0 : i32
    %c0_i32_1 = arith.constant 0 : i32
    return %c0_i32, %c0_i32_0 : i32, i32
  }
  func.func @transform_5(%arg0: i32, %arg1: i32) -> (i32, i32, i32, i32) {
    %c0_i32 = arith.constant 0 : i32
    %c0_i32_0 = arith.constant 0 : i32
    %c0_i32_1 = arith.constant 0 : i32
    return %arg0, %arg1, %c0_i32, %c0_i32_0 : i32, i32, i32, i32
  }
  func.func @transform_6(%arg0: i32, %arg1: i32) -> (i32, i32, i32) {
    %c0_i32 = arith.constant 0 : i32
    %c0_i32_0 = arith.constant 0 : i32
    %c0_i32_1 = arith.constant 0 : i32
    return %arg0, %c0_i32, %c0_i32_0 : i32, i32, i32
  }
}

</mosaic_0001>

<llo_original>
// kernel: _lambda_.5
$region0: #{_lambda_.5}
  #allocation0 [shape = 'u32[]', space=smem, size = 0x4, offset = 0x4, fixed_abs, tag = 'smem constant byte address 0x4 - core index']
  #allocation1 [shape = 'u32[72,128]{1,0:T(1,128)}', space=vmem, size = 0x9000, scoped, tag = 'internal scratch']
  %s0 = inlined_call_operand.vmem [shape: bf16[2,8,8,128], index: 0, kind: input, shape index: {}]
  %s1 = inlined_call_operand.vmem [shape: f32[2,128], index: 1, kind: input, shape index: {}]
  %s2 = inlined_call_operand.vmem [shape: f32[2,8,8,8], index: 2, kind: output, shape index: {}]
  %s3 = sld [smem:[#allocation0]]
  $region41: #{_lambda_.5} parent=0
    _
  %s5 = ssub.s32 1, %s3
  %s6 = scalar_select 0, %s5, %s3
  loop: start=0, step=1, limit=6
  $region2: #{_lambda_.5} parent=0 // loop_pre_header
    _
  $region3: #{_lambda_.5} parent=0 // loop_header
    %s8 = sphi 0, %s12
    %p9 = scmp.ge.s32.totalorder %s8, 6
    %s15 = sphi 0, %s27
    %s16 = sphi 0, %s23
    %s17 = sphi 0, %s15
    %s18 = sphi 0, %s16
    %s19 = sphi 0, %s17
    %s20 = sphi 0, %s18
    %s32 = sphi 0, %s34
    %s35 = sphi 0, %s32
    %s36 = sphi 0, %s35
    %s52 = sphi 0, %s36
    %s56 = sphi 0, %s56
    %s58 = sphi 0, %s56
    %s59 = sphi 0, %s58
    %s73 = sphi 0, %s59
    %s81 = sphi 0, %s83
    %s84 = sphi 0, %s81
    %s85 = sphi 0, %s84
    %s101 = sphi 0, %s85
  $region4: #{_lambda_.5} parent=0 // loop_header_branch
    %11 = sbr.rel (%p9) target = $region8
  $region5: #{_lambda_.5} parent=0 // loop_body
    %s13 = ssub.s32 %s8, 1
    %s14 = ssub.s32 %s8, 2
    %s21 = sadd.s32 1, %s16
    %p22 = scmp.ge.s32.totalorder %s21, 2
    %s23 = scalar_select %p22, 0, %s21
    %s24 = sadd.s32 1, %s15
    %s25 = scalar_select %p22, %s24, %s15
    %p26 = scmp.ge.s32.totalorder %s25, 2
    %s27 = scalar_select %p26, 0, %s25
    %s28 = ssub.s32 %s15, %s27
    %s29 = ssub.s32 %s16, %s23
    %s30 = sor.u32 %s28, %s29
    %p31 = scmp.eq.s32.totalorder %s30, 0
    %s33 = sadd.s32 %s32, 1
    %s34 = scalar_select %p31, %s32, %s33
    %p37 = pneg %p31
    %p38 = scmp.eq.s32.totalorder %s8, 3
    %p39 = por %p37, %p38
    %p40 = scmp.ne.s32.totalorder %s32, %s35
    %p41 = scmp.eq.s32.totalorder %s8, 0
    %p42 = por %p40, %p41
    %p43 = scmp.ne.s32.totalorder %s32, %s35
    %p44 = scmp.eq.s32.totalorder %s13, 3
    %p45 = por %p43, %p44
    %p46 = scmp.ne.s32.totalorder %s35, %s36
    %p47 = scmp.eq.s32.totalorder %s13, 0
    %p48 = por %p46, %p47
    %p49 = scmp.ne.s32.totalorder %s35, %s36
    %p50 = scmp.eq.s32.totalorder %s14, 3
    %p51 = por %p49, %p50
    %p53 = scmp.ne.s32.totalorder %s36, %s52
    %p54 = scmp.eq.s32.totalorder %s14, 0
    %p55 = por %p53, %p54
    %s57 = sadd.s32 %s56, 1
    %p60 = scmp.eq.s32.totalorder %s8, 3
    %p61 = scmp.ne.s32.totalorder %s56, %s58
    %p62 = scmp.eq.s32.totalorder %s8, 0
    %p63 = por %p61, %p62
    %p64 = scmp.ne.s32.totalorder %s56, %s58
    %p65 = scmp.eq.s32.totalorder %s13, 3
    %p66 = por %p64, %p65
    %p67 = scmp.ne.s32.totalorder %s58, %s59
    %p68 = scmp.eq.s32.totalorder %s13, 0
    %p69 = por %p67, %p68
    %p70 = scmp.ne.s32.totalorder %s58, %s59
    %p71 = scmp.eq.s32.totalorder %s14, 3
    %p72 = por %p70, %p71
    %p74 = scmp.ne.s32.totalorder %s59, %s73
    %p75 = scmp.eq.s32.totalorder %s14, 0
    %p76 = por %p74, %p75
    %s77 = ssub.s32 %s15, %s27
    %s78 = ssub.s32 %s16, %s23
    %s79 = sor.u32 %s77, %s78
    %p80 = scmp.eq.s32.totalorder %s79, 0
    %s82 = sadd.s32 %s81, 1
    %s83 = scalar_select %p80, %s81, %s82
    %p86 = pneg %p80
    %p87 = scmp.eq.s32.totalorder %s8, 3
    %p88 = por %p86, %p87
    %p89 = scmp.ne.s32.totalorder %s81, %s84
    %p90 = scmp.eq.s32.totalorder %s8, 0
    %p91 = por %p89, %p90
    %p92 = scmp.ne.s32.totalorder %s81, %s84
    %p93 = scmp.eq.s32.totalorder %s13, 3
    %p94 = por %p92, %p93
    %p95 = scmp.ne.s32.totalorder %s84, %s85
    %p96 = scmp.eq.s32.totalorder %s13, 0
    %p97 = por %p95, %p96
    %p98 = scmp.ne.s32.totalorder %s84, %s85
    %p99 = scmp.eq.s32.totalorder %s14, 3
    %p100 = por %p98, %p99
    %p102 = scmp.ne.s32.totalorder %s85, %s101
    %p103 = scmp.eq.s32.totalorder %s14, 0
    %p104 = por %p102, %p103
    %p105 = scmp.le.s32.totalorder 1, %s8
    %p106 = scmp.lt.s32.totalorder %s8, 5
    %p107 = pnand %p105, %p106
    %p108 = pneg %p107
    // Predicated region
    $region9: #{_lambda_.5} parent=5 // pred_check
      _
    $region10: #{_lambda_.5} parent=5 // pred_check_branch
      %110 = sbr.rel (%p107) target = $region12
    $region11: #{_lambda_.5} parent=5 // pred_region
      %s111 = ssub.s32 %s8, 1
      // Predicated region
      $region13: #{_lambda_.5} parent=11 // pred_check
        %p112 = pneg %p69
      $region14: #{_lambda_.5} parent=11 // pred_check_branch
        %114 = sbr.rel (%p112) target = $region16
      $region15: #{_lambda_.5} parent=11 // pred_region
        _
      $region16: #{_lambda_.5} parent=11 // pred_fallthru
        _
    $region12: #{_lambda_.5} parent=5 // pred_fallthru
      _
    %p115 = scmp.lt.s32.totalorder %s8, 4
    // Predicated region
    $region17: #{_lambda_.5} parent=5 // pred_check
      %p116 = pneg %p115
    $region18: #{_lambda_.5} parent=5 // pred_check_branch
      %118 = sbr.rel (%p116) target = $region20
    $region19: #{_lambda_.5} parent=5 // pred_region
      // Predicated region
      $region21: #{_lambda_.5} parent=19 // pred_check
        %p119 = pneg %p42
      $region22: #{_lambda_.5} parent=19 // pred_check_branch
        %121 = sbr.rel (%p119) target = $region24
      $region23: #{_lambda_.5} parent=19 // pred_region
        %s122 = smul.u32 4, %s16
        %p123 = scmp.lt.s32.totalorder %s15, 1
        %s124 = scalar_select %p123, %s15, 1
        %p125 = scmp.lt.s32.totalorder %s122, 7
        %s126 = scalar_select %p125, %s122, 7
        %s127 = smul.addr %s124, 8
        %s128 = sadd.s32 %s126, %s127
        %s129 = smul.addr %s128, 4
        %s130 = scalar_lea.vmem %s0, %s129
        %s131 = smul.u32 4, %s16
      $region24: #{_lambda_.5} parent=19 // pred_fallthru
        _
    $region20: #{_lambda_.5} parent=5 // pred_fallthru
      _
    %p132 = scmp.le.s32.totalorder 1, %s8
    %p133 = scmp.lt.s32.totalorder %s8, 5
    %p134 = pnand %p132, %p133
    %p135 = pneg %p134
    // Predicated region
    $region25: #{_lambda_.5} parent=5 // pred_check
      _
    $region26: #{_lambda_.5} parent=5 // pred_check_branch
      %137 = sbr.rel (%p134) target = $region28
    $region27: #{_lambda_.5} parent=5 // pred_region
      %s138 = ssub.s32 %s8, 1
      %s139 = smul.u32 4, %s18
      %p140 = scmp.lt.s32.totalorder %s17, 1
      %s141 = scalar_select %p140, %s17, 1
      %p142 = scmp.lt.s32.totalorder %s139, 7
      %s143 = scalar_select %p142, %s139, 7
      %s144 = smul.addr %s141, 8
      %s145 = sadd.s32 %s143, %s144
      %s146 = smul.addr %s145, 4
      %s147 = scalar_lea.vmem %s0, %s146
      %p148 = pneg %p48
      %p149 = pneg %p45
      %p150 = pneg %p69
      %p151 = pneg %p66
      %p152 = pneg %p97
      %p153 = pneg %p94
      %s154 = smul.u32 4, %s18
      %p155 = scmp.lt.s32.totalorder %s17, 1
      %s156 = scalar_select %p155, %s17, 1
      %p157 = scmp.lt.s32.totalorder %s154, 7
      %s158 = scalar_select %p157, %s154, 7
      %s159 = smul.addr %s156, 8
      %s160 = sadd.s32 %s158, %s159
      %s161 = smul.addr %s160, 8
      %s162 = scalar_lea.vmem %s2, %s161
      %s163 = smul.u32 4, %s18
      %p164 = scmp.lt.s32.totalorder %s17, 1
      %s165 = scalar_select %p164, %s17, 1
      %p166 = scmp.lt.s32.totalorder %s163, 7
      %s167 = scalar_select %p166, %s163, 7
      %s168 = smul.addr %s165, 8
      %s169 = sadd.s32 %s167, %s168
      %s170 = smul.addr %s169, 4
      %s171 = scalar_lea.vmem %s0, %s170
      %s172 = smul.u32 4, %s18
      %s173 = smul.u32 4, %s18
      %p174 = scmp.lt.s32.totalorder %s17, 1
      %s175 = scalar_select %p174, %s17, 1
      %p176 = scmp.lt.s32.totalorder %s173, 7
      %s177 = scalar_select %p176, %s173, 7
      %s178 = smul.addr %s175, 8
      %s179 = sadd.s32 %s177, %s178
      %s180 = smul.addr %s179, 8
      %s181 = scalar_lea.vmem %s2, %s180
      %s182 = smul.u32 4, %s18
      %v183 = vld [vmem:[%s1] sm:$0x1]
      %v184 = vld [vmem:[%s1 + $0x1] sm:$0x1]
      %v185 = vld [vmem:[%s171] sm:$0xf]
      %v186 = vld [vmem:[%s171 + $0x4] sm:$0xf]
      %v187 = vld [vmem:[%s171 + $0x8] sm:$0xf]
      %v188 = vld [vmem:[%s171 + $0xc] sm:$0xf]
      %v189 = vunpack.c.l.bf16 %v185
      %v190 = vunpack.c.l.bf16 %v186
      %v191 = vunpack.c.l.bf16 %v187
      %v192 = vunpack.c.l.bf16 %v188
      %v193 = vperm.slane %v183, 0
      %v194 = vmul.f32 %v189, %v193
      %v195 = vmul.f32 %v190, %v193
      %v196 = vmul.f32 %v191, %v193
      %v197 = vmul.f32 %v192, %v193
      %v198 = vperm.slane %v184, 0
      %v199 = vadd.f32 %v194, %v198
      %v200 = vadd.f32 %v195, %v198
      %v201 = vadd.f32 %v196, %v198
      %v202 = vadd.f32 %v197, %v198
      %v203 = vmax.f32 %v199, 0.0
      %v204 = vmax.f32 %v200, 0.0
      %v205 = vmax.f32 %v201, 0.0
      %v206 = vmax.f32 %v202, 0.0
      %vm207 = vcmask 64512
      %208 = vst.msk [vmem:[%s181] sm:$0xff] %vm207, %v203
      %209 = vst.msk [vmem:[%s181 + $0x8] sm:$0xff] %vm207, %v204
      %210 = vst.msk [vmem:[%s181 + $0x10] sm:$0xff] %vm207, %v205
      %211 = vst.msk [vmem:[%s181 + $0x18] sm:$0xff] %vm207, %v206
      %s212 = smul.u32 4, %s18
      %p213 = scmp.lt.s32.totalorder %s17, 1
      %s214 = scalar_select %p213, %s17, 1
      %p215 = scmp.lt.s32.totalorder %s212, 7
      %s216 = scalar_select %p215, %s212, 7
      %s217 = smul.addr %s214, 8
      %s218 = sadd.s32 %s216, %s217
      %s219 = smul.addr %s218, 8
      %s220 = scalar_lea.vmem %s2, %s219
      // Predicated region
      $region29: #{_lambda_.5} parent=27 // pred_check
        %p221 = pneg %p94
      $region30: #{_lambda_.5} parent=27 // pred_check_branch
        %223 = sbr.rel (%p221) target = $region32
      $region31: #{_lambda_.5} parent=27 // pred_region
        %s224 = smul.u32 4, %s18
      $region32: #{_lambda_.5} parent=27 // pred_fallthru
        _
    $region28: #{_lambda_.5} parent=5 // pred_fallthru
      _
    %p225 = scmp.le.s32.totalorder 2, %s8
    // Predicated region
    $region33: #{_lambda_.5} parent=5 // pred_check
      %p226 = pneg %p225
    $region34: #{_lambda_.5} parent=5 // pred_check_branch
      %228 = sbr.rel (%p226) target = $region36
    $region35: #{_lambda_.5} parent=5 // pred_region
      %s229 = ssub.s32 %s8, 2
      // Predicated region
      $region37: #{_lambda_.5} parent=35 // pred_check
        %p230 = pneg %p100
      $region38: #{_lambda_.5} parent=35 // pred_check_branch
        %232 = sbr.rel (%p230) target = $region40
      $region39: #{_lambda_.5} parent=35 // pred_region
        %s233 = smul.u32 4, %s20
        %p234 = scmp.lt.s32.totalorder %s19, 1
        %s235 = scalar_select %p234, %s19, 1
        %p236 = scmp.lt.s32.totalorder %s233, 7
        %s237 = scalar_select %p236, %s233, 7
        %s238 = smul.addr %s235, 8
        %s239 = sadd.s32 %s237, %s238
        %s240 = smul.addr %s239, 8
        %s241 = scalar_lea.vmem %s2, %s240
      $region40: #{_lambda_.5} parent=35 // pred_fallthru
        _
    $region36: #{_lambda_.5} parent=5 // pred_fallthru
      _
  $region6: #{_lambda_.5} parent=0 // loop_footer
    %s12 = sadd.s32 1, %s8
  $region7: #{_lambda_.5} parent=0 // loop_footer_branch
    %7 = sbr.rel target = $region3
  $region8: #{_lambda_.5} parent=0 // loop_exit
    _

// kernel: _lambda_.3
$region0: #{_lambda_.3}
  #allocation0 [shape = 'u32[]', space=smem, size = 0x4, offset = 0x4, fixed_abs, tag = 'smem constant byte address 0x4 - core index']
  #allocation1 [shape = 'u32[72,128]{1,0:T(1,128)}', space=vmem, size = 0x9000, scoped, tag = 'internal scratch']
  #allocation2 [shape = 'bf16[6,10,128]{2,1,0:T(8,128)(2,1)}', space=vmem, size = 0x6000, scoped, tag = 'scratch operand']
  %s0 = inlined_call_operand.vmem [shape: bf16[2,16,8,256], index: 0, kind: input, shape index: {}, may-alias: {0,1,2}]
  %s1 = inlined_call_operand.vmem [shape: bf16[2,16,8,256], index: 1, kind: input, shape index: {}, may-alias: {0,1,2}]
  %s2 = inlined_call_operand.vmem [shape: bf16[2,16,8,256], index: 2, kind: input, shape index: {}, may-alias: {0,1,2}]
  %s3 = inlined_call_operand.vmem [shape: bf16[1152,128], index: 3, kind: input, shape index: {}]
  %s4 = inlined_call_operand.vmem [shape: bf16[2,8,8,128], index: 4, kind: output, shape index: {0}]
  %s5 = inlined_call_operand.vmem [shape: f32[2,2,128], index: 5, kind: output, shape index: {1}]
  %6 = xla_tuple %s4, %s5
  %s7 = sld [smem:[#allocation0]]
  $region61: #{_lambda_.3} parent=0
    _
  %s9 = ssub.s32 1, %s7
  %s10 = scalar_select 0, %s9, %s7
  loop: start=0, step=1, limit=6
  $region2: #{_lambda_.3} parent=0 // loop_pre_header
    _
  $region3: #{_lambda_.3} parent=0 // loop_header
    %s12 = sphi 0, %s16
    %p13 = scmp.ge.s32.totalorder %s12, 6
    %s19 = sphi 0, %s31
    %s20 = sphi 0, %s27
    %s21 = sphi 0, %s19
    %s22 = sphi 0, %s20
    %s23 = sphi 0, %s21
    %s24 = sphi 0, %s22
    %s36 = sphi 0, %s38
    %s39 = sphi 0, %s36
    %s40 = sphi 0, %s39
    %s56 = sphi 0, %s40
    %s72 = sphi 0, %s74
    %s75 = sphi 0, %s72
    %s76 = sphi 0, %s75
    %s92 = sphi 0, %s76
    %s108 = sphi 0, %s110
    %s111 = sphi 0, %s108
    %s112 = sphi 0, %s111
    %s128 = sphi 0, %s112
    %s132 = sphi 0, %s132
    %s134 = sphi 0, %s132
    %s135 = sphi 0, %s134
    %s149 = sphi 0, %s135
    %s157 = sphi 0, %s159
    %s160 = sphi 0, %s157
    %s161 = sphi 0, %s160
    %s177 = sphi 0, %s161
    %s183 = sphi 0, %s185
    %s186 = sphi 0, %s183
    %s187 = sphi 0, %s186
    %s203 = sphi 0, %s187
  $region4: #{_lambda_.3} parent=0 // loop_header_branch
    %15 = sbr.rel (%p13) target = $region8
  $region5: #{_lambda_.3} parent=0 // loop_body
    %s17 = ssub.s32 %s12, 1
    %s18 = ssub.s32 %s12, 2
    %s25 = sadd.s32 1, %s20
    %p26 = scmp.ge.s32.totalorder %s25, 2
    %s27 = scalar_select %p26, 0, %s25
    %s28 = sadd.s32 1, %s19
    %s29 = scalar_select %p26, %s28, %s19
    %p30 = scmp.ge.s32.totalorder %s29, 2
    %s31 = scalar_select %p30, 0, %s29
    %s32 = ssub.s32 %s19, %s31
    %s33 = ssub.s32 %s20, %s27
    %s34 = sor.u32 %s32, %s33
    %p35 = scmp.eq.s32.totalorder %s34, 0
    %s37 = sadd.s32 %s36, 1
    %s38 = scalar_select %p35, %s36, %s37
    %p41 = pneg %p35
    %p42 = scmp.eq.s32.totalorder %s12, 3
    %p43 = por %p41, %p42
    %p44 = scmp.ne.s32.totalorder %s36, %s39
    %p45 = scmp.eq.s32.totalorder %s12, 0
    %p46 = por %p44, %p45
    %p47 = scmp.ne.s32.totalorder %s36, %s39
    %p48 = scmp.eq.s32.totalorder %s17, 3
    %p49 = por %p47, %p48
    %p50 = scmp.ne.s32.totalorder %s39, %s40
    %p51 = scmp.eq.s32.totalorder %s17, 0
    %p52 = por %p50, %p51
    %p53 = scmp.ne.s32.totalorder %s39, %s40
    %p54 = scmp.eq.s32.totalorder %s18, 3
    %p55 = por %p53, %p54
    %p57 = scmp.ne.s32.totalorder %s40, %s56
    %p58 = scmp.eq.s32.totalorder %s18, 0
    %p59 = por %p57, %p58
    %s60 = smul.u32 %s20, 4
    %s61 = ssub.s32 %s60, 1
    %p62 = scmp.gt.s32.totalorder %s61, 0
    %s63 = scalar_select %p62, %s61, 0
    %s64 = smul.u32 %s27, 4
    %s65 = ssub.s32 %s64, 1
    %p66 = scmp.gt.s32.totalorder %s65, 0
    %s67 = scalar_select %p66, %s65, 0
    %s68 = ssub.s32 %s19, %s31
    %s69 = ssub.s32 %s63, %s67
    %s70 = sor.u32 %s68, %s69
    %p71 = scmp.eq.s32.totalorder %s70, 0
    %s73 = sadd.s32 %s72, 1
    %s74 = scalar_select %p71, %s72, %s73
    %p77 = pneg %p71
    %p78 = scmp.eq.s32.totalorder %s12, 3
    %p79 = por %p77, %p78
    %p80 = scmp.ne.s32.totalorder %s72, %s75
    %p81 = scmp.eq.s32.totalorder %s12, 0
    %p82 = por %p80, %p81
    %p83 = scmp.ne.s32.totalorder %s72, %s75
    %p84 = scmp.eq.s32.totalorder %s17, 3
    %p85 = por %p83, %p84
    %p86 = scmp.ne.s32.totalorder %s75, %s76
    %p87 = scmp.eq.s32.totalorder %s17, 0
    %p88 = por %p86, %p87
    %p89 = scmp.ne.s32.totalorder %s75, %s76
    %p90 = scmp.eq.s32.totalorder %s18, 3
    %p91 = por %p89, %p90
    %p93 = scmp.ne.s32.totalorder %s76, %s92
    %p94 = scmp.eq.s32.totalorder %s18, 0
    %p95 = por %p93, %p94
    %s96 = sadd.s32 %s20, 1
    %s97 = smul.u32 %s96, 4
    %p98 = scmp.lt.s32.totalorder %s97, 7
    %s99 = scalar_select %p98, %s97, 7
    %s100 = sadd.s32 %s27, 1
    %s101 = smul.u32 %s100, 4
    %p102 = scmp.lt.s32.totalorder %s101, 7
    %s103 = scalar_select %p102, %s101, 7
    %s104 = ssub.s32 %s19, %s31
    %s105 = ssub.s32 %s99, %s103
    %s106 = sor.u32 %s104, %s105
    %p107 = scmp.eq.s32.totalorder %s106, 0
    %s109 = sadd.s32 %s108, 1
    %s110 = scalar_select %p107, %s108, %s109
    %p113 = pneg %p107
    %p114 = scmp.eq.s32.totalorder %s12, 3
    %p115 = por %p113, %p114
    %p116 = scmp.ne.s32.totalorder %s108, %s111
    %p117 = scmp.eq.s32.totalorder %s12, 0
    %p118 = por %p116, %p117
    %p119 = scmp.ne.s32.totalorder %s108, %s111
    %p120 = scmp.eq.s32.totalorder %s17, 3
    %p121 = por %p119, %p120
    %p122 = scmp.ne.s32.totalorder %s111, %s112
    %p123 = scmp.eq.s32.totalorder %s17, 0
    %p124 = por %p122, %p123
    %p125 = scmp.ne.s32.totalorder %s111, %s112
    %p126 = scmp.eq.s32.totalorder %s18, 3
    %p127 = por %p125, %p126
    %p129 = scmp.ne.s32.totalorder %s112, %s128
    %p130 = scmp.eq.s32.totalorder %s18, 0
    %p131 = por %p129, %p130
    %s133 = sadd.s32 %s132, 1
    %p136 = scmp.eq.s32.totalorder %s12, 3
    %p137 = scmp.ne.s32.totalorder %s132, %s134
    %p138 = scmp.eq.s32.totalorder %s12, 0
    %p139 = por %p137, %p138
    %p140 = scmp.ne.s32.totalorder %s132, %s134
    %p141 = scmp.eq.s32.totalorder %s17, 3
    %p142 = por %p140, %p141
    %p143 = scmp.ne.s32.totalorder %s134, %s135
    %p144 = scmp.eq.s32.totalorder %s17, 0
    %p145 = por %p143, %p144
    %p146 = scmp.ne.s32.totalorder %s134, %s135
    %p147 = scmp.eq.s32.totalorder %s18, 3
    %p148 = por %p146, %p147
    %p150 = scmp.ne.s32.totalorder %s135, %s149
    %p151 = scmp.eq.s32.totalorder %s18, 0
    %p152 = por %p150, %p151
    %s153 = ssub.s32 %s19, %s31
    %s154 = ssub.s32 %s20, %s27
    %s155 = sor.u32 %s153, %s154
    %p156 = scmp.eq.s32.totalorder %s155, 0
    %s158 = sadd.s32 %s157, 1
    %s159 = scalar_select %p156, %s157, %s158
    %p162 = pneg %p156
    %p163 = scmp.eq.s32.totalorder %s12, 3
    %p164 = por %p162, %p163
    %p165 = scmp.ne.s32.totalorder %s157, %s160
    %p166 = scmp.eq.s32.totalorder %s12, 0
    %p167 = por %p165, %p166
    %p168 = scmp.ne.s32.totalorder %s157, %s160
    %p169 = scmp.eq.s32.totalorder %s17, 3
    %p170 = por %p168, %p169
    %p171 = scmp.ne.s32.totalorder %s160, %s161
    %p172 = scmp.eq.s32.totalorder %s17, 0
    %p173 = por %p171, %p172
    %p174 = scmp.ne.s32.totalorder %s160, %s161
    %p175 = scmp.eq.s32.totalorder %s18, 3
    %p176 = por %p174, %p175
    %p178 = scmp.ne.s32.totalorder %s161, %s177
    %p179 = scmp.eq.s32.totalorder %s18, 0
    %p180 = por %p178, %p179
    %s181 = ssub.s32 %s19, %s31
    %p182 = scmp.eq.s32.totalorder %s181, 0
    %s184 = sadd.s32 %s183, 1
    %s185 = scalar_select %p182, %s183, %s184
    %p188 = pneg %p182
    %p189 = scmp.eq.s32.totalorder %s12, 3
    %p190 = por %p188, %p189
    %p191 = scmp.ne.s32.totalorder %s183, %s186
    %p192 = scmp.eq.s32.totalorder %s12, 0
    %p193 = por %p191, %p192
    %p194 = scmp.ne.s32.totalorder %s183, %s186
    %p195 = scmp.eq.s32.totalorder %s17, 3
    %p196 = por %p194, %p195
    %p197 = scmp.ne.s32.totalorder %s186, %s187
    %p198 = scmp.eq.s32.totalorder %s17, 0
    %p199 = por %p197, %p198
    %p200 = scmp.ne.s32.totalorder %s186, %s187
    %p201 = scmp.eq.s32.totalorder %s18, 3
    %p202 = por %p200, %p201
    %p204 = scmp.ne.s32.totalorder %s187, %s203
    %p205 = scmp.eq.s32.totalorder %s18, 0
    %p206 = por %p204, %p205
    %p207 = scmp.le.s32.totalorder 1, %s12
    %p208 = scmp.lt.s32.totalorder %s12, 5
    %p209 = pnand %p207, %p208
    %p210 = pneg %p209
    // Predicated region
    $region9: #{_lambda_.3} parent=5 // pred_check
      _
    $region10: #{_lambda_.3} parent=5 // pred_check_branch
      %212 = sbr.rel (%p209) target = $region12
    $region11: #{_lambda_.3} parent=5 // pred_region
      %s213 = ssub.s32 %s12, 1
      // Predicated region
      $region13: #{_lambda_.3} parent=11 // pred_check
        %p214 = pneg %p145
      $region14: #{_lambda_.3} parent=11 // pred_check_branch
        %216 = sbr.rel (%p214) target = $region16
      $region15: #{_lambda_.3} parent=11 // pred_region
        _
      $region16: #{_lambda_.3} parent=11 // pred_fallthru
        _
    $region12: #{_lambda_.3} parent=5 // pred_fallthru
      _
    %p217 = scmp.lt.s32.totalorder %s12, 4
    // Predicated region
    $region17: #{_lambda_.3} parent=5 // pred_check
      %p218 = pneg %p217
    $region18: #{_lambda_.3} parent=5 // pred_check_branch
      %220 = sbr.rel (%p218) target = $region20
    $region19: #{_lambda_.3} parent=5 // pred_region
      // Predicated region
      $region21: #{_lambda_.3} parent=19 // pred_check
        %p221 = pneg %p46
      $region22: #{_lambda_.3} parent=19 // pred_check_branch
        %223 = sbr.rel (%p221) target = $region24
      $region23: #{_lambda_.3} parent=19 // pred_region
        %s224 = smul.u32 8, %s20
        %p225 = scmp.lt.s32.totalorder %s19, 1
        %s226 = scalar_select %p225, %s19, 1
        %p227 = scmp.lt.s32.totalorder %s224, 15
        %s228 = scalar_select %p227, %s224, 15
        %s229 = smul.addr %s228, 2
        %s230 = smul.addr %s226, 32
        %s231 = sadd.s32 %s229, %s230
        %s232 = smul.addr %s231, 4
        %s233 = scalar_lea.vmem %s0, %s232
        %s234 = smul.u32 8, %s20
      $region24: #{_lambda_.3} parent=19 // pred_fallthru
        _
      // Predicated region
      $region25: #{_lambda_.3} parent=19 // pred_check
        %p235 = pneg %p82
      $region26: #{_lambda_.3} parent=19 // pred_check_branch
        %237 = sbr.rel (%p235) target = $region28
      $region27: #{_lambda_.3} parent=19 // pred_region
        %s238 = smul.u32 %s20, 4
        %s239 = ssub.s32 %s238, 1
        %p240 = scmp.gt.s32.totalorder %s239, 0
        %s241 = scalar_select %p240, %s239, 0
        %s242 = smul.u32 2, %s241
        %p243 = scmp.lt.s32.totalorder %s19, 1
        %s244 = scalar_select %p243, %s19, 1
        %p245 = scmp.lt.s32.totalorder %s242, 15
        %s246 = scalar_select %p245, %s242, 15
        %s247 = smul.addr %s246, 2
        %s248 = smul.addr %s244, 32
        %s249 = sadd.s32 %s247, %s248
        %s250 = smul.addr %s249, 4
        %s251 = scalar_lea.vmem %s1, %s250
        %s252 = smul.u32 %s20, 4
        %s253 = ssub.s32 %s252, 1
        %p254 = scmp.gt.s32.totalorder %s253, 0
        %s255 = scalar_select %p254, %s253, 0
        %s256 = smul.u32 2, %s255
      $region28: #{_lambda_.3} parent=19 // pred_fallthru
        _
      // Predicated region
      $region29: #{_lambda_.3} parent=19 // pred_check
        %p257 = pneg %p118
      $region30: #{_lambda_.3} parent=19 // pred_check_branch
        %259 = sbr.rel (%p257) target = $region32
      $region31: #{_lambda_.3} parent=19 // pred_region
        %s260 = sadd.s32 %s20, 1
        %s261 = smul.u32 %s260, 4
        %p262 = scmp.lt.s32.totalorder %s261, 7
        %s263 = scalar_select %p262, %s261, 7
        %s264 = smul.u32 2, %s263
        %p265 = scmp.lt.s32.totalorder %s19, 1
        %s266 = scalar_select %p265, %s19, 1
        %p267 = scmp.lt.s32.totalorder %s264, 15
        %s268 = scalar_select %p267, %s264, 15
        %s269 = smul.addr %s268, 2
        %s270 = smul.addr %s266, 32
        %s271 = sadd.s32 %s269, %s270
        %s272 = smul.addr %s271, 4
        %s273 = scalar_lea.vmem %s2, %s272
        %s274 = sadd.s32 %s20, 1
        %s275 = smul.u32 %s274, 4
        %p276 = scmp.lt.s32.totalorder %s275, 7
        %s277 = scalar_select %p276, %s275, 7
        %s278 = smul.u32 2, %s277
      $region32: #{_lambda_.3} parent=19 // pred_fallthru
        _
    $region20: #{_lambda_.3} parent=5 // pred_fallthru
      _
    %p279 = scmp.le.s32.totalorder 1, %s12
    %p280 = scmp.lt.s32.totalorder %s12, 5
    %p281 = pnand %p279, %p280
    %p282 = pneg %p281
    // Predicated region
    $region33: #{_lambda_.3} parent=5 // pred_check
      _
    $region34: #{_lambda_.3} parent=5 // pred_check_branch
      %284 = sbr.rel (%p281) target = $region36
    $region35: #{_lambda_.3} parent=5 // pred_region
      %s285 = ssub.s32 %s12, 1
      %s286 = smul.u32 8, %s22
      %p287 = scmp.lt.s32.totalorder %s21, 1
      %s288 = scalar_select %p287, %s21, 1
      %p289 = scmp.lt.s32.totalorder %s286, 15
      %s290 = scalar_select %p289, %s286, 15
      %s291 = smul.addr %s290, 2
      %s292 = smul.addr %s288, 32
      %s293 = sadd.s32 %s291, %s292
      %s294 = smul.addr %s293, 4
      %s295 = scalar_lea.vmem %s0, %s294
      %p296 = pneg %p52
      %p297 = pneg %p49
      %s298 = smul.u32 %s22, 4
      %s299 = ssub.s32 %s298, 1
      %p300 = scmp.gt.s32.totalorder %s299, 0
      %s301 = scalar_select %p300, %s299, 0
      %s302 = smul.u32 2, %s301
      %p303 = scmp.lt.s32.totalorder %s21, 1
      %s304 = scalar_select %p303, %s21, 1
      %p305 = scmp.lt.s32.totalorder %s302, 15
      %s306 = scalar_select %p305, %s302, 15
      %s307 = smul.addr %s306, 2
      %s308 = smul.addr %s304, 32
      %s309 = sadd.s32 %s307, %s308
      %s310 = smul.addr %s309, 4
      %s311 = scalar_lea.vmem %s1, %s310
      %p312 = pneg %p88
      %p313 = pneg %p85
      %s314 = sadd.s32 %s22, 1
      %s315 = smul.u32 %s314, 4
      %p316 = scmp.lt.s32.totalorder %s315, 7
      %s317 = scalar_select %p316, %s315, 7
      %s318 = smul.u32 2, %s317
      %p319 = scmp.lt.s32.totalorder %s21, 1
      %s320 = scalar_select %p319, %s21, 1
      %p321 = scmp.lt.s32.totalorder %s318, 15
      %s322 = scalar_select %p321, %s318, 15
      %s323 = smul.addr %s322, 2
      %s324 = smul.addr %s320, 32
      %s325 = sadd.s32 %s323, %s324
      %s326 = smul.addr %s325, 4
      %s327 = scalar_lea.vmem %s2, %s326
      %p328 = pneg %p124
      %p329 = pneg %p121
      %p330 = pneg %p145
      %p331 = pneg %p142
      %p332 = pneg %p173
      %p333 = pneg %p170
      %s334 = smul.u32 4, %s22
      %p335 = scmp.lt.s32.totalorder %s21, 1
      %s336 = scalar_select %p335, %s21, 1
      %p337 = scmp.lt.s32.totalorder %s334, 7
      %s338 = scalar_select %p337, %s334, 7
      %s339 = smul.addr %s336, 8
      %s340 = sadd.s32 %s338, %s339
      %s341 = smul.addr %s340, 4
      %s342 = scalar_lea.vmem %s4, %s341
      %p343 = pneg %p199
      %p344 = pneg %p196
      %p345 = scmp.lt.s32.totalorder %s21, 1
      %s346 = scalar_select %p345, %s21, 1
      %s347 = smul.addr %s346, 2
      %s348 = scalar_lea.vmem %s5, %s347
      %s349 = smul.u32 8, %s22
      %p350 = scmp.lt.s32.totalorder %s21, 1
      %s351 = scalar_select %p350, %s21, 1
      %p352 = scmp.lt.s32.totalorder %s349, 15
      %s353 = scalar_select %p352, %s349, 15
      %s354 = smul.addr %s353, 2
      %s355 = smul.addr %s351, 32
      %s356 = sadd.s32 %s354, %s355
      %s357 = smul.addr %s356, 4
      %s358 = scalar_lea.vmem %s0, %s357
      %s359 = smul.u32 8, %s22
      %s360 = smul.u32 %s22, 4
      %s361 = ssub.s32 %s360, 1
      %p362 = scmp.gt.s32.totalorder %s361, 0
      %s363 = scalar_select %p362, %s361, 0
      %s364 = smul.u32 2, %s363
      %p365 = scmp.lt.s32.totalorder %s21, 1
      %s366 = scalar_select %p365, %s21, 1
      %p367 = scmp.lt.s32.totalorder %s364, 15
      %s368 = scalar_select %p367, %s364, 15
      %s369 = smul.addr %s368, 2
      %s370 = smul.addr %s366, 32
      %s371 = sadd.s32 %s369, %s370
      %s372 = smul.addr %s371, 4
      %s373 = scalar_lea.vmem %s1, %s372
      %s374 = smul.u32 %s22, 4
      %s375 = ssub.s32 %s374, 1
      %p376 = scmp.gt.s32.totalorder %s375, 0
      %s377 = scalar_select %p376, %s375, 0
      %s378 = smul.u32 2, %s377
      %s379 = sadd.s32 %s22, 1
      %s380 = smul.u32 %s379, 4
      %p381 = scmp.lt.s32.totalorder %s380, 7
      %s382 = scalar_select %p381, %s380, 7
      %s383 = smul.u32 2, %s382
      %p384 = scmp.lt.s32.totalorder %s21, 1
      %s385 = scalar_select %p384, %s21, 1
      %p386 = scmp.lt.s32.totalorder %s383, 15
      %s387 = scalar_select %p386, %s383, 15
      %s388 = smul.addr %s387, 2
      %s389 = smul.addr %s385, 32
      %s390 = sadd.s32 %s388, %s389
      %s391 = smul.addr %s390, 4
      %s392 = scalar_lea.vmem %s2, %s391
      %s393 = sadd.s32 %s22, 1
      %s394 = smul.u32 %s393, 4
      %p395 = scmp.lt.s32.totalorder %s394, 7
      %s396 = scalar_select %p395, %s394, 7
      %s397 = smul.u32 2, %s396
      %s398 = smul.u32 4, %s22
      %p399 = scmp.lt.s32.totalorder %s21, 1
      %s400 = scalar_select %p399, %s21, 1
      %p401 = scmp.lt.s32.totalorder %s398, 7
      %s402 = scalar_select %p401, %s398, 7
      %s403 = smul.addr %s400, 8
      %s404 = sadd.s32 %s402, %s403
      %s405 = smul.addr %s404, 4
      %s406 = scalar_lea.vmem %s4, %s405
      %s407 = smul.u32 4, %s22
      %p408 = scmp.lt.s32.totalorder %s21, 1
      %s409 = scalar_select %p408, %s21, 1
      %s410 = smul.addr %s409, 2
      %s411 = scalar_lea.vmem %s5, %s410
      %p413 = scmp.eq.s32.totalorder %s22, 0
      // Predicated region
      $region37: #{_lambda_.3} parent=35 // pred_check
        %p414 = pneg %p413
      $region38: #{_lambda_.3} parent=35 // pred_check_branch
        %416 = sbr.rel (%p414) target = $region40
      $region39: #{_lambda_.3} parent=35 // pred_region
        %417 = vst [vmem:[#allocation2] sm:$0xf] 0
        %418 = vst [vmem:[#allocation2 + $0x4] sm:$0x1] 0
        %419 = vst [vmem:[#allocation2 + $0x8] sm:$0xf] 0
        %420 = vst [vmem:[#allocation2 + $0xc] sm:$0x1] 0
        %421 = vst [vmem:[#allocation2 + $0x10] sm:$0xf] 0
        %422 = vst [vmem:[#allocation2 + $0x14] sm:$0x1] 0
        %423 = vst [vmem:[#allocation2 + $0x18] sm:$0xf] 0
        %424 = vst [vmem:[#allocation2 + $0x1c] sm:$0x1] 0
        %425 = vst [vmem:[#allocation2 + $0x20] sm:$0xf] 0
        %426 = vst [vmem:[#allocation2 + $0x24] sm:$0x1] 0
        %427 = vst [vmem:[#allocation2 + $0x28] sm:$0xf] 0
        %428 = vst [vmem:[#allocation2 + $0x2c] sm:$0x1] 0
        %429 = vst [vmem:[%s411] sm:$0x3] 0.0
      $region40: #{_lambda_.3} parent=35 // pred_fallthru
        _
      %v430 = vld [vmem:[%s358] sm:$0xff]
      %v431 = vld [vmem:[%s358 + $0x8] sm:$0xff]
      %v432 = vld [vmem:[%s358 + $0x10] sm:$0xff]
      %v433 = vld [vmem:[%s358 + $0x18] sm:$0xff]
      %v434 = vld [vmem:[%s358 + $0x20] sm:$0xff]
      %v435 = vld [vmem:[%s358 + $0x28] sm:$0xff]
      %v436 = vld [vmem:[%s358 + $0x30] sm:$0xff]
      %v437 = vld [vmem:[%s358 + $0x38] sm:$0xff]
      %v438 = vunpack.c.l.bf16 %v430
      %v439 = vunpack.c.h.bf16 %v430
      %v440 = vunpack.c.l.bf16 %v431
      %v441 = vunpack.c.h.bf16 %v431
      %v442 = vunpack.c.l.bf16 %v432
      %v443 = vunpack.c.h.bf16 %v432
      %v444 = vunpack.c.l.bf16 %v433
      %v445 = vunpack.c.h.bf16 %v433
      %v446 = vunpack.c.l.bf16 %v434
      %v447 = vunpack.c.h.bf16 %v434
      %v448 = vunpack.c.l.bf16 %v435
      %v449 = vunpack.c.h.bf16 %v435
      %v450 = vunpack.c.l.bf16 %v436
      %v451 = vunpack.c.h.bf16 %v436
      %v452 = vunpack.c.l.bf16 %v437
      %v453 = vunpack.c.h.bf16 %v437
      %v454 = vmax.f32 %v438, %v439
      %v455 = vmax.f32 %v440, %v441
      %v456 = vmax.f32 %v442, %v443
      %v457 = vmax.f32 %v444, %v445
      %v458 = vmax.f32 %v446, %v447
      %v459 = vmax.f32 %v448, %v449
      %v460 = vmax.f32 %v450, %v451
      %v461 = vmax.f32 %v452, %v453
      %v462 = vmax.f32 %v454, %v455
      %v463 = vmax.f32 %v456, %v457
      %v464 = vmax.f32 %v458, %v459
      %v465 = vmax.f32 %v460, %v461
      %v466 = vpack.c.bf16 %v462, %v462
      %v467 = vpack.c.bf16 %v463, %v463
      %v468 = vpack.c.bf16 %v464, %v464
      %v469 = vpack.c.bf16 %v465, %v465
      %v471 = vshrl.u32 %v466, 16
      %v473 = vrot.slane %v471, 7
      %v474 = vshll.u32 %v466, 16
      %v476 = vor.u32 %v473, %v474
      %v477 = vrot.slane %v473, 4
      %v479 = vshrl.u32 %v467, 16
      %v481 = vrot.slane %v479, 7
      %v482 = vshll.u32 %v467, 16
      %v484 = vor.u32 %v481, %v482
      %v485 = vrot.slane %v481, 4
      %v487 = vshrl.u32 %v468, 16
      %v489 = vrot.slane %v487, 7
      %v490 = vshll.u32 %v468, 16
      %v492 = vor.u32 %v489, %v490
      %v493 = vrot.slane %v489, 4
      %v495 = vshrl.u32 %v469, 16
      %v497 = vrot.slane %v495, 7
      %v498 = vshll.u32 %v469, 16
      %v500 = vor.u32 %v497, %v498
      %v501 = vrot.slane %v497, 4
      %s510 = scalar_lea.vmem [#allocation2], 8
      %vm511 = vcmask 1043456
      %vm512 = vsmask.f32 7938
      %vm513 = vmand %vm511, %vm512
      %v514 = vld [vmem:[%s510] sm:$0xf]
      %v515 = vsel %vm513, %v476, %v514
      %516 = vst [vmem:[%s510] sm:$0xf] %v515
      %vm517 = vcmask 1040384
      %vm518 = vsmask.f32 256
      %vm519 = vmand %vm517, %vm518
      %v520 = vld [vmem:[%s510 + $0x4] sm:$0x1]
      %v521 = vsel %vm519, %v477, %v520
      %522 = vst [vmem:[%s510 + $0x4] sm:$0x1] %v521
      %v523 = vld [vmem:[%s510 + $0x8] sm:$0xf]
      %v524 = vsel %vm513, %v484, %v523
      %525 = vst [vmem:[%s510 + $0x8] sm:$0xf] %v524
      %v526 = vld [vmem:[%s510 + $0xc] sm:$0x1]
      %v527 = vsel %vm519, %v485, %v526
      %528 = vst [vmem:[%s510 + $0xc] sm:$0x1] %v527
      %v529 = vld [vmem:[%s510 + $0x10] sm:$0xf]
      %v530 = vsel %vm513, %v492, %v529
      %531 = vst [vmem:[%s510 + $0x10] sm:$0xf] %v530
      %v532 = vld [vmem:[%s510 + $0x14] sm:$0x1]
      %v533 = vsel %vm519, %v493, %v532
      %534 = vst [vmem:[%s510 + $0x14] sm:$0x1] %v533
      %v535 = vld [vmem:[%s510 + $0x18] sm:$0xf]
      %v536 = vsel %vm513, %v500, %v535
      %537 = vst [vmem:[%s510 + $0x18] sm:$0xf] %v536
      %v538 = vld [vmem:[%s510 + $0x1c] sm:$0x1]
      %v539 = vsel %vm519, %v501, %v538
      %540 = vst [vmem:[%s510 + $0x1c] sm:$0x1] %v539
      %v541 = vld [vmem:[%s373] sm:$0xff]
      %v542 = vld [vmem:[%s373 + $0x8] sm:$0xff]
      %v543 = vunpack.c.l.bf16 %v541
      %v544 = vunpack.c.h.bf16 %v541
      %v545 = vunpack.c.l.bf16 %v542
      %v546 = vunpack.c.h.bf16 %v542
      %v547 = vmax.f32 %v543, %v544
      %v548 = vmax.f32 %v545, %v546
      %v549 = vmax.f32 %v547, %v548
      %v550 = vld [vmem:[%s392] sm:$0xff]
      %v551 = vld [vmem:[%s392 + $0x8] sm:$0xff]
      %v552 = vunpack.c.l.bf16 %v550
      %v553 = vunpack.c.h.bf16 %v550
      %v554 = vunpack.c.l.bf16 %v551
      %v555 = vunpack.c.h.bf16 %v551
      %v556 = vmax.f32 %v552, %v553
      %v557 = vmax.f32 %v554, %v555
      %v558 = vmax.f32 %v556, %v557
      %p559 = scmp.gt.s32.totalorder %s22, 0
      %s560 = scalar_select %p559, 1, 0
      %v561 = vstv %s560
      %vm562 = vcmp.eq.s32.totalorder %v561, 1
      %v563 = vsel %vm562, %v549, 0.0
      %v564 = vpack.c.bf16 %v563, %v563
      %v566 = vshrl.u32 %v564, 16
      %v568 = vrot.slane %v566, 7
      %v569 = vshll.u32 %v564, 16
      %v571 = vor.u32 %v568, %v569
      %v572 = vrot.slane %v568, 4
      %v575 = vld [vmem:[#allocation2] sm:$0xf]
      %v576 = vsel %vm513, %v571, %v575
      %577 = vst [vmem:[#allocation2] sm:$0xf] %v576
      %v578 = vld [vmem:[#allocation2 + $0x4] sm:$0x1]
      %v579 = vsel %vm519, %v572, %v578
      %580 = vst [vmem:[#allocation2 + $0x4] sm:$0x1] %v579
      %p581 = scmp.lt.s32.totalorder %s22, 1
      %s582 = scalar_select %p581, 1, 0
      %v583 = vstv %s582
      %vm584 = vcmp.eq.s32.totalorder %v583, 1
      %v585 = vsel %vm584, %v558, 0.0
      %v586 = vpack.c.bf16 %v585, %v585
      %v588 = vshrl.u32 %v586, 16
      %v590 = vrot.slane %v588, 7
      %v591 = vshll.u32 %v586, 16
      %v593 = vor.u32 %v590, %v591
      %v594 = vrot.slane %v590, 4
      %s597 = scalar_lea.vmem [#allocation2], 40
      %v598 = vld [vmem:[%s597] sm:$0xf]
      %v599 = vsel %vm513, %v593, %v598
      %600 = vst [vmem:[%s597] sm:$0xf] %v599
      %v601 = vld [vmem:[%s597 + $0x4] sm:$0x1]
      %v602 = vsel %vm519, %v594, %v601
      %603 = vst [vmem:[%s597 + $0x4] sm:$0x1] %v602
      %v604 = vld [vmem:[#allocation2] sm:$0xf]
      %v605 = vld [vmem:[#allocation2 + $0x8] sm:$0xf]
      %v606 = vld [vmem:[#allocation2 + $0x10] sm:$0xf]
      %v607 = vld [vmem:[#allocation2 + $0x18] sm:$0xf]
      %v608 = vld [vmem:[%s3] sm:$0xf]
      %v609 = vld [vmem:[%s3 + $0x4] sm:$0xf]
      %v610 = vld [vmem:[%s3 + $0x8] sm:$0xf]
      %v611 = vld [vmem:[%s3 + $0xc] sm:$0xf]
      %v612 = vld [vmem:[%s3 + $0x10] sm:$0xf]
      %v613 = vld [vmem:[%s3 + $0x14] sm:$0xf]
      %v614 = vld [vmem:[%s3 + $0x18] sm:$0xf]
      %v615 = vld [vmem:[%s3 + $0x1c] sm:$0xf]
      %v616 = vld [vmem:[%s3 + $0x20] sm:$0xf]
      %v617 = vld [vmem:[%s3 + $0x24] sm:$0xf]
      %v618 = vld [vmem:[%s3 + $0x28] sm:$0xf]
      %v619 = vld [vmem:[%s3 + $0x2c] sm:$0xf]
      %v620 = vld [vmem:[%s3 + $0x30] sm:$0xf]
      %v621 = vld [vmem:[%s3 + $0x34] sm:$0xf]
      %v622 = vld [vmem:[%s3 + $0x38] sm:$0xf]
      %v623 = vld [vmem:[%s3 + $0x3c] sm:$0xf]
      %v624 = vld [vmem:[#allocation2 + $0x4] sm:$0x1]
      %v625 = vld [vmem:[#allocation2 + $0xc] sm:$0x1]
      %v626 = vld [vmem:[#allocation2 + $0x14] sm:$0x1]
      %v627 = vld [vmem:[#allocation2 + $0x1c] sm:$0x1]
      %vm628 = vsmask.f32 3328
      %vm629 = vsmask.f32 7440
      %vm630 = vmor %vm628, %vm629
      %v632 = vshrl.u32 %v604, 16
      %v634 = vrot.slane %v632, 4
      %v635 = vshll.u32 %v604, 16
      %v637 = vrot.slane %v635, 5
      %v638 = vor.u32 %v634, %v637
      %v639 = vrot.slane %v638, 4
      %v641 = vshll.u32 %v624, 16
      %v643 = vrot.slane %v641, 5
      %v644 = vsel %vm630, %v639, %v643
      %v646 = vshrl.u32 %v605, 16
      %v648 = vrot.slane %v646, 4
      %v649 = vshll.u32 %v605, 16
      %v651 = vrot.slane %v649, 5
      %v652 = vor.u32 %v648, %v651
      %v653 = vrot.slane %v652, 4
      %v655 = vshll.u32 %v625, 16
      %v657 = vrot.slane %v655, 5
      %v658 = vsel %vm630, %v653, %v657
      %v660 = vshrl.u32 %v606, 16
      %v662 = vrot.slane %v660, 4
      %v663 = vshll.u32 %v606, 16
      %v665 = vrot.slane %v663, 5
      %v666 = vor.u32 %v662, %v665
      %v667 = vrot.slane %v666, 4
      %v669 = vshll.u32 %v626, 16
      %v671 = vrot.slane %v669, 5
      %v672 = vsel %vm630, %v667, %v671
      %v674 = vshrl.u32 %v607, 16
      %v676 = vrot.slane %v674, 4
      %v677 = vshll.u32 %v607, 16
      %v679 = vrot.slane %v677, 5
      %v680 = vor.u32 %v676, %v679
      %v681 = vrot.slane %v680, 4
      %v683 = vshll.u32 %v627, 16
      %v685 = vrot.slane %v683, 5
      %v686 = vsel %vm630, %v681, %v685
      %v687 = vld [vmem:[%s3 + $0x40] sm:$0xf]
      %v688 = vld [vmem:[%s3 + $0x44] sm:$0xf]
      %v689 = vld [vmem:[%s3 + $0x48] sm:$0xf]
      %v690 = vld [vmem:[%s3 + $0x4c] sm:$0xf]
      %v691 = vld [vmem:[%s3 + $0x50] sm:$0xf]
      %v692 = vld [vmem:[%s3 + $0x54] sm:$0xf]
      %v693 = vld [vmem:[%s3 + $0x58] sm:$0xf]
      %v694 = vld [vmem:[%s3 + $0x5c] sm:$0xf]
      %v695 = vld [vmem:[%s3 + $0x60] sm:$0xf]
      %v696 = vld [vmem:[%s3 + $0x64] sm:$0xf]
      %v697 = vld [vmem:[%s3 + $0x68] sm:$0xf]
      %v698 = vld [vmem:[%s3 + $0x6c] sm:$0xf]
      %v699 = vld [vmem:[%s3 + $0x70] sm:$0xf]
      %v700 = vld [vmem:[%s3 + $0x74] sm:$0xf]
      %v701 = vld [vmem:[%s3 + $0x78] sm:$0xf]
      %v702 = vld [vmem:[%s3 + $0x7c] sm:$0xf]
      %v703 = vunpack.c.l.b16 %v644
      %v704 = vunpack.c.l.b16 %v658
      %v705 = vunpack.c.l.b16 %v672
      %v706 = vunpack.c.l.b16 %v686
      %v707 = vpack.c.b16 %v704, %v703
      %v708 = vpack.c.b16 %v706, %v705
      %v727 = vunpack.c.l.b16 %v687
      %v728 = vunpack.c.l.b16 %v688
      %v729 = vunpack.c.l.b16 %v689
      %v730 = vunpack.c.l.b16 %v690
      %v731 = vunpack.c.l.b16 %v691
      %v732 = vunpack.c.l.b16 %v692
      %v733 = vunpack.c.l.b16 %v693
      %v734 = vunpack.c.l.b16 %v694
      %v735 = vunpack.c.l.b16 %v695
      %v736 = vunpack.c.l.b16 %v696
      %v737 = vunpack.c.l.b16 %v697
      %v738 = vunpack.c.l.b16 %v698
      %v739 = vunpack.c.l.b16 %v699
      %v740 = vunpack.c.l.b16 %v700
      %v741 = vunpack.c.l.b16 %v701
      %v742 = vunpack.c.l.b16 %v702
      %v743 = vpack.c.b16 %v728, %v727
      %v744 = vpack.c.b16 %v730, %v729
      %v745 = vpack.c.b16 %v732, %v731
      %v746 = vpack.c.b16 %v734, %v733
      %v747 = vpack.c.b16 %v736, %v735
      %v748 = vpack.c.b16 %v738, %v737
      %v749 = vpack.c.b16 %v740, %v739
      %v750 = vpack.c.b16 %v742, %v741
      %759 = vmatpush.bf16.msra.mxu0 %v750
      %760 = vmatpush.bf16.msra.mxu0 %v749
      %761 = vmatpush.bf16.msra.mxu0 %v748
      %762 = vmatpush.bf16.msra.mxu0 %v747
      %763 = vmatpush.bf16.msra.mxu0 %v746
      %764 = vmatpush.bf16.msra.mxu0 %v745
      %765 = vmatpush.bf16.msra.mxu0 %v744
      %766 = vmatpush.bf16.msra.mxu0 %v743
      %767 = vmatmul.bf16.gmra.mxu0 %v707
      %v768 = vpop.f32.mrf.mxu0
      %v769 = vadd.f32 0.0, %v768
      %v770 = vpop.f32.mrf.mxu0
      %v771 = vadd.f32 0.0, %v770
      %772 = vmatmul.bf16.gmra.mxu0 %v708
      %v773 = vpop.f32.mrf.mxu0
      %v774 = vadd.f32 0.0, %v773
      %v775 = vpop.f32.mrf.mxu0
      %v776 = vadd.f32 0.0, %v775
      %777 = vdwg.mxu0
      %v782 = vunpack.c.l.b16 %v604
      %v783 = vunpack.c.l.b16 %v605
      %v784 = vunpack.c.l.b16 %v606
      %v785 = vunpack.c.l.b16 %v607
      %v786 = vpack.c.b16 %v783, %v782
      %v787 = vpack.c.b16 %v785, %v784
      %v806 = vunpack.c.l.b16 %v608
      %v807 = vunpack.c.l.b16 %v609
      %v808 = vunpack.c.l.b16 %v610
      %v809 = vunpack.c.l.b16 %v611
      %v810 = vunpack.c.l.b16 %v612
      %v811 = vunpack.c.l.b16 %v613
      %v812 = vunpack.c.l.b16 %v614
      %v813 = vunpack.c.l.b16 %v615
      %v814 = vunpack.c.l.b16 %v616
      %v815 = vunpack.c.l.b16 %v617
      %v816 = vunpack.c.l.b16 %v618
      %v817 = vunpack.c.l.b16 %v619
      %v818 = vunpack.c.l.b16 %v620
      %v819 = vunpack.c.l.b16 %v621
      %v820 = vunpack.c.l.b16 %v622
      %v821 = vunpack.c.l.b16 %v623
      %v822 = vpack.c.b16 %v807, %v806
      %v823 = vpack.c.b16 %v809, %v808
      %v824 = vpack.c.b16 %v811, %v810
      %v825 = vpack.c.b16 %v813, %v812
      %v826 = vpack.c.b16 %v815, %v814
      %v827 = vpack.c.b16 %v817, %v816
      %v828 = vpack.c.b16 %v819, %v818
      %v829 = vpack.c.b16 %v821, %v820
      %838 = vmatpush.bf16.msra.mxu0 %v829
      %839 = vmatpush.bf16.msra.mxu0 %v828
      %840 = vmatpush.bf16.msra.mxu0 %v827
      %841 = vmatpush.bf16.msra.mxu0 %v826
      %842 = vmatpush.bf16.msra.mxu0 %v825
      %843 = vmatpush.bf16.msra.mxu0 %v824
      %844 = vmatpush.bf16.msra.mxu0 %v823
      %845 = vmatpush.bf16.msra.mxu0 %v822
      %846 = vmatmul.bf16.gmra.mxu0 %v786
      %v847 = vpop.f32.mrf.mxu0
      %v848 = vadd.f32 %v769, %v847
      %v849 = vpop.f32.mrf.mxu0
      %v850 = vadd.f32 %v771, %v849
      %851 = vmatmul.bf16.gmra.mxu0 %v787
      %v852 = vpop.f32.mrf.mxu0
      %v853 = vadd.f32 %v774, %v852
      %v854 = vpop.f32.mrf.mxu0
      %v855 = vadd.f32 %v776, %v854
      %856 = vdwg.mxu0
      %v857 = vld [vmem:[#allocation2] sm:$0xe]
      %v858 = vld [vmem:[#allocation2 + $0x8] sm:$0xe]
      %v859 = vld [vmem:[#allocation2 + $0x10] sm:$0xe]
      %v860 = vld [vmem:[#allocation2 + $0x18] sm:$0xe]
      %vm869 = vcmask 1042432
      %vm870 = vcmask 1046532
      %vm871 = vmor %vm869, %vm870
      %v872 = vrot.slane %v857, 5
      %v873 = vrot.slane %v872, 4
      %v874 = vrot.slane %v624, 5
      %v875 = vsel %vm871, %v873, %v874
      %v876 = vrot.slane %v858, 5
      %v877 = vrot.slane %v876, 4
      %v878 = vrot.slane %v625, 5
      %v879 = vsel %vm871, %v877, %v878
      %v880 = vrot.slane %v859, 5
      %v881 = vrot.slane %v880, 4
      %v882 = vrot.slane %v626, 5
      %v883 = vsel %vm871, %v881, %v882
      %v884 = vrot.slane %v860, 5
      %v885 = vrot.slane %v884, 4
      %v886 = vrot.slane %v627, 5
      %v887 = vsel %vm871, %v885, %v886
      %v888 = vld [vmem:[%s3 + $0x80] sm:$0xf]
      %v889 = vld [vmem:[%s3 + $0x84] sm:$0xf]
      %v890 = vld [vmem:[%s3 + $0x88] sm:$0xf]
      %v891 = vld [vmem:[%s3 + $0x8c] sm:$0xf]
      %v892 = vld [vmem:[%s3 + $0x90] sm:$0xf]
      %v893 = vld [vmem:[%s3 + $0x94] sm:$0xf]
      %v894 = vld [vmem:[%s3 + $0x98] sm:$0xf]
      %v895 = vld [vmem:[%s3 + $0x9c] sm:$0xf]
      %v896 = vld [vmem:[%s3 + $0xa0] sm:$0xf]
      %v897 = vld [vmem:[%s3 + $0xa4] sm:$0xf]
      %v898 = vld [vmem:[%s3 + $0xa8] sm:$0xf]
      %v899 = vld [vmem:[%s3 + $0xac] sm:$0xf]
      %v900 = vld [vmem:[%s3 + $0xb0] sm:$0xf]
      %v901 = vld [vmem:[%s3 + $0xb4] sm:$0xf]
      %v902 = vld [vmem:[%s3 + $0xb8] sm:$0xf]
      %v903 = vld [vmem:[%s3 + $0xbc] sm:$0xf]
      %v904 = vunpack.c.l.b16 %v875
      %v905 = vunpack.c.l.b16 %v879
      %v906 = vunpack.c.l.b16 %v883
      %v907 = vunpack.c.l.b16 %v887
      %v908 = vpack.c.b16 %v905, %v904
      %v909 = vpack.c.b16 %v907, %v906
      %v928 = vunpack.c.l.b16 %v888
      %v929 = vunpack.c.l.b16 %v889
      %v930 = vunpack.c.l.b16 %v890
      %v931 = vunpack.c.l.b16 %v891
      %v932 = vunpack.c.l.b16 %v892
      %v933 = vunpack.c.l.b16 %v893
      %v934 = vunpack.c.l.b16 %v894
      %v935 = vunpack.c.l.b16 %v895
      %v936 = vunpack.c.l.b16 %v896
      %v937 = vunpack.c.l.b16 %v897
      %v938 = vunpack.c.l.b16 %v898
      %v939 = vunpack.c.l.b16 %v899
      %v940 = vunpack.c.l.b16 %v900
      %v941 = vunpack.c.l.b16 %v901
      %v942 = vunpack.c.l.b16 %v902
      %v943 = vunpack.c.l.b16 %v903
      %v944 = vpack.c.b16 %v929, %v928
      %v945 = vpack.c.b16 %v931, %v930
      %v946 = vpack.c.b16 %v933, %v932
      %v947 = vpack.c.b16 %v935, %v934
      %v948 = vpack.c.b16 %v937, %v936
      %v949 = vpack.c.b16 %v939, %v938
      %v950 = vpack.c.b16 %v941, %v940
      %v951 = vpack.c.b16 %v943, %v942
      %960 = vmatpush.bf16.msra.mxu0 %v951
      %961 = vmatpush.bf16.msra.mxu0 %v950
      %962 = vmatpush.bf16.msra.mxu0 %v949
      %963 = vmatpush.bf16.msra.mxu0 %v948
      %964 = vmatpush.bf16.msra.mxu0 %v947
      %965 = vmatpush.bf16.msra.mxu0 %v946
      %966 = vmatpush.bf16.msra.mxu0 %v945
      %967 = vmatpush.bf16.msra.mxu0 %v944
      %968 = vmatmul.bf16.gmra.mxu0 %v908
      %v969 = vpop.f32.mrf.mxu0
      %v970 = vadd.f32 0.0, %v969
      %v971 = vpop.f32.mrf.mxu0
      %v972 = vadd.f32 0.0, %v971
      %973 = vmatmul.bf16.gmra.mxu0 %v909
      %v974 = vpop.f32.mrf.mxu0
      %v975 = vadd.f32 0.0, %v974
      %v976 = vpop.f32.mrf.mxu0
      %v977 = vadd.f32 0.0, %v976
      %978 = vdwg.mxu0
      %v979 = vadd.f32 %v848, %v970
      %v980 = vadd.f32 %v850, %v972
      %v981 = vadd.f32 %v853, %v975
      %v982 = vadd.f32 %v855, %v977
      %v983 = vld [vmem:[%s510] sm:$0xf]
      %v984 = vld [vmem:[%s510 + $0x8] sm:$0xf]
      %v985 = vld [vmem:[%s510 + $0x10] sm:$0xf]
      %v986 = vld [vmem:[%s510 + $0x18] sm:$0xf]
      %v987 = vld [vmem:[%s3 + $0xc0] sm:$0xf]
      %v988 = vld [vmem:[%s3 + $0xc4] sm:$0xf]
      %v989 = vld [vmem:[%s3 + $0xc8] sm:$0xf]
      %v990 = vld [vmem:[%s3 + $0xcc] sm:$0xf]
      %v991 = vld [vmem:[%s3 + $0xd0] sm:$0xf]
      %v992 = vld [vmem:[%s3 + $0xd4] sm:$0xf]
      %v993 = vld [vmem:[%s3 + $0xd8] sm:$0xf]
      %v994 = vld [vmem:[%s3 + $0xdc] sm:$0xf]
      %v995 = vld [vmem:[%s3 + $0xe0] sm:$0xf]
      %v996 = vld [vmem:[%s3 + $0xe4] sm:$0xf]
      %v997 = vld [vmem:[%s3 + $0xe8] sm:$0xf]
      %v998 = vld [vmem:[%s3 + $0xec] sm:$0xf]
      %v999 = vld [vmem:[%s3 + $0xf0] sm:$0xf]
      %v1000 = vld [vmem:[%s3 + $0xf4] sm:$0xf]
      %v1001 = vld [vmem:[%s3 + $0xf8] sm:$0xf]
      %v1002 = vld [vmem:[%s3 + $0xfc] sm:$0xf]
      %v1007 = vunpack.c.l.b16 %v983
      %v1008 = vunpack.c.l.b16 %v984
      %v1009 = vunpack.c.l.b16 %v985
      %v1010 = vunpack.c.l.b16 %v986
      %v1011 = vpack.c.b16 %v1008, %v1007
      %v1012 = vpack.c.b16 %v1010, %v1009
      %v1031 = vunpack.c.l.b16 %v987
      %v1032 = vunpack.c.l.b16 %v988
      %v1033 = vunpack.c.l.b16 %v989
      %v1034 = vunpack.c.l.b16 %v990
      %v1035 = vunpack.c.l.b16 %v991
      %v1036 = vunpack.c.l.b16 %v992
      %v1037 = vunpack.c.l.b16 %v993
      %v1038 = vunpack.c.l.b16 %v994
      %v1039 = vunpack.c.l.b16 %v995
      %v1040 = vunpack.c.l.b16 %v996
      %v1041 = vunpack.c.l.b16 %v997
      %v1042 = vunpack.c.l.b16 %v998
      %v1043 = vunpack.c.l.b16 %v999
      %v1044 = vunpack.c.l.b16 %v1000
      %v1045 = vunpack.c.l.b16 %v1001
      %v1046 = vunpack.c.l.b16 %v1002
      %v1047 = vpack.c.b16 %v1032, %v1031
      %v1048 = vpack.c.b16 %v1034, %v1033
      %v1049 = vpack.c.b16 %v1036, %v1035
      %v1050 = vpack.c.b16 %v1038, %v1037
      %v1051 = vpack.c.b16 %v1040, %v1039
      %v1052 = vpack.c.b16 %v1042, %v1041
      %v1053 = vpack.c.b16 %v1044, %v1043
      %v1054 = vpack.c.b16 %v1046, %v1045
      %1063 = vmatpush.bf16.msra.mxu0 %v1054
      %1064 = vmatpush.bf16.msra.mxu0 %v1053
      %1065 = vmatpush.bf16.msra.mxu0 %v1052
      %1066 = vmatpush.bf16.msra.mxu0 %v1051
      %1067 = vmatpush.bf16.msra.mxu0 %v1050
      %1068 = vmatpush.bf16.msra.mxu0 %v1049
      %1069 = vmatpush.bf16.msra.mxu0 %v1048
      %1070 = vmatpush.bf16.msra.mxu0 %v1047
      %1071 = vmatmul.bf16.gmra.mxu0 %v1011
      %v1072 = vpop.f32.mrf.mxu0
      %v1073 = vadd.f32 0.0, %v1072
      %v1074 = vpop.f32.mrf.mxu0
      %v1075 = vadd.f32 0.0, %v1074
      %1076 = vmatmul.bf16.gmra.mxu0 %v1012
      %v1077 = vpop.f32.mrf.mxu0
      %v1078 = vadd.f32 0.0, %v1077
      %v1079 = vpop.f32.mrf.mxu0
      %v1080 = vadd.f32 0.0, %v1079
      %1081 = vdwg.mxu0
      %v1082 = vadd.f32 %v979, %v1073
      %v1083 = vadd.f32 %v980, %v1075
      %v1084 = vadd.f32 %v981, %v1078
      %v1085 = vadd.f32 %v982, %v1080
      %v1086 = vld [vmem:[%s510] sm:$0xf]
      %v1087 = vld [vmem:[%s510 + $0x4] sm:$0x1]
      %v1088 = vld [vmem:[%s510 + $0x8] sm:$0xf]
      %v1089 = vld [vmem:[%s510 + $0xc] sm:$0x1]
      %v1090 = vld [vmem:[%s510 + $0x10] sm:$0xf]
      %v1091 = vld [vmem:[%s510 + $0x14] sm:$0x1]
      %v1092 = vld [vmem:[%s510 + $0x18] sm:$0xf]
      %v1093 = vld [vmem:[%s510 + $0x1c] sm:$0x1]
      %v1095 = vshrl.u32 %v1086, 16
      %v1097 = vrot.slane %v1095, 4
      %v1098 = vshll.u32 %v1086, 16
      %v1100 = vrot.slane %v1098, 5
      %v1101 = vor.u32 %v1097, %v1100
      %v1102 = vrot.slane %v1101, 4
      %v1104 = vshll.u32 %v1087, 16
      %v1106 = vrot.slane %v1104, 5
      %v1107 = vsel %vm630, %v1102, %v1106
      %v1109 = vshrl.u32 %v1088, 16
      %v1111 = vrot.slane %v1109, 4
      %v1112 = vshll.u32 %v1088, 16
      %v1114 = vrot.slane %v1112, 5
      %v1115 = vor.u32 %v1111, %v1114
      %v1116 = vrot.slane %v1115, 4
      %v1118 = vshll.u32 %v1089, 16
      %v1120 = vrot.slane %v1118, 5
      %v1121 = vsel %vm630, %v1116, %v1120
      %v1123 = vshrl.u32 %v1090, 16
      %v1125 = vrot.slane %v1123, 4
      %v1126 = vshll.u32 %v1090, 16
      %v1128 = vrot.slane %v1126, 5
      %v1129 = vor.u32 %v1125, %v1128
      %v1130 = vrot.slane %v1129, 4
      %v1132 = vshll.u32 %v1091, 16
      %v1134 = vrot.slane %v1132, 5
      %v1135 = vsel %vm630, %v1130, %v1134
      %v1137 = vshrl.u32 %v1092, 16
      %v1139 = vrot.slane %v1137, 4
      %v1140 = vshll.u32 %v1092, 16
      %v1142 = vrot.slane %v1140, 5
      %v1143 = vor.u32 %v1139, %v1142
      %v1144 = vrot.slane %v1143, 4
      %v1146 = vshll.u32 %v1093, 16
      %v1148 = vrot.slane %v1146, 5
      %v1149 = vsel %vm630, %v1144, %v1148
      %v1150 = vld [vmem:[%s3 + $0x100] sm:$0xf]
      %v1151 = vld [vmem:[%s3 + $0x104] sm:$0xf]
      %v1152 = vld [vmem:[%s3 + $0x108] sm:$0xf]
      %v1153 = vld [vmem:[%s3 + $0x10c] sm:$0xf]
      %v1154 = vld [vmem:[%s3 + $0x110] sm:$0xf]
      %v1155 = vld [vmem:[%s3 + $0x114] sm:$0xf]
      %v1156 = vld [vmem:[%s3 + $0x118] sm:$0xf]
      %v1157 = vld [vmem:[%s3 + $0x11c] sm:$0xf]
      %v1158 = vld [vmem:[%s3 + $0x120] sm:$0xf]
      %v1159 = vld [vmem:[%s3 + $0x124] sm:$0xf]
      %v1160 = vld [vmem:[%s3 + $0x128] sm:$0xf]
      %v1161 = vld [vmem:[%s3 + $0x12c] sm:$0xf]
      %v1162 = vld [vmem:[%s3 + $0x130] sm:$0xf]
      %v1163 = vld [vmem:[%s3 + $0x134] sm:$0xf]
      %v1164 = vld [vmem:[%s3 + $0x138] sm:$0xf]
      %v1165 = vld [vmem:[%s3 + $0x13c] sm:$0xf]
      %v1166 = vunpack.c.l.b16 %v1107
      %v1167 = vunpack.c.l.b16 %v1121
      %v1168 = vunpack.c.l.b16 %v1135
      %v1169 = vunpack.c.l.b16 %v1149
      %v1170 = vpack.c.b16 %v1167, %v1166
      %v1171 = vpack.c.b16 %v1169, %v1168
      %v1190 = vunpack.c.l.b16 %v1150
      %v1191 = vunpack.c.l.b16 %v1151
      %v1192 = vunpack.c.l.b16 %v1152
      %v1193 = vunpack.c.l.b16 %v1153
      %v1194 = vunpack.c.l.b16 %v1154
      %v1195 = vunpack.c.l.b16 %v1155
      %v1196 = vunpack.c.l.b16 %v1156
      %v1197 = vunpack.c.l.b16 %v1157
      %v1198 = vunpack.c.l.b16 %v1158
      %v1199 = vunpack.c.l.b16 %v1159
      %v1200 = vunpack.c.l.b16 %v1160
      %v1201 = vunpack.c.l.b16 %v1161
      %v1202 = vunpack.c.l.b16 %v1162
      %v1203 = vunpack.c.l.b16 %v1163
      %v1204 = vunpack.c.l.b16 %v1164
      %v1205 = vunpack.c.l.b16 %v1165
      %v1206 = vpack.c.b16 %v1191, %v1190
      %v1207 = vpack.c.b16 %v1193, %v1192
      %v1208 = vpack.c.b16 %v1195, %v1194
      %v1209 = vpack.c.b16 %v1197, %v1196
      %v1210 = vpack.c.b16 %v1199, %v1198
      %v1211 = vpack.c.b16 %v1201, %v1200
      %v1212 = vpack.c.b16 %v1203, %v1202
      %v1213 = vpack.c.b16 %v1205, %v1204
      %1222 = vmatpush.bf16.msra.mxu0 %v1213
      %1223 = vmatpush.bf16.msra.mxu0 %v1212
      %1224 = vmatpush.bf16.msra.mxu0 %v1211
      %1225 = vmatpush.bf16.msra.mxu0 %v1210
      %1226 = vmatpush.bf16.msra.mxu0 %v1209
      %1227 = vmatpush.bf16.msra.mxu0 %v1208
      %1228 = vmatpush.bf16.msra.mxu0 %v1207
      %1229 = vmatpush.bf16.msra.mxu0 %v1206
      %1230 = vmatmul.bf16.gmra.mxu0 %v1170
      %v1231 = vpop.f32.mrf.mxu0
      %v1232 = vadd.f32 0.0, %v1231
      %v1233 = vpop.f32.mrf.mxu0
      %v1234 = vadd.f32 0.0, %v1233
      %1235 = vmatmul.bf16.gmra.mxu0 %v1171
      %v1236 = vpop.f32.mrf.mxu0
      %v1237 = vadd.f32 0.0, %v1236
      %v1238 = vpop.f32.mrf.mxu0
      %v1239 = vadd.f32 0.0, %v1238
      %1240 = vdwg.mxu0
      %v1241 = vadd.f32 %v1082, %v1232
      %v1242 = vadd.f32 %v1083, %v1234
      %v1243 = vadd.f32 %v1084, %v1237
      %v1244 = vadd.f32 %v1085, %v1239
      %v1245 = vld [vmem:[%s510] sm:$0xe]
      %v1246 = vld [vmem:[%s510 + $0x8] sm:$0xe]
      %v1247 = vld [vmem:[%s510 + $0x10] sm:$0xe]
      %v1248 = vld [vmem:[%s510 + $0x18] sm:$0xe]
      %v1257 = vrot.slane %v1245, 5
      %v1258 = vrot.slane %v1257, 4
      %v1259 = vrot.slane %v1087, 5
      %v1260 = vsel %vm871, %v1258, %v1259
      %v1261 = vrot.slane %v1246, 5
      %v1262 = vrot.slane %v1261, 4
      %v1263 = vrot.slane %v1089, 5
      %v1264 = vsel %vm871, %v1262, %v1263
      %v1265 = vrot.slane %v1247, 5
      %v1266 = vrot.slane %v1265, 4
      %v1267 = vrot.slane %v1091, 5
      %v1268 = vsel %vm871, %v1266, %v1267
      %v1269 = vrot.slane %v1248, 5
      %v1270 = vrot.slane %v1269, 4
      %v1271 = vrot.slane %v1093, 5
      %v1272 = vsel %vm871, %v1270, %v1271
      %v1273 = vld [vmem:[%s3 + $0x140] sm:$0xf]
      %v1274 = vld [vmem:[%s3 + $0x144] sm:$0xf]
      %v1275 = vld [vmem:[%s3 + $0x148] sm:$0xf]
      %v1276 = vld [vmem:[%s3 + $0x14c] sm:$0xf]
      %v1277 = vld [vmem:[%s3 + $0x150] sm:$0xf]
      %v1278 = vld [vmem:[%s3 + $0x154] sm:$0xf]
      %v1279 = vld [vmem:[%s3 + $0x158] sm:$0xf]
      %v1280 = vld [vmem:[%s3 + $0x15c] sm:$0xf]
      %v1281 = vld [vmem:[%s3 + $0x160] sm:$0xf]
      %v1282 = vld [vmem:[%s3 + $0x164] sm:$0xf]
      %v1283 = vld [vmem:[%s3 + $0x168] sm:$0xf]
      %v1284 = vld [vmem:[%s3 + $0x16c] sm:$0xf]
      %v1285 = vld [vmem:[%s3 + $0x170] sm:$0xf]
      %v1286 = vld [vmem:[%s3 + $0x174] sm:$0xf]
      %v1287 = vld [vmem:[%s3 + $0x178] sm:$0xf]
      %v1288 = vld [vmem:[%s3 + $0x17c] sm:$0xf]
      %v1289 = vunpack.c.l.b16 %v1260
      %v1290 = vunpack.c.l.b16 %v1264
      %v1291 = vunpack.c.l.b16 %v1268
      %v1292 = vunpack.c.l.b16 %v1272
      %v1293 = vpack.c.b16 %v1290, %v1289
      %v1294 = vpack.c.b16 %v1292, %v1291
      %v1313 = vunpack.c.l.b16 %v1273
      %v1314 = vunpack.c.l.b16 %v1274
      %v1315 = vunpack.c.l.b16 %v1275
      %v1316 = vunpack.c.l.b16 %v1276
      %v1317 = vunpack.c.l.b16 %v1277
      %v1318 = vunpack.c.l.b16 %v1278
      %v1319 = vunpack.c.l.b16 %v1279
      %v1320 = vunpack.c.l.b16 %v1280
      %v1321 = vunpack.c.l.b16 %v1281
      %v1322 = vunpack.c.l.b16 %v1282
      %v1323 = vunpack.c.l.b16 %v1283
      %v1324 = vunpack.c.l.b16 %v1284
      %v1325 = vunpack.c.l.b16 %v1285
      %v1326 = vunpack.c.l.b16 %v1286
      %v1327 = vunpack.c.l.b16 %v1287
      %v1328 = vunpack.c.l.b16 %v1288
      %v1329 = vpack.c.b16 %v1314, %v1313
      %v1330 = vpack.c.b16 %v1316, %v1315
      %v1331 = vpack.c.b16 %v1318, %v1317
      %v1332 = vpack.c.b16 %v1320, %v1319
      %v1333 = vpack.c.b16 %v1322, %v1321
      %v1334 = vpack.c.b16 %v1324, %v1323
      %v1335 = vpack.c.b16 %v1326, %v1325
      %v1336 = vpack.c.b16 %v1328, %v1327
      %1345 = vmatpush.bf16.msra.mxu0 %v1336
      %1346 = vmatpush.bf16.msra.mxu0 %v1335
      %1347 = vmatpush.bf16.msra.mxu0 %v1334
      %1348 = vmatpush.bf16.msra.mxu0 %v1333
      %1349 = vmatpush.bf16.msra.mxu0 %v1332
      %1350 = vmatpush.bf16.msra.mxu0 %v1331
      %1351 = vmatpush.bf16.msra.mxu0 %v1330
      %1352 = vmatpush.bf16.msra.mxu0 %v1329
      %1353 = vmatmul.bf16.gmra.mxu0 %v1293
      %v1354 = vpop.f32.mrf.mxu0
      %v1355 = vadd.f32 0.0, %v1354
      %v1356 = vpop.f32.mrf.mxu0
      %v1357 = vadd.f32 0.0, %v1356
      %1358 = vmatmul.bf16.gmra.mxu0 %v1294
      %v1359 = vpop.f32.mrf.mxu0
      %v1360 = vadd.f32 0.0, %v1359
      %v1361 = vpop.f32.mrf.mxu0
      %v1362 = vadd.f32 0.0, %v1361
      %1363 = vdwg.mxu0
      %v1364 = vadd.f32 %v1241, %v1355
      %v1365 = vadd.f32 %v1242, %v1357
      %v1366 = vadd.f32 %v1243, %v1360
      %v1367 = vadd.f32 %v1244, %v1362
      %s1368 = scalar_lea.vmem [#allocation2], 16
      %v1369 = vld [vmem:[%s1368] sm:$0xf]
      %v1370 = vld [vmem:[%s1368 + $0x8] sm:$0xf]
      %v1371 = vld [vmem:[%s1368 + $0x10] sm:$0xf]
      %v1372 = vld [vmem:[%s1368 + $0x18] sm:$0xf]
      %v1373 = vld [vmem:[%s3 + $0x180] sm:$0xf]
      %v1374 = vld [vmem:[%s3 + $0x184] sm:$0xf]
      %v1375 = vld [vmem:[%s3 + $0x188] sm:$0xf]
      %v1376 = vld [vmem:[%s3 + $0x18c] sm:$0xf]
      %v1377 = vld [vmem:[%s3 + $0x190] sm:$0xf]
      %v1378 = vld [vmem:[%s3 + $0x194] sm:$0xf]
      %v1379 = vld [vmem:[%s3 + $0x198] sm:$0xf]
      %v1380 = vld [vmem:[%s3 + $0x19c] sm:$0xf]
      %v1381 = vld [vmem:[%s3 + $0x1a0] sm:$0xf]
      %v1382 = vld [vmem:[%s3 + $0x1a4] sm:$0xf]
      %v1383 = vld [vmem:[%s3 + $0x1a8] sm:$0xf]
      %v1384 = vld [vmem:[%s3 + $0x1ac] sm:$0xf]
      %v1385 = vld [vmem:[%s3 + $0x1b0] sm:$0xf]
      %v1386 = vld [vmem:[%s3 + $0x1b4] sm:$0xf]
      %v1387 = vld [vmem:[%s3 + $0x1b8] sm:$0xf]
      %v1388 = vld [vmem:[%s3 + $0x1bc] sm:$0xf]
      %v1393 = vunpack.c.l.b16 %v1369
      %v1394 = vunpack.c.l.b16 %v1370
      %v1395 = vunpack.c.l.b16 %v1371
      %v1396 = vunpack.c.l.b16 %v1372
      %v1397 = vpack.c.b16 %v1394, %v1393
      %v1398 = vpack.c.b16 %v1396, %v1395
      %v1417 = vunpack.c.l.b16 %v1373
      %v1418 = vunpack.c.l.b16 %v1374
      %v1419 = vunpack.c.l.b16 %v1375
      %v1420 = vunpack.c.l.b16 %v1376
      %v1421 = vunpack.c.l.b16 %v1377
      %v1422 = vunpack.c.l.b16 %v1378
      %v1423 = vunpack.c.l.b16 %v1379
      %v1424 = vunpack.c.l.b16 %v1380
      %v1425 = vunpack.c.l.b16 %v1381
      %v1426 = vunpack.c.l.b16 %v1382
      %v1427 = vunpack.c.l.b16 %v1383
      %v1428 = vunpack.c.l.b16 %v1384
      %v1429 = vunpack.c.l.b16 %v1385
      %v1430 = vunpack.c.l.b16 %v1386
      %v1431 = vunpack.c.l.b16 %v1387
      %v1432 = vunpack.c.l.b16 %v1388
      %v1433 = vpack.c.b16 %v1418, %v1417
      %v1434 = vpack.c.b16 %v1420, %v1419
      %v1435 = vpack.c.b16 %v1422, %v1421
      %v1436 = vpack.c.b16 %v1424, %v1423
      %v1437 = vpack.c.b16 %v1426, %v1425
      %v1438 = vpack.c.b16 %v1428, %v1427
      %v1439 = vpack.c.b16 %v1430, %v1429
      %v1440 = vpack.c.b16 %v1432, %v1431
      %1449 = vmatpush.bf16.msra.mxu0 %v1440
      %1450 = vmatpush.bf16.msra.mxu0 %v1439
      %1451 = vmatpush.bf16.msra.mxu0 %v1438
      %1452 = vmatpush.bf16.msra.mxu0 %v1437
      %1453 = vmatpush.bf16.msra.mxu0 %v1436
      %1454 = vmatpush.bf16.msra.mxu0 %v1435
      %1455 = vmatpush.bf16.msra.mxu0 %v1434
      %1456 = vmatpush.bf16.msra.mxu0 %v1433
      %1457 = vmatmul.bf16.gmra.mxu0 %v1397
      %v1458 = vpop.f32.mrf.mxu0
      %v1459 = vadd.f32 0.0, %v1458
      %v1460 = vpop.f32.mrf.mxu0
      %v1461 = vadd.f32 0.0, %v1460
      %1462 = vmatmul.bf16.gmra.mxu0 %v1398
      %v1463 = vpop.f32.mrf.mxu0
      %v1464 = vadd.f32 0.0, %v1463
      %v1465 = vpop.f32.mrf.mxu0
      %v1466 = vadd.f32 0.0, %v1465
      %1467 = vdwg.mxu0
      %v1468 = vadd.f32 %v1364, %v1459
      %v1469 = vadd.f32 %v1365, %v1461
      %v1470 = vadd.f32 %v1366, %v1464
      %v1471 = vadd.f32 %v1367, %v1466
      %v1472 = vld [vmem:[%s1368] sm:$0xf]
      %v1473 = vld [vmem:[%s1368 + $0x4] sm:$0x1]
      %v1474 = vld [vmem:[%s1368 + $0x8] sm:$0xf]
      %v1475 = vld [vmem:[%s1368 + $0xc] sm:$0x1]
      %v1476 = vld [vmem:[%s1368 + $0x10] sm:$0xf]
      %v1477 = vld [vmem:[%s1368 + $0x14] sm:$0x1]
      %v1478 = vld [vmem:[%s1368 + $0x18] sm:$0xf]
      %v1479 = vld [vmem:[%s1368 + $0x1c] sm:$0x1]
      %v1481 = vshrl.u32 %v1472, 16
      %v1483 = vrot.slane %v1481, 4
      %v1484 = vshll.u32 %v1472, 16
      %v1486 = vrot.slane %v1484, 5
      %v1487 = vor.u32 %v1483, %v1486
      %v1488 = vrot.slane %v1487, 4
      %v1490 = vshll.u32 %v1473, 16
      %v1492 = vrot.slane %v1490, 5
      %v1493 = vsel %vm630, %v1488, %v1492
      %v1495 = vshrl.u32 %v1474, 16
      %v1497 = vrot.slane %v1495, 4
      %v1498 = vshll.u32 %v1474, 16
      %v1500 = vrot.slane %v1498, 5
      %v1501 = vor.u32 %v1497, %v1500
      %v1502 = vrot.slane %v1501, 4
      %v1504 = vshll.u32 %v1475, 16
      %v1506 = vrot.slane %v1504, 5
      %v1507 = vsel %vm630, %v1502, %v1506
      %v1509 = vshrl.u32 %v1476, 16
      %v1511 = vrot.slane %v1509, 4
      %v1512 = vshll.u32 %v1476, 16
      %v1514 = vrot.slane %v1512, 5
      %v1515 = vor.u32 %v1511, %v1514
      %v1516 = vrot.slane %v1515, 4
      %v1518 = vshll.u32 %v1477, 16
      %v1520 = vrot.slane %v1518, 5
      %v1521 = vsel %vm630, %v1516, %v1520
      %v1523 = vshrl.u32 %v1478, 16
      %v1525 = vrot.slane %v1523, 4
      %v1526 = vshll.u32 %v1478, 16
      %v1528 = vrot.slane %v1526, 5
      %v1529 = vor.u32 %v1525, %v1528
      %v1530 = vrot.slane %v1529, 4
      %v1532 = vshll.u32 %v1479, 16
      %v1534 = vrot.slane %v1532, 5
      %v1535 = vsel %vm630, %v1530, %v1534
      %v1536 = vld [vmem:[%s3 + $0x1c0] sm:$0xf]
      %v1537 = vld [vmem:[%s3 + $0x1c4] sm:$0xf]
      %v1538 = vld [vmem:[%s3 + $0x1c8] sm:$0xf]
      %v1539 = vld [vmem:[%s3 + $0x1cc] sm:$0xf]
      %v1540 = vld [vmem:[%s3 + $0x1d0] sm:$0xf]
      %v1541 = vld [vmem:[%s3 + $0x1d4] sm:$0xf]
      %v1542 = vld [vmem:[%s3 + $0x1d8] sm:$0xf]
      %v1543 = vld [vmem:[%s3 + $0x1dc] sm:$0xf]
      %v1544 = vld [vmem:[%s3 + $0x1e0] sm:$0xf]
      %v1545 = vld [vmem:[%s3 + $0x1e4] sm:$0xf]
      %v1546 = vld [vmem:[%s3 + $0x1e8] sm:$0xf]
      %v1547 = vld [vmem:[%s3 + $0x1ec] sm:$0xf]
      %v1548 = vld [vmem:[%s3 + $0x1f0] sm:$0xf]
      %v1549 = vld [vmem:[%s3 + $0x1f4] sm:$0xf]
      %v1550 = vld [vmem:[%s3 + $0x1f8] sm:$0xf]
      %v1551 = vld [vmem:[%s3 + $0x1fc] sm:$0xf]
      %v1552 = vunpack.c.l.b16 %v1493
      %v1553 = vunpack.c.l.b16 %v1507
      %v1554 = vunpack.c.l.b16 %v1521
      %v1555 = vunpack.c.l.b16 %v1535
      %v1556 = vpack.c.b16 %v1553, %v1552
      %v1557 = vpack.c.b16 %v1555, %v1554
      %v1576 = vunpack.c.l.b16 %v1536
      %v1577 = vunpack.c.l.b16 %v1537
      %v1578 = vunpack.c.l.b16 %v1538
      %v1579 = vunpack.c.l.b16 %v1539
      %v1580 = vunpack.c.l.b16 %v1540
      %v1581 = vunpack.c.l.b16 %v1541
      %v1582 = vunpack.c.l.b16 %v1542
      %v1583 = vunpack.c.l.b16 %v1543
      %v1584 = vunpack.c.l.b16 %v1544
      %v1585 = vunpack.c.l.b16 %v1545
      %v1586 = vunpack.c.l.b16 %v1546
      %v1587 = vunpack.c.l.b16 %v1547
      %v1588 = vunpack.c.l.b16 %v1548
      %v1589 = vunpack.c.l.b16 %v1549
      %v1590 = vunpack.c.l.b16 %v1550
      %v1591 = vunpack.c.l.b16 %v1551
      %v1592 = vpack.c.b16 %v1577, %v1576
      %v1593 = vpack.c.b16 %v1579, %v1578
      %v1594 = vpack.c.b16 %v1581, %v1580
      %v1595 = vpack.c.b16 %v1583, %v1582
      %v1596 = vpack.c.b16 %v1585, %v1584
      %v1597 = vpack.c.b16 %v1587, %v1586
      %v1598 = vpack.c.b16 %v1589, %v1588
      %v1599 = vpack.c.b16 %v1591, %v1590
      %1608 = vmatpush.bf16.msra.mxu0 %v1599
      %1609 = vmatpush.bf16.msra.mxu0 %v1598
      %1610 = vmatpush.bf16.msra.mxu0 %v1597
      %1611 = vmatpush.bf16.msra.mxu0 %v1596
      %1612 = vmatpush.bf16.msra.mxu0 %v1595
      %1613 = vmatpush.bf16.msra.mxu0 %v1594
      %1614 = vmatpush.bf16.msra.mxu0 %v1593
      %1615 = vmatpush.bf16.msra.mxu0 %v1592
      %1616 = vmatmul.bf16.gmra.mxu0 %v1556
      %v1617 = vpop.f32.mrf.mxu0
      %v1618 = vadd.f32 0.0, %v1617
      %v1619 = vpop.f32.mrf.mxu0
      %v1620 = vadd.f32 0.0, %v1619
      %1621 = vmatmul.bf16.gmra.mxu0 %v1557
      %v1622 = vpop.f32.mrf.mxu0
      %v1623 = vadd.f32 0.0, %v1622
      %v1624 = vpop.f32.mrf.mxu0
      %v1625 = vadd.f32 0.0, %v1624
      %1626 = vdwg.mxu0
      %v1627 = vadd.f32 %v1468, %v1618
      %v1628 = vadd.f32 %v1469, %v1620
      %v1629 = vadd.f32 %v1470, %v1623
      %v1630 = vadd.f32 %v1471, %v1625
      %v1631 = vld [vmem:[%s1368] sm:$0xe]
      %v1632 = vld [vmem:[%s1368 + $0x8] sm:$0xe]
      %v1633 = vld [vmem:[%s1368 + $0x10] sm:$0xe]
      %v1634 = vld [vmem:[%s1368 + $0x18] sm:$0xe]
      %v1643 = vrot.slane %v1631, 5
      %v1644 = vrot.slane %v1643, 4
      %v1645 = vrot.slane %v1473, 5
      %v1646 = vsel %vm871, %v1644, %v1645
      %v1647 = vrot.slane %v1632, 5
      %v1648 = vrot.slane %v1647, 4
      %v1649 = vrot.slane %v1475, 5
      %v1650 = vsel %vm871, %v1648, %v1649
      %v1651 = vrot.slane %v1633, 5
      %v1652 = vrot.slane %v1651, 4
      %v1653 = vrot.slane %v1477, 5
      %v1654 = vsel %vm871, %v1652, %v1653
      %v1655 = vrot.slane %v1634, 5
      %v1656 = vrot.slane %v1655, 4
      %v1657 = vrot.slane %v1479, 5
      %v1658 = vsel %vm871, %v1656, %v1657
      %v1659 = vld [vmem:[%s3 + $0x200] sm:$0xf]
      %v1660 = vld [vmem:[%s3 + $0x204] sm:$0xf]
      %v1661 = vld [vmem:[%s3 + $0x208] sm:$0xf]
      %v1662 = vld [vmem:[%s3 + $0x20c] sm:$0xf]
      %v1663 = vld [vmem:[%s3 + $0x210] sm:$0xf]
      %v1664 = vld [vmem:[%s3 + $0x214] sm:$0xf]
      %v1665 = vld [vmem:[%s3 + $0x218] sm:$0xf]
      %v1666 = vld [vmem:[%s3 + $0x21c] sm:$0xf]
      %v1667 = vld [vmem:[%s3 + $0x220] sm:$0xf]
      %v1668 = vld [vmem:[%s3 + $0x224] sm:$0xf]
      %v1669 = vld [vmem:[%s3 + $0x228] sm:$0xf]
      %v1670 = vld [vmem:[%s3 + $0x22c] sm:$0xf]
      %v1671 = vld [vmem:[%s3 + $0x230] sm:$0xf]
      %v1672 = vld [vmem:[%s3 + $0x234] sm:$0xf]
      %v1673 = vld [vmem:[%s3 + $0x238] sm:$0xf]
      %v1674 = vld [vmem:[%s3 + $0x23c] sm:$0xf]
      %v1675 = vunpack.c.l.b16 %v1646
      %v1676 = vunpack.c.l.b16 %v1650
      %v1677 = vunpack.c.l.b16 %v1654
      %v1678 = vunpack.c.l.b16 %v1658
      %v1679 = vpack.c.b16 %v1676, %v1675
      %v1680 = vpack.c.b16 %v1678, %v1677
      %v1699 = vunpack.c.l.b16 %v1659
      %v1700 = vunpack.c.l.b16 %v1660
      %v1701 = vunpack.c.l.b16 %v1661
      %v1702 = vunpack.c.l.b16 %v1662
      %v1703 = vunpack.c.l.b16 %v1663
      %v1704 = vunpack.c.l.b16 %v1664
      %v1705 = vunpack.c.l.b16 %v1665
      %v1706 = vunpack.c.l.b16 %v1666
      %v1707 = vunpack.c.l.b16 %v1667
      %v1708 = vunpack.c.l.b16 %v1668
      %v1709 = vunpack.c.l.b16 %v1669
      %v1710 = vunpack.c.l.b16 %v1670
      %v1711 = vunpack.c.l.b16 %v1671
      %v1712 = vunpack.c.l.b16 %v1672
      %v1713 = vunpack.c.l.b16 %v1673
      %v1714 = vunpack.c.l.b16 %v1674
      %v1715 = vpack.c.b16 %v1700, %v1699
      %v1716 = vpack.c.b16 %v1702, %v1701
      %v1717 = vpack.c.b16 %v1704, %v1703
      %v1718 = vpack.c.b16 %v1706, %v1705
      %v1719 = vpack.c.b16 %v1708, %v1707
      %v1720 = vpack.c.b16 %v1710, %v1709
      %v1721 = vpack.c.b16 %v1712, %v1711
      %v1722 = vpack.c.b16 %v1714, %v1713
      %1731 = vmatpush.bf16.msra.mxu0 %v1722
      %1732 = vmatpush.bf16.msra.mxu0 %v1721
      %1733 = vmatpush.bf16.msra.mxu0 %v1720
      %1734 = vmatpush.bf16.msra.mxu0 %v1719
      %1735 = vmatpush.bf16.msra.mxu0 %v1718
      %1736 = vmatpush.bf16.msra.mxu0 %v1717
      %1737 = vmatpush.bf16.msra.mxu0 %v1716
      %1738 = vmatpush.bf16.msra.mxu0 %v1715
      %1739 = vmatmul.bf16.gmra.mxu0 %v1679
      %v1740 = vpop.f32.mrf.mxu0
      %v1741 = vadd.f32 0.0, %v1740
      %v1742 = vpop.f32.mrf.mxu0
      %v1743 = vadd.f32 0.0, %v1742
      %1744 = vmatmul.bf16.gmra.mxu0 %v1680
      %v1745 = vpop.f32.mrf.mxu0
      %v1746 = vadd.f32 0.0, %v1745
      %v1747 = vpop.f32.mrf.mxu0
      %v1748 = vadd.f32 0.0, %v1747
      %1749 = vdwg.mxu0
      %v1750 = vadd.f32 %v1627, %v1741
      %v1751 = vadd.f32 %v1628, %v1743
      %v1752 = vadd.f32 %v1629, %v1746
      %v1753 = vadd.f32 %v1630, %v1748
      %v1754 = vpack.c.bf16 %v1750, %v1750
      %v1755 = vpack.c.bf16 %v1751, %v1751
      %v1756 = vpack.c.bf16 %v1752, %v1752
      %v1757 = vpack.c.bf16 %v1753, %v1753
      %1758 = vst [vmem:[%s406] sm:$0xf] %v1754
      %1759 = vst [vmem:[%s406 + $0x4] sm:$0xf] %v1755
      %1760 = vst [vmem:[%s406 + $0x8] sm:$0xf] %v1756
      %1761 = vst [vmem:[%s406 + $0xc] sm:$0xf] %v1757
      %v1762 = vld [vmem:[%s411] sm:$0x1]
      %v1763 = vadd.f32 %v1750, %v1751
      %v1764 = vadd.f32 %v1763, %v1752
      %v1765 = vadd.f32 %v1764, %v1753
      %v1766 = vrot.slane %v1765, 4
      %v1767 = vadd.f32 %v1765, %v1766
      %v1768 = vrot.slane %v1767, 2
      %v1769 = vadd.f32 %v1767, %v1768
      %v1770 = vrot.slane %v1769, 1
      %v1771 = vadd.f32 %v1769, %v1770
      %v1772 = vadd.f32 %v1762, %v1771
      %1773 = vst [vmem:[%s411] sm:$0x1] %v1772
      %v1774 = vld [vmem:[%s411 + $0x1] sm:$0x1]
      %v1775 = vmul.f32 %v1750, %v1750
      %v1776 = vmul.f32 %v1751, %v1751
      %v1777 = vmul.f32 %v1752, %v1752
      %v1778 = vmul.f32 %v1753, %v1753
      %v1779 = vadd.f32 %v1775, %v1776
      %v1780 = vadd.f32 %v1779, %v1777
      %v1781 = vadd.f32 %v1780, %v1778
      %v1782 = vrot.slane %v1781, 4
      %v1783 = vadd.f32 %v1781, %v1782
      %v1784 = vrot.slane %v1783, 2
      %v1785 = vadd.f32 %v1783, %v1784
      %v1786 = vrot.slane %v1785, 1
      %v1787 = vadd.f32 %v1785, %v1786
      %v1788 = vadd.f32 %v1774, %v1787
      %1789 = vst [vmem:[%s411 + $0x1] sm:$0x1] %v1788
      %s1790 = smul.u32 4, %s22
      %p1791 = scmp.lt.s32.totalorder %s21, 1
      %s1792 = scalar_select %p1791, %s21, 1
      %p1793 = scmp.lt.s32.totalorder %s1790, 7
      %s1794 = scalar_select %p1793, %s1790, 7
      %s1795 = smul.addr %s1792, 8
      %s1796 = sadd.s32 %s1794, %s1795
      %s1797 = smul.addr %s1796, 4
      %s1798 = scalar_lea.vmem %s4, %s1797
      %p1799 = scmp.lt.s32.totalorder %s21, 1
      %s1800 = scalar_select %p1799, %s21, 1
      %s1801 = smul.addr %s1800, 2
      %s1802 = scalar_lea.vmem %s5, %s1801
      // Predicated region
      $region41: #{_lambda_.3} parent=35 // pred_check
        %p1803 = pneg %p170
      $region42: #{_lambda_.3} parent=35 // pred_check_branch
        %1805 = sbr.rel (%p1803) target = $region44
      $region43: #{_lambda_.3} parent=35 // pred_region
        %s1806 = smul.u32 4, %s22
      $region44: #{_lambda_.3} parent=35 // pred_fallthru
        _
      // Predicated region
      $region45: #{_lambda_.3} parent=35 // pred_check
        %p1807 = pneg %p196
      $region46: #{_lambda_.3} parent=35 // pred_check_branch
        %1809 = sbr.rel (%p1807) target = $region48
      $region47: #{_lambda_.3} parent=35 // pred_region
        _
      $region48: #{_lambda_.3} parent=35 // pred_fallthru
        _
    $region36: #{_lambda_.3} parent=5 // pred_fallthru
      _
    %p1810 = scmp.le.s32.totalorder 2, %s12
    // Predicated region
    $region49: #{_lambda_.3} parent=5 // pred_check
      %p1811 = pneg %p1810
    $region50: #{_lambda_.3} parent=5 // pred_check_branch
      %1813 = sbr.rel (%p1811) target = $region52
    $region51: #{_lambda_.3} parent=5 // pred_region
      %s1814 = ssub.s32 %s12, 2
      // Predicated region
      $region53: #{_lambda_.3} parent=51 // pred_check
        %p1815 = pneg %p176
      $region54: #{_lambda_.3} parent=51 // pred_check_branch
        %1817 = sbr.rel (%p1815) target = $region56
      $region55: #{_lambda_.3} parent=51 // pred_region
        %s1818 = smul.u32 4, %s24
        %p1819 = scmp.lt.s32.totalorder %s23, 1
        %s1820 = scalar_select %p1819, %s23, 1
        %p1821 = scmp.lt.s32.totalorder %s1818, 7
        %s1822 = scalar_select %p1821, %s1818, 7
        %s1823 = smul.addr %s1820, 8
        %s1824 = sadd.s32 %s1822, %s1823
        %s1825 = smul.addr %s1824, 4
        %s1826 = scalar_lea.vmem %s4, %s1825
      $region56: #{_lambda_.3} parent=51 // pred_fallthru
        _
      // Predicated region
      $region57: #{_lambda_.3} parent=51 // pred_check
        %p1827 = pneg %p202
      $region58: #{_lambda_.3} parent=51 // pred_check_branch
        %1829 = sbr.rel (%p1827) target = $region60
      $region59: #{_lambda_.3} parent=51 // pred_region
        %p1830 = scmp.lt.s32.totalorder %s23, 1
        %s1831 = scalar_select %p1830, %s23, 1
        %s1832 = smul.addr %s1831, 2
        %s1833 = scalar_lea.vmem %s5, %s1832
      $region60: #{_lambda_.3} parent=51 // pred_fallthru
        _
    $region52: #{_lambda_.3} parent=5 // pred_fallthru
      _
  $region6: #{_lambda_.3} parent=0 // loop_footer
    %s16 = sadd.s32 1, %s12
  $region7: #{_lambda_.3} parent=0 // loop_footer_branch
    %11 = sbr.rel target = $region3
  $region8: #{_lambda_.3} parent=0 // loop_exit
    _

// kernel: _lambda_.4
$region0: #{_lambda_.4}
  #allocation0 [shape = 'u32[]', space=smem, size = 0x4, offset = 0x4, fixed_abs, tag = 'smem constant byte address 0x4 - core index']
  #allocation1 [shape = 'u32[72,128]{1,0:T(1,128)}', space=vmem, size = 0x9000, scoped, tag = 'internal scratch']
  #allocation2 [shape = 'bf16[6,10,128]{2,1,0:T(8,128)(2,1)}', space=vmem, size = 0x6000, scoped, tag = 'scratch operand']
  %s0 = inlined_call_operand.vmem [shape: bf16[2,8,8,128], index: 0, kind: input, shape index: {}, may-alias: {0,1,2}]
  %s1 = inlined_call_operand.vmem [shape: bf16[2,8,8,128], index: 1, kind: input, shape index: {}, may-alias: {0,1,2}]
  %s2 = inlined_call_operand.vmem [shape: bf16[2,8,8,128], index: 2, kind: input, shape index: {}, may-alias: {0,1,2}]
  %s3 = inlined_call_operand.vmem [shape: f32[2,128], index: 3, kind: input, shape index: {}]
  %s4 = inlined_call_operand.vmem [shape: bf16[1152,128], index: 4, kind: input, shape index: {}]
  %s5 = inlined_call_operand.vmem [shape: bf16[2,8,8,128], index: 5, kind: output, shape index: {0}]
  %s6 = inlined_call_operand.vmem [shape: f32[2,2,128], index: 6, kind: output, shape index: {1}]
  %7 = xla_tuple %s5, %s6
  %s8 = sld [smem:[#allocation0]]
  $region65: #{_lambda_.4} parent=0
    _
  %s10 = ssub.s32 1, %s8
  %s11 = scalar_select 0, %s10, %s8
  loop: start=0, step=1, limit=6
  $region2: #{_lambda_.4} parent=0 // loop_pre_header
    _
  $region3: #{_lambda_.4} parent=0 // loop_header
    %s13 = sphi 0, %s17
    %p14 = scmp.ge.s32.totalorder %s13, 6
    %s20 = sphi 0, %s32
    %s21 = sphi 0, %s28
    %s22 = sphi 0, %s20
    %s23 = sphi 0, %s21
    %s24 = sphi 0, %s22
    %s25 = sphi 0, %s23
    %s37 = sphi 0, %s39
    %s40 = sphi 0, %s37
    %s41 = sphi 0, %s40
    %s57 = sphi 0, %s41
    %s73 = sphi 0, %s75
    %s76 = sphi 0, %s73
    %s77 = sphi 0, %s76
    %s93 = sphi 0, %s77
    %s109 = sphi 0, %s111
    %s112 = sphi 0, %s109
    %s113 = sphi 0, %s112
    %s129 = sphi 0, %s113
    %s133 = sphi 0, %s133
    %s135 = sphi 0, %s133
    %s136 = sphi 0, %s135
    %s150 = sphi 0, %s136
    %s154 = sphi 0, %s154
    %s156 = sphi 0, %s154
    %s157 = sphi 0, %s156
    %s171 = sphi 0, %s157
    %s179 = sphi 0, %s181
    %s182 = sphi 0, %s179
    %s183 = sphi 0, %s182
    %s199 = sphi 0, %s183
    %s205 = sphi 0, %s207
    %s208 = sphi 0, %s205
    %s209 = sphi 0, %s208
    %s225 = sphi 0, %s209
  $region4: #{_lambda_.4} parent=0 // loop_header_branch
    %16 = sbr.rel (%p14) target = $region8
  $region5: #{_lambda_.4} parent=0 // loop_body
    %s18 = ssub.s32 %s13, 1
    %s19 = ssub.s32 %s13, 2
    %s26 = sadd.s32 1, %s21
    %p27 = scmp.ge.s32.totalorder %s26, 2
    %s28 = scalar_select %p27, 0, %s26
    %s29 = sadd.s32 1, %s20
    %s30 = scalar_select %p27, %s29, %s20
    %p31 = scmp.ge.s32.totalorder %s30, 2
    %s32 = scalar_select %p31, 0, %s30
    %s33 = ssub.s32 %s20, %s32
    %s34 = ssub.s32 %s21, %s28
    %s35 = sor.u32 %s33, %s34
    %p36 = scmp.eq.s32.totalorder %s35, 0
    %s38 = sadd.s32 %s37, 1
    %s39 = scalar_select %p36, %s37, %s38
    %p42 = pneg %p36
    %p43 = scmp.eq.s32.totalorder %s13, 3
    %p44 = por %p42, %p43
    %p45 = scmp.ne.s32.totalorder %s37, %s40
    %p46 = scmp.eq.s32.totalorder %s13, 0
    %p47 = por %p45, %p46
    %p48 = scmp.ne.s32.totalorder %s37, %s40
    %p49 = scmp.eq.s32.totalorder %s18, 3
    %p50 = por %p48, %p49
    %p51 = scmp.ne.s32.totalorder %s40, %s41
    %p52 = scmp.eq.s32.totalorder %s18, 0
    %p53 = por %p51, %p52
    %p54 = scmp.ne.s32.totalorder %s40, %s41
    %p55 = scmp.eq.s32.totalorder %s19, 3
    %p56 = por %p54, %p55
    %p58 = scmp.ne.s32.totalorder %s41, %s57
    %p59 = scmp.eq.s32.totalorder %s19, 0
    %p60 = por %p58, %p59
    %s61 = smul.u32 %s21, 4
    %s62 = ssub.s32 %s61, 1
    %p63 = scmp.gt.s32.totalorder %s62, 0
    %s64 = scalar_select %p63, %s62, 0
    %s65 = smul.u32 %s28, 4
    %s66 = ssub.s32 %s65, 1
    %p67 = scmp.gt.s32.totalorder %s66, 0
    %s68 = scalar_select %p67, %s66, 0
    %s69 = ssub.s32 %s20, %s32
    %s70 = ssub.s32 %s64, %s68
    %s71 = sor.u32 %s69, %s70
    %p72 = scmp.eq.s32.totalorder %s71, 0
    %s74 = sadd.s32 %s73, 1
    %s75 = scalar_select %p72, %s73, %s74
    %p78 = pneg %p72
    %p79 = scmp.eq.s32.totalorder %s13, 3
    %p80 = por %p78, %p79
    %p81 = scmp.ne.s32.totalorder %s73, %s76
    %p82 = scmp.eq.s32.totalorder %s13, 0
    %p83 = por %p81, %p82
    %p84 = scmp.ne.s32.totalorder %s73, %s76
    %p85 = scmp.eq.s32.totalorder %s18, 3
    %p86 = por %p84, %p85
    %p87 = scmp.ne.s32.totalorder %s76, %s77
    %p88 = scmp.eq.s32.totalorder %s18, 0
    %p89 = por %p87, %p88
    %p90 = scmp.ne.s32.totalorder %s76, %s77
    %p91 = scmp.eq.s32.totalorder %s19, 3
    %p92 = por %p90, %p91
    %p94 = scmp.ne.s32.totalorder %s77, %s93
    %p95 = scmp.eq.s32.totalorder %s19, 0
    %p96 = por %p94, %p95
    %s97 = sadd.s32 %s21, 1
    %s98 = smul.u32 %s97, 4
    %p99 = scmp.lt.s32.totalorder %s98, 7
    %s100 = scalar_select %p99, %s98, 7
    %s101 = sadd.s32 %s28, 1
    %s102 = smul.u32 %s101, 4
    %p103 = scmp.lt.s32.totalorder %s102, 7
    %s104 = scalar_select %p103, %s102, 7
    %s105 = ssub.s32 %s20, %s32
    %s106 = ssub.s32 %s100, %s104
    %s107 = sor.u32 %s105, %s106
    %p108 = scmp.eq.s32.totalorder %s107, 0
    %s110 = sadd.s32 %s109, 1
    %s111 = scalar_select %p108, %s109, %s110
    %p114 = pneg %p108
    %p115 = scmp.eq.s32.totalorder %s13, 3
    %p116 = por %p114, %p115
    %p117 = scmp.ne.s32.totalorder %s109, %s112
    %p118 = scmp.eq.s32.totalorder %s13, 0
    %p119 = por %p117, %p118
    %p120 = scmp.ne.s32.totalorder %s109, %s112
    %p121 = scmp.eq.s32.totalorder %s18, 3
    %p122 = por %p120, %p121
    %p123 = scmp.ne.s32.totalorder %s112, %s113
    %p124 = scmp.eq.s32.totalorder %s18, 0
    %p125 = por %p123, %p124
    %p126 = scmp.ne.s32.totalorder %s112, %s113
    %p127 = scmp.eq.s32.totalorder %s19, 3
    %p128 = por %p126, %p127
    %p130 = scmp.ne.s32.totalorder %s113, %s129
    %p131 = scmp.eq.s32.totalorder %s19, 0
    %p132 = por %p130, %p131
    %s134 = sadd.s32 %s133, 1
    %p137 = scmp.eq.s32.totalorder %s13, 3
    %p138 = scmp.ne.s32.totalorder %s133, %s135
    %p139 = scmp.eq.s32.totalorder %s13, 0
    %p140 = por %p138, %p139
    %p141 = scmp.ne.s32.totalorder %s133, %s135
    %p142 = scmp.eq.s32.totalorder %s18, 3
    %p143 = por %p141, %p142
    %p144 = scmp.ne.s32.totalorder %s135, %s136
    %p145 = scmp.eq.s32.totalorder %s18, 0
    %p146 = por %p144, %p145
    %p147 = scmp.ne.s32.totalorder %s135, %s136
    %p148 = scmp.eq.s32.totalorder %s19, 3
    %p149 = por %p147, %p148
    %p151 = scmp.ne.s32.totalorder %s136, %s150
    %p152 = scmp.eq.s32.totalorder %s19, 0
    %p153 = por %p151, %p152
    %s155 = sadd.s32 %s154, 1
    %p158 = scmp.eq.s32.totalorder %s13, 3
    %p159 = scmp.ne.s32.totalorder %s154, %s156
    %p160 = scmp.eq.s32.totalorder %s13, 0
    %p161 = por %p159, %p160
    %p162 = scmp.ne.s32.totalorder %s154, %s156
    %p163 = scmp.eq.s32.totalorder %s18, 3
    %p164 = por %p162, %p163
    %p165 = scmp.ne.s32.totalorder %s156, %s157
    %p166 = scmp.eq.s32.totalorder %s18, 0
    %p167 = por %p165, %p166
    %p168 = scmp.ne.s32.totalorder %s156, %s157
    %p169 = scmp.eq.s32.totalorder %s19, 3
    %p170 = por %p168, %p169
    %p172 = scmp.ne.s32.totalorder %s157, %s171
    %p173 = scmp.eq.s32.totalorder %s19, 0
    %p174 = por %p172, %p173
    %s175 = ssub.s32 %s20, %s32
    %s176 = ssub.s32 %s21, %s28
    %s177 = sor.u32 %s175, %s176
    %p178 = scmp.eq.s32.totalorder %s177, 0
    %s180 = sadd.s32 %s179, 1
    %s181 = scalar_select %p178, %s179, %s180
    %p184 = pneg %p178
    %p185 = scmp.eq.s32.totalorder %s13, 3
    %p186 = por %p184, %p185
    %p187 = scmp.ne.s32.totalorder %s179, %s182
    %p188 = scmp.eq.s32.totalorder %s13, 0
    %p189 = por %p187, %p188
    %p190 = scmp.ne.s32.totalorder %s179, %s182
    %p191 = scmp.eq.s32.totalorder %s18, 3
    %p192 = por %p190, %p191
    %p193 = scmp.ne.s32.totalorder %s182, %s183
    %p194 = scmp.eq.s32.totalorder %s18, 0
    %p195 = por %p193, %p194
    %p196 = scmp.ne.s32.totalorder %s182, %s183
    %p197 = scmp.eq.s32.totalorder %s19, 3
    %p198 = por %p196, %p197
    %p200 = scmp.ne.s32.totalorder %s183, %s199
    %p201 = scmp.eq.s32.totalorder %s19, 0
    %p202 = por %p200, %p201
    %s203 = ssub.s32 %s20, %s32
    %p204 = scmp.eq.s32.totalorder %s203, 0
    %s206 = sadd.s32 %s205, 1
    %s207 = scalar_select %p204, %s205, %s206
    %p210 = pneg %p204
    %p211 = scmp.eq.s32.totalorder %s13, 3
    %p212 = por %p210, %p211
    %p213 = scmp.ne.s32.totalorder %s205, %s208
    %p214 = scmp.eq.s32.totalorder %s13, 0
    %p215 = por %p213, %p214
    %p216 = scmp.ne.s32.totalorder %s205, %s208
    %p217 = scmp.eq.s32.totalorder %s18, 3
    %p218 = por %p216, %p217
    %p219 = scmp.ne.s32.totalorder %s208, %s209
    %p220 = scmp.eq.s32.totalorder %s18, 0
    %p221 = por %p219, %p220
    %p222 = scmp.ne.s32.totalorder %s208, %s209
    %p223 = scmp.eq.s32.totalorder %s19, 3
    %p224 = por %p222, %p223
    %p226 = scmp.ne.s32.totalorder %s209, %s225
    %p227 = scmp.eq.s32.totalorder %s19, 0
    %p228 = por %p226, %p227
    %p229 = scmp.le.s32.totalorder 1, %s13
    %p230 = scmp.lt.s32.totalorder %s13, 5
    %p231 = pnand %p229, %p230
    %p232 = pneg %p231
    // Predicated region
    $region9: #{_lambda_.4} parent=5 // pred_check
      _
    $region10: #{_lambda_.4} parent=5 // pred_check_branch
      %234 = sbr.rel (%p231) target = $region12
    $region11: #{_lambda_.4} parent=5 // pred_region
      %s235 = ssub.s32 %s13, 1
      // Predicated region
      $region13: #{_lambda_.4} parent=11 // pred_check
        %p236 = pneg %p146
      $region14: #{_lambda_.4} parent=11 // pred_check_branch
        %238 = sbr.rel (%p236) target = $region16
      $region15: #{_lambda_.4} parent=11 // pred_region
        _
      $region16: #{_lambda_.4} parent=11 // pred_fallthru
        _
      // Predicated region
      $region17: #{_lambda_.4} parent=11 // pred_check
        %p239 = pneg %p167
      $region18: #{_lambda_.4} parent=11 // pred_check_branch
        %241 = sbr.rel (%p239) target = $region20
      $region19: #{_lambda_.4} parent=11 // pred_region
        _
      $region20: #{_lambda_.4} parent=11 // pred_fallthru
        _
    $region12: #{_lambda_.4} parent=5 // pred_fallthru
      _
    %p242 = scmp.lt.s32.totalorder %s13, 4
    // Predicated region
    $region21: #{_lambda_.4} parent=5 // pred_check
      %p243 = pneg %p242
    $region22: #{_lambda_.4} parent=5 // pred_check_branch
      %245 = sbr.rel (%p243) target = $region24
    $region23: #{_lambda_.4} parent=5 // pred_region
      // Predicated region
      $region25: #{_lambda_.4} parent=23 // pred_check
        %p246 = pneg %p47
      $region26: #{_lambda_.4} parent=23 // pred_check_branch
        %248 = sbr.rel (%p246) target = $region28
      $region27: #{_lambda_.4} parent=23 // pred_region
        %s249 = smul.u32 4, %s21
        %p250 = scmp.lt.s32.totalorder %s20, 1
        %s251 = scalar_select %p250, %s20, 1
        %p252 = scmp.lt.s32.totalorder %s249, 7
        %s253 = scalar_select %p252, %s249, 7
        %s254 = smul.addr %s251, 8
        %s255 = sadd.s32 %s253, %s254
        %s256 = smul.addr %s255, 4
        %s257 = scalar_lea.vmem %s0, %s256
        %s258 = smul.u32 4, %s21
      $region28: #{_lambda_.4} parent=23 // pred_fallthru
        _
      // Predicated region
      $region29: #{_lambda_.4} parent=23 // pred_check
        %p259 = pneg %p83
      $region30: #{_lambda_.4} parent=23 // pred_check_branch
        %261 = sbr.rel (%p259) target = $region32
      $region31: #{_lambda_.4} parent=23 // pred_region
        %s262 = smul.u32 %s21, 4
        %s263 = ssub.s32 %s262, 1
        %p264 = scmp.gt.s32.totalorder %s263, 0
        %s265 = scalar_select %p264, %s263, 0
        %p266 = scmp.lt.s32.totalorder %s20, 1
        %s267 = scalar_select %p266, %s20, 1
        %p268 = scmp.lt.s32.totalorder %s265, 7
        %s269 = scalar_select %p268, %s265, 7
        %s270 = smul.addr %s267, 8
        %s271 = sadd.s32 %s269, %s270
        %s272 = smul.addr %s271, 4
        %s273 = scalar_lea.vmem %s1, %s272
        %s274 = smul.u32 %s21, 4
        %s275 = ssub.s32 %s274, 1
        %p276 = scmp.gt.s32.totalorder %s275, 0
        %s277 = scalar_select %p276, %s275, 0
      $region32: #{_lambda_.4} parent=23 // pred_fallthru
        _
      // Predicated region
      $region33: #{_lambda_.4} parent=23 // pred_check
        %p278 = pneg %p119
      $region34: #{_lambda_.4} parent=23 // pred_check_branch
        %280 = sbr.rel (%p278) target = $region36
      $region35: #{_lambda_.4} parent=23 // pred_region
        %s281 = sadd.s32 %s21, 1
        %s282 = smul.u32 %s281, 4
        %p283 = scmp.lt.s32.totalorder %s282, 7
        %s284 = scalar_select %p283, %s282, 7
        %p285 = scmp.lt.s32.totalorder %s20, 1
        %s286 = scalar_select %p285, %s20, 1
        %p287 = scmp.lt.s32.totalorder %s284, 7
        %s288 = scalar_select %p287, %s284, 7
        %s289 = smul.addr %s286, 8
        %s290 = sadd.s32 %s288, %s289
        %s291 = smul.addr %s290, 4
        %s292 = scalar_lea.vmem %s2, %s291
        %s293 = sadd.s32 %s21, 1
        %s294 = smul.u32 %s293, 4
        %p295 = scmp.lt.s32.totalorder %s294, 7
        %s296 = scalar_select %p295, %s294, 7
      $region36: #{_lambda_.4} parent=23 // pred_fallthru
        _
    $region24: #{_lambda_.4} parent=5 // pred_fallthru
      _
    %p297 = scmp.le.s32.totalorder 1, %s13
    %p298 = scmp.lt.s32.totalorder %s13, 5
    %p299 = pnand %p297, %p298
    %p300 = pneg %p299
    // Predicated region
    $region37: #{_lambda_.4} parent=5 // pred_check
      _
    $region38: #{_lambda_.4} parent=5 // pred_check_branch
      %302 = sbr.rel (%p299) target = $region40
    $region39: #{_lambda_.4} parent=5 // pred_region
      %s303 = ssub.s32 %s13, 1
      %s304 = smul.u32 4, %s23
      %p305 = scmp.lt.s32.totalorder %s22, 1
      %s306 = scalar_select %p305, %s22, 1
      %p307 = scmp.lt.s32.totalorder %s304, 7
      %s308 = scalar_select %p307, %s304, 7
      %s309 = smul.addr %s306, 8
      %s310 = sadd.s32 %s308, %s309
      %s311 = smul.addr %s310, 4
      %s312 = scalar_lea.vmem %s0, %s311
      %p313 = pneg %p53
      %p314 = pneg %p50
      %s315 = smul.u32 %s23, 4
      %s316 = ssub.s32 %s315, 1
      %p317 = scmp.gt.s32.totalorder %s316, 0
      %s318 = scalar_select %p317, %s316, 0
      %p319 = scmp.lt.s32.totalorder %s22, 1
      %s320 = scalar_select %p319, %s22, 1
      %p321 = scmp.lt.s32.totalorder %s318, 7
      %s322 = scalar_select %p321, %s318, 7
      %s323 = smul.addr %s320, 8
      %s324 = sadd.s32 %s322, %s323
      %s325 = smul.addr %s324, 4
      %s326 = scalar_lea.vmem %s1, %s325
      %p327 = pneg %p89
      %p328 = pneg %p86
      %s329 = sadd.s32 %s23, 1
      %s330 = smul.u32 %s329, 4
      %p331 = scmp.lt.s32.totalorder %s330, 7
      %s332 = scalar_select %p331, %s330, 7
      %p333 = scmp.lt.s32.totalorder %s22, 1
      %s334 = scalar_select %p333, %s22, 1
      %p335 = scmp.lt.s32.totalorder %s332, 7
      %s336 = scalar_select %p335, %s332, 7
      %s337 = smul.addr %s334, 8
      %s338 = sadd.s32 %s336, %s337
      %s339 = smul.addr %s338, 4
      %s340 = scalar_lea.vmem %s2, %s339
      %p341 = pneg %p125
      %p342 = pneg %p122
      %p343 = pneg %p146
      %p344 = pneg %p143
      %p345 = pneg %p167
      %p346 = pneg %p164
      %p347 = pneg %p195
      %p348 = pneg %p192
      %s349 = smul.u32 4, %s23
      %p350 = scmp.lt.s32.totalorder %s22, 1
      %s351 = scalar_select %p350, %s22, 1
      %p352 = scmp.lt.s32.totalorder %s349, 7
      %s353 = scalar_select %p352, %s349, 7
      %s354 = smul.addr %s351, 8
      %s355 = sadd.s32 %s353, %s354
      %s356 = smul.addr %s355, 4
      %s357 = scalar_lea.vmem %s5, %s356
      %p358 = pneg %p221
      %p359 = pneg %p218
      %p360 = scmp.lt.s32.totalorder %s22, 1
      %s361 = scalar_select %p360, %s22, 1
      %s362 = smul.addr %s361, 2
      %s363 = scalar_lea.vmem %s6, %s362
      %s364 = smul.u32 4, %s23
      %p365 = scmp.lt.s32.totalorder %s22, 1
      %s366 = scalar_select %p365, %s22, 1
      %p367 = scmp.lt.s32.totalorder %s364, 7
      %s368 = scalar_select %p367, %s364, 7
      %s369 = smul.addr %s366, 8
      %s370 = sadd.s32 %s368, %s369
      %s371 = smul.addr %s370, 4
      %s372 = scalar_lea.vmem %s0, %s371
      %s373 = smul.u32 4, %s23
      %s374 = smul.u32 %s23, 4
      %s375 = ssub.s32 %s374, 1
      %p376 = scmp.gt.s32.totalorder %s375, 0
      %s377 = scalar_select %p376, %s375, 0
      %p378 = scmp.lt.s32.totalorder %s22, 1
      %s379 = scalar_select %p378, %s22, 1
      %p380 = scmp.lt.s32.totalorder %s377, 7
      %s381 = scalar_select %p380, %s377, 7
      %s382 = smul.addr %s379, 8
      %s383 = sadd.s32 %s381, %s382
      %s384 = smul.addr %s383, 4
      %s385 = scalar_lea.vmem %s1, %s384
      %s386 = smul.u32 %s23, 4
      %s387 = ssub.s32 %s386, 1
      %p388 = scmp.gt.s32.totalorder %s387, 0
      %s389 = scalar_select %p388, %s387, 0
      %s390 = sadd.s32 %s23, 1
      %s391 = smul.u32 %s390, 4
      %p392 = scmp.lt.s32.totalorder %s391, 7
      %s393 = scalar_select %p392, %s391, 7
      %p394 = scmp.lt.s32.totalorder %s22, 1
      %s395 = scalar_select %p394, %s22, 1
      %p396 = scmp.lt.s32.totalorder %s393, 7
      %s397 = scalar_select %p396, %s393, 7
      %s398 = smul.addr %s395, 8
      %s399 = sadd.s32 %s397, %s398
      %s400 = smul.addr %s399, 4
      %s401 = scalar_lea.vmem %s2, %s400
      %s402 = sadd.s32 %s23, 1
      %s403 = smul.u32 %s402, 4
      %p404 = scmp.lt.s32.totalorder %s403, 7
      %s405 = scalar_select %p404, %s403, 7
      %s406 = smul.u32 4, %s23
      %p407 = scmp.lt.s32.totalorder %s22, 1
      %s408 = scalar_select %p407, %s22, 1
      %p409 = scmp.lt.s32.totalorder %s406, 7
      %s410 = scalar_select %p409, %s406, 7
      %s411 = smul.addr %s408, 8
      %s412 = sadd.s32 %s410, %s411
      %s413 = smul.addr %s412, 4
      %s414 = scalar_lea.vmem %s5, %s413
      %s415 = smul.u32 4, %s23
      %p416 = scmp.lt.s32.totalorder %s22, 1
      %s417 = scalar_select %p416, %s22, 1
      %s418 = smul.addr %s417, 2
      %s419 = scalar_lea.vmem %s6, %s418
      %p421 = scmp.eq.s32.totalorder %s23, 0
      // Predicated region
      $region41: #{_lambda_.4} parent=39 // pred_check
        %p422 = pneg %p421
      $region42: #{_lambda_.4} parent=39 // pred_check_branch
        %424 = sbr.rel (%p422) target = $region44
      $region43: #{_lambda_.4} parent=39 // pred_region
        %425 = vst [vmem:[#allocation2] sm:$0xf] 0
        %426 = vst [vmem:[#allocation2 + $0x4] sm:$0x1] 0
        %427 = vst [vmem:[#allocation2 + $0x8] sm:$0xf] 0
        %428 = vst [vmem:[#allocation2 + $0xc] sm:$0x1] 0
        %429 = vst [vmem:[#allocation2 + $0x10] sm:$0xf] 0
        %430 = vst [vmem:[#allocation2 + $0x14] sm:$0x1] 0
        %431 = vst [vmem:[#allocation2 + $0x18] sm:$0xf] 0
        %432 = vst [vmem:[#allocation2 + $0x1c] sm:$0x1] 0
        %433 = vst [vmem:[#allocation2 + $0x20] sm:$0xf] 0
        %434 = vst [vmem:[#allocation2 + $0x24] sm:$0x1] 0
        %435 = vst [vmem:[#allocation2 + $0x28] sm:$0xf] 0
        %436 = vst [vmem:[#allocation2 + $0x2c] sm:$0x1] 0
        %437 = vst [vmem:[%s419] sm:$0x3] 0.0
      $region44: #{_lambda_.4} parent=39 // pred_fallthru
        _
      %v438 = vld [vmem:[%s3] sm:$0x1]
      %v439 = vld [vmem:[%s3 + $0x1] sm:$0x1]
      %v440 = vld [vmem:[%s372] sm:$0xf]
      %v441 = vld [vmem:[%s372 + $0x4] sm:$0xf]
      %v442 = vld [vmem:[%s372 + $0x8] sm:$0xf]
      %v443 = vld [vmem:[%s372 + $0xc] sm:$0xf]
      %v444 = vunpack.c.l.bf16 %v440
      %v445 = vunpack.c.l.bf16 %v441
      %v446 = vunpack.c.l.bf16 %v442
      %v447 = vunpack.c.l.bf16 %v443
      %v448 = vperm.slane %v438, 0
      %v449 = vmul.f32 %v444, %v448
      %v450 = vmul.f32 %v445, %v448
      %v451 = vmul.f32 %v446, %v448
      %v452 = vmul.f32 %v447, %v448
      %v453 = vperm.slane %v439, 0
      %v454 = vadd.f32 %v449, %v453
      %v455 = vadd.f32 %v450, %v453
      %v456 = vadd.f32 %v451, %v453
      %v457 = vadd.f32 %v452, %v453
      %v458 = vmax.f32 %v454, 0.0
      %v459 = vmax.f32 %v455, 0.0
      %v460 = vmax.f32 %v456, 0.0
      %v461 = vmax.f32 %v457, 0.0
      %v462 = vpack.c.bf16 %v458, %v458
      %v463 = vpack.c.bf16 %v459, %v459
      %v464 = vpack.c.bf16 %v460, %v460
      %v465 = vpack.c.bf16 %v461, %v461
      %v467 = vshrl.u32 %v462, 16
      %v469 = vrot.slane %v467, 7
      %v470 = vshll.u32 %v462, 16
      %v472 = vor.u32 %v469, %v470
      %v473 = vrot.slane %v469, 4
      %v475 = vshrl.u32 %v463, 16
      %v477 = vrot.slane %v475, 7
      %v478 = vshll.u32 %v463, 16
      %v480 = vor.u32 %v477, %v478
      %v481 = vrot.slane %v477, 4
      %v483 = vshrl.u32 %v464, 16
      %v485 = vrot.slane %v483, 7
      %v486 = vshll.u32 %v464, 16
      %v488 = vor.u32 %v485, %v486
      %v489 = vrot.slane %v485, 4
      %v491 = vshrl.u32 %v465, 16
      %v493 = vrot.slane %v491, 7
      %v494 = vshll.u32 %v465, 16
      %v496 = vor.u32 %v493, %v494
      %v497 = vrot.slane %v493, 4
      %s506 = scalar_lea.vmem [#allocation2], 8
      %vm507 = vcmask 1043456
      %vm508 = vsmask.f32 7938
      %vm509 = vmand %vm507, %vm508
      %v510 = vld [vmem:[%s506] sm:$0xf]
      %v511 = vsel %vm509, %v472, %v510
      %512 = vst [vmem:[%s506] sm:$0xf] %v511
      %vm513 = vcmask 1040384
      %vm514 = vsmask.f32 256
      %vm515 = vmand %vm513, %vm514
      %v516 = vld [vmem:[%s506 + $0x4] sm:$0x1]
      %v517 = vsel %vm515, %v473, %v516
      %518 = vst [vmem:[%s506 + $0x4] sm:$0x1] %v517
      %v519 = vld [vmem:[%s506 + $0x8] sm:$0xf]
      %v520 = vsel %vm509, %v480, %v519
      %521 = vst [vmem:[%s506 + $0x8] sm:$0xf] %v520
      %v522 = vld [vmem:[%s506 + $0xc] sm:$0x1]
      %v523 = vsel %vm515, %v481, %v522
      %524 = vst [vmem:[%s506 + $0xc] sm:$0x1] %v523
      %v525 = vld [vmem:[%s506 + $0x10] sm:$0xf]
      %v526 = vsel %vm509, %v488, %v525
      %527 = vst [vmem:[%s506 + $0x10] sm:$0xf] %v526
      %v528 = vld [vmem:[%s506 + $0x14] sm:$0x1]
      %v529 = vsel %vm515, %v489, %v528
      %530 = vst [vmem:[%s506 + $0x14] sm:$0x1] %v529
      %v531 = vld [vmem:[%s506 + $0x18] sm:$0xf]
      %v532 = vsel %vm509, %v496, %v531
      %533 = vst [vmem:[%s506 + $0x18] sm:$0xf] %v532
      %v534 = vld [vmem:[%s506 + $0x1c] sm:$0x1]
      %v535 = vsel %vm515, %v497, %v534
      %536 = vst [vmem:[%s506 + $0x1c] sm:$0x1] %v535
      %v537 = vld [vmem:[%s385] sm:$0xf]
      %v538 = vunpack.c.l.bf16 %v537
      %v539 = vmul.f32 %v538, %v448
      %v540 = vadd.f32 %v539, %v453
      %v541 = vmax.f32 %v540, 0.0
      %v542 = vld [vmem:[%s401] sm:$0xf]
      %v543 = vunpack.c.l.bf16 %v542
      %v544 = vmul.f32 %v543, %v448
      %v545 = vadd.f32 %v544, %v453
      %v546 = vmax.f32 %v545, 0.0
      %p547 = scmp.gt.s32.totalorder %s23, 0
      %s548 = scalar_select %p547, 1, 0
      %v549 = vstv %s548
      %vm550 = vcmp.eq.s32.totalorder %v549, 1
      %v551 = vsel %vm550, %v541, 0.0
      %v552 = vpack.c.bf16 %v551, %v551
      %v554 = vshrl.u32 %v552, 16
      %v556 = vrot.slane %v554, 7
      %v557 = vshll.u32 %v552, 16
      %v559 = vor.u32 %v556, %v557
      %v560 = vrot.slane %v556, 4
      %v563 = vld [vmem:[#allocation2] sm:$0xf]
      %v564 = vsel %vm509, %v559, %v563
      %565 = vst [vmem:[#allocation2] sm:$0xf] %v564
      %v566 = vld [vmem:[#allocation2 + $0x4] sm:$0x1]
      %v567 = vsel %vm515, %v560, %v566
      %568 = vst [vmem:[#allocation2 + $0x4] sm:$0x1] %v567
      %p569 = scmp.lt.s32.totalorder %s23, 1
      %s570 = scalar_select %p569, 1, 0
      %v571 = vstv %s570
      %vm572 = vcmp.eq.s32.totalorder %v571, 1
      %v573 = vsel %vm572, %v546, 0.0
      %v574 = vpack.c.bf16 %v573, %v573
      %v576 = vshrl.u32 %v574, 16
      %v578 = vrot.slane %v576, 7
      %v579 = vshll.u32 %v574, 16
      %v581 = vor.u32 %v578, %v579
      %v582 = vrot.slane %v578, 4
      %s585 = scalar_lea.vmem [#allocation2], 40
      %v586 = vld [vmem:[%s585] sm:$0xf]
      %v587 = vsel %vm509, %v581, %v586
      %588 = vst [vmem:[%s585] sm:$0xf] %v587
      %v589 = vld [vmem:[%s585 + $0x4] sm:$0x1]
      %v590 = vsel %vm515, %v582, %v589
      %591 = vst [vmem:[%s585 + $0x4] sm:$0x1] %v590
      %v592 = vld [vmem:[#allocation2] sm:$0xf]
      %v593 = vld [vmem:[#allocation2 + $0x8] sm:$0xf]
      %v594 = vld [vmem:[#allocation2 + $0x10] sm:$0xf]
      %v595 = vld [vmem:[#allocation2 + $0x18] sm:$0xf]
      %v596 = vld [vmem:[%s4] sm:$0xf]
      %v597 = vld [vmem:[%s4 + $0x4] sm:$0xf]
      %v598 = vld [vmem:[%s4 + $0x8] sm:$0xf]
      %v599 = vld [vmem:[%s4 + $0xc] sm:$0xf]
      %v600 = vld [vmem:[%s4 + $0x10] sm:$0xf]
      %v601 = vld [vmem:[%s4 + $0x14] sm:$0xf]
      %v602 = vld [vmem:[%s4 + $0x18] sm:$0xf]
      %v603 = vld [vmem:[%s4 + $0x1c] sm:$0xf]
      %v604 = vld [vmem:[%s4 + $0x20] sm:$0xf]
      %v605 = vld [vmem:[%s4 + $0x24] sm:$0xf]
      %v606 = vld [vmem:[%s4 + $0x28] sm:$0xf]
      %v607 = vld [vmem:[%s4 + $0x2c] sm:$0xf]
      %v608 = vld [vmem:[%s4 + $0x30] sm:$0xf]
      %v609 = vld [vmem:[%s4 + $0x34] sm:$0xf]
      %v610 = vld [vmem:[%s4 + $0x38] sm:$0xf]
      %v611 = vld [vmem:[%s4 + $0x3c] sm:$0xf]
      %v612 = vld [vmem:[#allocation2 + $0x4] sm:$0x1]
      %v613 = vld [vmem:[#allocation2 + $0xc] sm:$0x1]
      %v614 = vld [vmem:[#allocation2 + $0x14] sm:$0x1]
      %v615 = vld [vmem:[#allocation2 + $0x1c] sm:$0x1]
      %vm616 = vsmask.f32 3328
      %vm617 = vsmask.f32 7440
      %vm618 = vmor %vm616, %vm617
      %v620 = vshrl.u32 %v592, 16
      %v622 = vrot.slane %v620, 4
      %v623 = vshll.u32 %v592, 16
      %v625 = vrot.slane %v623, 5
      %v626 = vor.u32 %v622, %v625
      %v627 = vrot.slane %v626, 4
      %v629 = vshll.u32 %v612, 16
      %v631 = vrot.slane %v629, 5
      %v632 = vsel %vm618, %v627, %v631
      %v634 = vshrl.u32 %v593, 16
      %v636 = vrot.slane %v634, 4
      %v637 = vshll.u32 %v593, 16
      %v639 = vrot.slane %v637, 5
      %v640 = vor.u32 %v636, %v639
      %v641 = vrot.slane %v640, 4
      %v643 = vshll.u32 %v613, 16
      %v645 = vrot.slane %v643, 5
      %v646 = vsel %vm618, %v641, %v645
      %v648 = vshrl.u32 %v594, 16
      %v650 = vrot.slane %v648, 4
      %v651 = vshll.u32 %v594, 16
      %v653 = vrot.slane %v651, 5
      %v654 = vor.u32 %v650, %v653
      %v655 = vrot.slane %v654, 4
      %v657 = vshll.u32 %v614, 16
      %v659 = vrot.slane %v657, 5
      %v660 = vsel %vm618, %v655, %v659
      %v662 = vshrl.u32 %v595, 16
      %v664 = vrot.slane %v662, 4
      %v665 = vshll.u32 %v595, 16
      %v667 = vrot.slane %v665, 5
      %v668 = vor.u32 %v664, %v667
      %v669 = vrot.slane %v668, 4
      %v671 = vshll.u32 %v615, 16
      %v673 = vrot.slane %v671, 5
      %v674 = vsel %vm618, %v669, %v673
      %v675 = vld [vmem:[%s4 + $0x40] sm:$0xf]
      %v676 = vld [vmem:[%s4 + $0x44] sm:$0xf]
      %v677 = vld [vmem:[%s4 + $0x48] sm:$0xf]
      %v678 = vld [vmem:[%s4 + $0x4c] sm:$0xf]
      %v679 = vld [vmem:[%s4 + $0x50] sm:$0xf]
      %v680 = vld [vmem:[%s4 + $0x54] sm:$0xf]
      %v681 = vld [vmem:[%s4 + $0x58] sm:$0xf]
      %v682 = vld [vmem:[%s4 + $0x5c] sm:$0xf]
      %v683 = vld [vmem:[%s4 + $0x60] sm:$0xf]
      %v684 = vld [vmem:[%s4 + $0x64] sm:$0xf]
      %v685 = vld [vmem:[%s4 + $0x68] sm:$0xf]
      %v686 = vld [vmem:[%s4 + $0x6c] sm:$0xf]
      %v687 = vld [vmem:[%s4 + $0x70] sm:$0xf]
      %v688 = vld [vmem:[%s4 + $0x74] sm:$0xf]
      %v689 = vld [vmem:[%s4 + $0x78] sm:$0xf]
      %v690 = vld [vmem:[%s4 + $0x7c] sm:$0xf]
      %v691 = vunpack.c.l.b16 %v632
      %v692 = vunpack.c.l.b16 %v646
      %v693 = vunpack.c.l.b16 %v660
      %v694 = vunpack.c.l.b16 %v674
      %v695 = vpack.c.b16 %v692, %v691
      %v696 = vpack.c.b16 %v694, %v693
      %v715 = vunpack.c.l.b16 %v675
      %v716 = vunpack.c.l.b16 %v676
      %v717 = vunpack.c.l.b16 %v677
      %v718 = vunpack.c.l.b16 %v678
      %v719 = vunpack.c.l.b16 %v679
      %v720 = vunpack.c.l.b16 %v680
      %v721 = vunpack.c.l.b16 %v681
      %v722 = vunpack.c.l.b16 %v682
      %v723 = vunpack.c.l.b16 %v683
      %v724 = vunpack.c.l.b16 %v684
      %v725 = vunpack.c.l.b16 %v685
      %v726 = vunpack.c.l.b16 %v686
      %v727 = vunpack.c.l.b16 %v687
      %v728 = vunpack.c.l.b16 %v688
      %v729 = vunpack.c.l.b16 %v689
      %v730 = vunpack.c.l.b16 %v690
      %v731 = vpack.c.b16 %v716, %v715
      %v732 = vpack.c.b16 %v718, %v717
      %v733 = vpack.c.b16 %v720, %v719
      %v734 = vpack.c.b16 %v722, %v721
      %v735 = vpack.c.b16 %v724, %v723
      %v736 = vpack.c.b16 %v726, %v725
      %v737 = vpack.c.b16 %v728, %v727
      %v738 = vpack.c.b16 %v730, %v729
      %747 = vmatpush.bf16.msra.mxu0 %v738
      %748 = vmatpush.bf16.msra.mxu0 %v737
      %749 = vmatpush.bf16.msra.mxu0 %v736
      %750 = vmatpush.bf16.msra.mxu0 %v735
      %751 = vmatpush.bf16.msra.mxu0 %v734
      %752 = vmatpush.bf16.msra.mxu0 %v733
      %753 = vmatpush.bf16.msra.mxu0 %v732
      %754 = vmatpush.bf16.msra.mxu0 %v731
      %755 = vmatmul.bf16.gmra.mxu0 %v695
      %v756 = vpop.f32.mrf.mxu0
      %v757 = vadd.f32 0.0, %v756
      %v758 = vpop.f32.mrf.mxu0
      %v759 = vadd.f32 0.0, %v758
      %760 = vmatmul.bf16.gmra.mxu0 %v696
      %v761 = vpop.f32.mrf.mxu0
      %v762 = vadd.f32 0.0, %v761
      %v763 = vpop.f32.mrf.mxu0
      %v764 = vadd.f32 0.0, %v763
      %765 = vdwg.mxu0
      %v770 = vunpack.c.l.b16 %v592
      %v771 = vunpack.c.l.b16 %v593
      %v772 = vunpack.c.l.b16 %v594
      %v773 = vunpack.c.l.b16 %v595
      %v774 = vpack.c.b16 %v771, %v770
      %v775 = vpack.c.b16 %v773, %v772
      %v794 = vunpack.c.l.b16 %v596
      %v795 = vunpack.c.l.b16 %v597
      %v796 = vunpack.c.l.b16 %v598
      %v797 = vunpack.c.l.b16 %v599
      %v798 = vunpack.c.l.b16 %v600
      %v799 = vunpack.c.l.b16 %v601
      %v800 = vunpack.c.l.b16 %v602
      %v801 = vunpack.c.l.b16 %v603
      %v802 = vunpack.c.l.b16 %v604
      %v803 = vunpack.c.l.b16 %v605
      %v804 = vunpack.c.l.b16 %v606
      %v805 = vunpack.c.l.b16 %v607
      %v806 = vunpack.c.l.b16 %v608
      %v807 = vunpack.c.l.b16 %v609
      %v808 = vunpack.c.l.b16 %v610
      %v809 = vunpack.c.l.b16 %v611
      %v810 = vpack.c.b16 %v795, %v794
      %v811 = vpack.c.b16 %v797, %v796
      %v812 = vpack.c.b16 %v799, %v798
      %v813 = vpack.c.b16 %v801, %v800
      %v814 = vpack.c.b16 %v803, %v802
      %v815 = vpack.c.b16 %v805, %v804
      %v816 = vpack.c.b16 %v807, %v806
      %v817 = vpack.c.b16 %v809, %v808
      %826 = vmatpush.bf16.msra.mxu0 %v817
      %827 = vmatpush.bf16.msra.mxu0 %v816
      %828 = vmatpush.bf16.msra.mxu0 %v815
      %829 = vmatpush.bf16.msra.mxu0 %v814
      %830 = vmatpush.bf16.msra.mxu0 %v813
      %831 = vmatpush.bf16.msra.mxu0 %v812
      %832 = vmatpush.bf16.msra.mxu0 %v811
      %833 = vmatpush.bf16.msra.mxu0 %v810
      %834 = vmatmul.bf16.gmra.mxu0 %v774
      %v835 = vpop.f32.mrf.mxu0
      %v836 = vadd.f32 %v757, %v835
      %v837 = vpop.f32.mrf.mxu0
      %v838 = vadd.f32 %v759, %v837
      %839 = vmatmul.bf16.gmra.mxu0 %v775
      %v840 = vpop.f32.mrf.mxu0
      %v841 = vadd.f32 %v762, %v840
      %v842 = vpop.f32.mrf.mxu0
      %v843 = vadd.f32 %v764, %v842
      %844 = vdwg.mxu0
      %v845 = vld [vmem:[#allocation2] sm:$0xe]
      %v846 = vld [vmem:[#allocation2 + $0x8] sm:$0xe]
      %v847 = vld [vmem:[#allocation2 + $0x10] sm:$0xe]
      %v848 = vld [vmem:[#allocation2 + $0x18] sm:$0xe]
      %vm857 = vcmask 1042432
      %vm858 = vcmask 1046532
      %vm859 = vmor %vm857, %vm858
      %v860 = vrot.slane %v845, 5
      %v861 = vrot.slane %v860, 4
      %v862 = vrot.slane %v612, 5
      %v863 = vsel %vm859, %v861, %v862
      %v864 = vrot.slane %v846, 5
      %v865 = vrot.slane %v864, 4
      %v866 = vrot.slane %v613, 5
      %v867 = vsel %vm859, %v865, %v866
      %v868 = vrot.slane %v847, 5
      %v869 = vrot.slane %v868, 4
      %v870 = vrot.slane %v614, 5
      %v871 = vsel %vm859, %v869, %v870
      %v872 = vrot.slane %v848, 5
      %v873 = vrot.slane %v872, 4
      %v874 = vrot.slane %v615, 5
      %v875 = vsel %vm859, %v873, %v874
      %v876 = vld [vmem:[%s4 + $0x80] sm:$0xf]
      %v877 = vld [vmem:[%s4 + $0x84] sm:$0xf]
      %v878 = vld [vmem:[%s4 + $0x88] sm:$0xf]
      %v879 = vld [vmem:[%s4 + $0x8c] sm:$0xf]
      %v880 = vld [vmem:[%s4 + $0x90] sm:$0xf]
      %v881 = vld [vmem:[%s4 + $0x94] sm:$0xf]
      %v882 = vld [vmem:[%s4 + $0x98] sm:$0xf]
      %v883 = vld [vmem:[%s4 + $0x9c] sm:$0xf]
      %v884 = vld [vmem:[%s4 + $0xa0] sm:$0xf]
      %v885 = vld [vmem:[%s4 + $0xa4] sm:$0xf]
      %v886 = vld [vmem:[%s4 + $0xa8] sm:$0xf]
      %v887 = vld [vmem:[%s4 + $0xac] sm:$0xf]
      %v888 = vld [vmem:[%s4 + $0xb0] sm:$0xf]
      %v889 = vld [vmem:[%s4 + $0xb4] sm:$0xf]
      %v890 = vld [vmem:[%s4 + $0xb8] sm:$0xf]
      %v891 = vld [vmem:[%s4 + $0xbc] sm:$0xf]
      %v892 = vunpack.c.l.b16 %v863
      %v893 = vunpack.c.l.b16 %v867
      %v894 = vunpack.c.l.b16 %v871
      %v895 = vunpack.c.l.b16 %v875
      %v896 = vpack.c.b16 %v893, %v892
      %v897 = vpack.c.b16 %v895, %v894
      %v916 = vunpack.c.l.b16 %v876
      %v917 = vunpack.c.l.b16 %v877
      %v918 = vunpack.c.l.b16 %v878
      %v919 = vunpack.c.l.b16 %v879
      %v920 = vunpack.c.l.b16 %v880
      %v921 = vunpack.c.l.b16 %v881
      %v922 = vunpack.c.l.b16 %v882
      %v923 = vunpack.c.l.b16 %v883
      %v924 = vunpack.c.l.b16 %v884
      %v925 = vunpack.c.l.b16 %v885
      %v926 = vunpack.c.l.b16 %v886
      %v927 = vunpack.c.l.b16 %v887
      %v928 = vunpack.c.l.b16 %v888
      %v929 = vunpack.c.l.b16 %v889
      %v930 = vunpack.c.l.b16 %v890
      %v931 = vunpack.c.l.b16 %v891
      %v932 = vpack.c.b16 %v917, %v916
      %v933 = vpack.c.b16 %v919, %v918
      %v934 = vpack.c.b16 %v921, %v920
      %v935 = vpack.c.b16 %v923, %v922
      %v936 = vpack.c.b16 %v925, %v924
      %v937 = vpack.c.b16 %v927, %v926
      %v938 = vpack.c.b16 %v929, %v928
      %v939 = vpack.c.b16 %v931, %v930
      %948 = vmatpush.bf16.msra.mxu0 %v939
      %949 = vmatpush.bf16.msra.mxu0 %v938
      %950 = vmatpush.bf16.msra.mxu0 %v937
      %951 = vmatpush.bf16.msra.mxu0 %v936
      %952 = vmatpush.bf16.msra.mxu0 %v935
      %953 = vmatpush.bf16.msra.mxu0 %v934
      %954 = vmatpush.bf16.msra.mxu0 %v933
      %955 = vmatpush.bf16.msra.mxu0 %v932
      %956 = vmatmul.bf16.gmra.mxu0 %v896
      %v957 = vpop.f32.mrf.mxu0
      %v958 = vadd.f32 0.0, %v957
      %v959 = vpop.f32.mrf.mxu0
      %v960 = vadd.f32 0.0, %v959
      %961 = vmatmul.bf16.gmra.mxu0 %v897
      %v962 = vpop.f32.mrf.mxu0
      %v963 = vadd.f32 0.0, %v962
      %v964 = vpop.f32.mrf.mxu0
      %v965 = vadd.f32 0.0, %v964
      %966 = vdwg.mxu0
      %v967 = vadd.f32 %v836, %v958
      %v968 = vadd.f32 %v838, %v960
      %v969 = vadd.f32 %v841, %v963
      %v970 = vadd.f32 %v843, %v965
      %v971 = vld [vmem:[%s506] sm:$0xf]
      %v972 = vld [vmem:[%s506 + $0x8] sm:$0xf]
      %v973 = vld [vmem:[%s506 + $0x10] sm:$0xf]
      %v974 = vld [vmem:[%s506 + $0x18] sm:$0xf]
      %v975 = vld [vmem:[%s4 + $0xc0] sm:$0xf]
      %v976 = vld [vmem:[%s4 + $0xc4] sm:$0xf]
      %v977 = vld [vmem:[%s4 + $0xc8] sm:$0xf]
      %v978 = vld [vmem:[%s4 + $0xcc] sm:$0xf]
      %v979 = vld [vmem:[%s4 + $0xd0] sm:$0xf]
      %v980 = vld [vmem:[%s4 + $0xd4] sm:$0xf]
      %v981 = vld [vmem:[%s4 + $0xd8] sm:$0xf]
      %v982 = vld [vmem:[%s4 + $0xdc] sm:$0xf]
      %v983 = vld [vmem:[%s4 + $0xe0] sm:$0xf]
      %v984 = vld [vmem:[%s4 + $0xe4] sm:$0xf]
      %v985 = vld [vmem:[%s4 + $0xe8] sm:$0xf]
      %v986 = vld [vmem:[%s4 + $0xec] sm:$0xf]
      %v987 = vld [vmem:[%s4 + $0xf0] sm:$0xf]
      %v988 = vld [vmem:[%s4 + $0xf4] sm:$0xf]
      %v989 = vld [vmem:[%s4 + $0xf8] sm:$0xf]
      %v990 = vld [vmem:[%s4 + $0xfc] sm:$0xf]
      %v995 = vunpack.c.l.b16 %v971
      %v996 = vunpack.c.l.b16 %v972
      %v997 = vunpack.c.l.b16 %v973
      %v998 = vunpack.c.l.b16 %v974
      %v999 = vpack.c.b16 %v996, %v995
      %v1000 = vpack.c.b16 %v998, %v997
      %v1019 = vunpack.c.l.b16 %v975
      %v1020 = vunpack.c.l.b16 %v976
      %v1021 = vunpack.c.l.b16 %v977
      %v1022 = vunpack.c.l.b16 %v978
      %v1023 = vunpack.c.l.b16 %v979
      %v1024 = vunpack.c.l.b16 %v980
      %v1025 = vunpack.c.l.b16 %v981
      %v1026 = vunpack.c.l.b16 %v982
      %v1027 = vunpack.c.l.b16 %v983
      %v1028 = vunpack.c.l.b16 %v984
      %v1029 = vunpack.c.l.b16 %v985
      %v1030 = vunpack.c.l.b16 %v986
      %v1031 = vunpack.c.l.b16 %v987
      %v1032 = vunpack.c.l.b16 %v988
      %v1033 = vunpack.c.l.b16 %v989
      %v1034 = vunpack.c.l.b16 %v990
      %v1035 = vpack.c.b16 %v1020, %v1019
      %v1036 = vpack.c.b16 %v1022, %v1021
      %v1037 = vpack.c.b16 %v1024, %v1023
      %v1038 = vpack.c.b16 %v1026, %v1025
      %v1039 = vpack.c.b16 %v1028, %v1027
      %v1040 = vpack.c.b16 %v1030, %v1029
      %v1041 = vpack.c.b16 %v1032, %v1031
      %v1042 = vpack.c.b16 %v1034, %v1033
      %1051 = vmatpush.bf16.msra.mxu0 %v1042
      %1052 = vmatpush.bf16.msra.mxu0 %v1041
      %1053 = vmatpush.bf16.msra.mxu0 %v1040
      %1054 = vmatpush.bf16.msra.mxu0 %v1039
      %1055 = vmatpush.bf16.msra.mxu0 %v1038
      %1056 = vmatpush.bf16.msra.mxu0 %v1037
      %1057 = vmatpush.bf16.msra.mxu0 %v1036
      %1058 = vmatpush.bf16.msra.mxu0 %v1035
      %1059 = vmatmul.bf16.gmra.mxu0 %v999
      %v1060 = vpop.f32.mrf.mxu0
      %v1061 = vadd.f32 0.0, %v1060
      %v1062 = vpop.f32.mrf.mxu0
      %v1063 = vadd.f32 0.0, %v1062
      %1064 = vmatmul.bf16.gmra.mxu0 %v1000
      %v1065 = vpop.f32.mrf.mxu0
      %v1066 = vadd.f32 0.0, %v1065
      %v1067 = vpop.f32.mrf.mxu0
      %v1068 = vadd.f32 0.0, %v1067
      %1069 = vdwg.mxu0
      %v1070 = vadd.f32 %v967, %v1061
      %v1071 = vadd.f32 %v968, %v1063
      %v1072 = vadd.f32 %v969, %v1066
      %v1073 = vadd.f32 %v970, %v1068
      %v1074 = vld [vmem:[%s506] sm:$0xf]
      %v1075 = vld [vmem:[%s506 + $0x4] sm:$0x1]
      %v1076 = vld [vmem:[%s506 + $0x8] sm:$0xf]
      %v1077 = vld [vmem:[%s506 + $0xc] sm:$0x1]
      %v1078 = vld [vmem:[%s506 + $0x10] sm:$0xf]
      %v1079 = vld [vmem:[%s506 + $0x14] sm:$0x1]
      %v1080 = vld [vmem:[%s506 + $0x18] sm:$0xf]
      %v1081 = vld [vmem:[%s506 + $0x1c] sm:$0x1]
      %v1083 = vshrl.u32 %v1074, 16
      %v1085 = vrot.slane %v1083, 4
      %v1086 = vshll.u32 %v1074, 16
      %v1088 = vrot.slane %v1086, 5
      %v1089 = vor.u32 %v1085, %v1088
      %v1090 = vrot.slane %v1089, 4
      %v1092 = vshll.u32 %v1075, 16
      %v1094 = vrot.slane %v1092, 5
      %v1095 = vsel %vm618, %v1090, %v1094
      %v1097 = vshrl.u32 %v1076, 16
      %v1099 = vrot.slane %v1097, 4
      %v1100 = vshll.u32 %v1076, 16
      %v1102 = vrot.slane %v1100, 5
      %v1103 = vor.u32 %v1099, %v1102
      %v1104 = vrot.slane %v1103, 4
      %v1106 = vshll.u32 %v1077, 16
      %v1108 = vrot.slane %v1106, 5
      %v1109 = vsel %vm618, %v1104, %v1108
      %v1111 = vshrl.u32 %v1078, 16
      %v1113 = vrot.slane %v1111, 4
      %v1114 = vshll.u32 %v1078, 16
      %v1116 = vrot.slane %v1114, 5
      %v1117 = vor.u32 %v1113, %v1116
      %v1118 = vrot.slane %v1117, 4
      %v1120 = vshll.u32 %v1079, 16
      %v1122 = vrot.slane %v1120, 5
      %v1123 = vsel %vm618, %v1118, %v1122
      %v1125 = vshrl.u32 %v1080, 16
      %v1127 = vrot.slane %v1125, 4
      %v1128 = vshll.u32 %v1080, 16
      %v1130 = vrot.slane %v1128, 5
      %v1131 = vor.u32 %v1127, %v1130
      %v1132 = vrot.slane %v1131, 4
      %v1134 = vshll.u32 %v1081, 16
      %v1136 = vrot.slane %v1134, 5
      %v1137 = vsel %vm618, %v1132, %v1136
      %v1138 = vld [vmem:[%s4 + $0x100] sm:$0xf]
      %v1139 = vld [vmem:[%s4 + $0x104] sm:$0xf]
      %v1140 = vld [vmem:[%s4 + $0x108] sm:$0xf]
      %v1141 = vld [vmem:[%s4 + $0x10c] sm:$0xf]
      %v1142 = vld [vmem:[%s4 + $0x110] sm:$0xf]
      %v1143 = vld [vmem:[%s4 + $0x114] sm:$0xf]
      %v1144 = vld [vmem:[%s4 + $0x118] sm:$0xf]
      %v1145 = vld [vmem:[%s4 + $0x11c] sm:$0xf]
      %v1146 = vld [vmem:[%s4 + $0x120] sm:$0xf]
      %v1147 = vld [vmem:[%s4 + $0x124] sm:$0xf]
      %v1148 = vld [vmem:[%s4 + $0x128] sm:$0xf]
      %v1149 = vld [vmem:[%s4 + $0x12c] sm:$0xf]
      %v1150 = vld [vmem:[%s4 + $0x130] sm:$0xf]
      %v1151 = vld [vmem:[%s4 + $0x134] sm:$0xf]
      %v1152 = vld [vmem:[%s4 + $0x138] sm:$0xf]
      %v1153 = vld [vmem:[%s4 + $0x13c] sm:$0xf]
      %v1154 = vunpack.c.l.b16 %v1095
      %v1155 = vunpack.c.l.b16 %v1109
      %v1156 = vunpack.c.l.b16 %v1123
      %v1157 = vunpack.c.l.b16 %v1137
      %v1158 = vpack.c.b16 %v1155, %v1154
      %v1159 = vpack.c.b16 %v1157, %v1156
      %v1178 = vunpack.c.l.b16 %v1138
      %v1179 = vunpack.c.l.b16 %v1139
      %v1180 = vunpack.c.l.b16 %v1140
      %v1181 = vunpack.c.l.b16 %v1141
      %v1182 = vunpack.c.l.b16 %v1142
      %v1183 = vunpack.c.l.b16 %v1143
      %v1184 = vunpack.c.l.b16 %v1144
      %v1185 = vunpack.c.l.b16 %v1145
      %v1186 = vunpack.c.l.b16 %v1146
      %v1187 = vunpack.c.l.b16 %v1147
      %v1188 = vunpack.c.l.b16 %v1148
      %v1189 = vunpack.c.l.b16 %v1149
      %v1190 = vunpack.c.l.b16 %v1150
      %v1191 = vunpack.c.l.b16 %v1151
      %v1192 = vunpack.c.l.b16 %v1152
      %v1193 = vunpack.c.l.b16 %v1153
      %v1194 = vpack.c.b16 %v1179, %v1178
      %v1195 = vpack.c.b16 %v1181, %v1180
      %v1196 = vpack.c.b16 %v1183, %v1182
      %v1197 = vpack.c.b16 %v1185, %v1184
      %v1198 = vpack.c.b16 %v1187, %v1186
      %v1199 = vpack.c.b16 %v1189, %v1188
      %v1200 = vpack.c.b16 %v1191, %v1190
      %v1201 = vpack.c.b16 %v1193, %v1192
      %1210 = vmatpush.bf16.msra.mxu0 %v1201
      %1211 = vmatpush.bf16.msra.mxu0 %v1200
      %1212 = vmatpush.bf16.msra.mxu0 %v1199
      %1213 = vmatpush.bf16.msra.mxu0 %v1198
      %1214 = vmatpush.bf16.msra.mxu0 %v1197
      %1215 = vmatpush.bf16.msra.mxu0 %v1196
      %1216 = vmatpush.bf16.msra.mxu0 %v1195
      %1217 = vmatpush.bf16.msra.mxu0 %v1194
      %1218 = vmatmul.bf16.gmra.mxu0 %v1158
      %v1219 = vpop.f32.mrf.mxu0
      %v1220 = vadd.f32 0.0, %v1219
      %v1221 = vpop.f32.mrf.mxu0
      %v1222 = vadd.f32 0.0, %v1221
      %1223 = vmatmul.bf16.gmra.mxu0 %v1159
      %v1224 = vpop.f32.mrf.mxu0
      %v1225 = vadd.f32 0.0, %v1224
      %v1226 = vpop.f32.mrf.mxu0
      %v1227 = vadd.f32 0.0, %v1226
      %1228 = vdwg.mxu0
      %v1229 = vadd.f32 %v1070, %v1220
      %v1230 = vadd.f32 %v1071, %v1222
      %v1231 = vadd.f32 %v1072, %v1225
      %v1232 = vadd.f32 %v1073, %v1227
      %v1233 = vld [vmem:[%s506] sm:$0xe]
      %v1234 = vld [vmem:[%s506 + $0x8] sm:$0xe]
      %v1235 = vld [vmem:[%s506 + $0x10] sm:$0xe]
      %v1236 = vld [vmem:[%s506 + $0x18] sm:$0xe]
      %v1245 = vrot.slane %v1233, 5
      %v1246 = vrot.slane %v1245, 4
      %v1247 = vrot.slane %v1075, 5
      %v1248 = vsel %vm859, %v1246, %v1247
      %v1249 = vrot.slane %v1234, 5
      %v1250 = vrot.slane %v1249, 4
      %v1251 = vrot.slane %v1077, 5
      %v1252 = vsel %vm859, %v1250, %v1251
      %v1253 = vrot.slane %v1235, 5
      %v1254 = vrot.slane %v1253, 4
      %v1255 = vrot.slane %v1079, 5
      %v1256 = vsel %vm859, %v1254, %v1255
      %v1257 = vrot.slane %v1236, 5
      %v1258 = vrot.slane %v1257, 4
      %v1259 = vrot.slane %v1081, 5
      %v1260 = vsel %vm859, %v1258, %v1259
      %v1261 = vld [vmem:[%s4 + $0x140] sm:$0xf]
      %v1262 = vld [vmem:[%s4 + $0x144] sm:$0xf]
      %v1263 = vld [vmem:[%s4 + $0x148] sm:$0xf]
      %v1264 = vld [vmem:[%s4 + $0x14c] sm:$0xf]
      %v1265 = vld [vmem:[%s4 + $0x150] sm:$0xf]
      %v1266 = vld [vmem:[%s4 + $0x154] sm:$0xf]
      %v1267 = vld [vmem:[%s4 + $0x158] sm:$0xf]
      %v1268 = vld [vmem:[%s4 + $0x15c] sm:$0xf]
      %v1269 = vld [vmem:[%s4 + $0x160] sm:$0xf]
      %v1270 = vld [vmem:[%s4 + $0x164] sm:$0xf]
      %v1271 = vld [vmem:[%s4 + $0x168] sm:$0xf]
      %v1272 = vld [vmem:[%s4 + $0x16c] sm:$0xf]
      %v1273 = vld [vmem:[%s4 + $0x170] sm:$0xf]
      %v1274 = vld [vmem:[%s4 + $0x174] sm:$0xf]
      %v1275 = vld [vmem:[%s4 + $0x178] sm:$0xf]
      %v1276 = vld [vmem:[%s4 + $0x17c] sm:$0xf]
      %v1277 = vunpack.c.l.b16 %v1248
      %v1278 = vunpack.c.l.b16 %v1252
      %v1279 = vunpack.c.l.b16 %v1256
      %v1280 = vunpack.c.l.b16 %v1260
      %v1281 = vpack.c.b16 %v1278, %v1277
      %v1282 = vpack.c.b16 %v1280, %v1279
      %v1301 = vunpack.c.l.b16 %v1261
      %v1302 = vunpack.c.l.b16 %v1262
      %v1303 = vunpack.c.l.b16 %v1263
      %v1304 = vunpack.c.l.b16 %v1264
      %v1305 = vunpack.c.l.b16 %v1265
      %v1306 = vunpack.c.l.b16 %v1266
      %v1307 = vunpack.c.l.b16 %v1267
      %v1308 = vunpack.c.l.b16 %v1268
      %v1309 = vunpack.c.l.b16 %v1269
      %v1310 = vunpack.c.l.b16 %v1270
      %v1311 = vunpack.c.l.b16 %v1271
      %v1312 = vunpack.c.l.b16 %v1272
      %v1313 = vunpack.c.l.b16 %v1273
      %v1314 = vunpack.c.l.b16 %v1274
      %v1315 = vunpack.c.l.b16 %v1275
      %v1316 = vunpack.c.l.b16 %v1276
      %v1317 = vpack.c.b16 %v1302, %v1301
      %v1318 = vpack.c.b16 %v1304, %v1303
      %v1319 = vpack.c.b16 %v1306, %v1305
      %v1320 = vpack.c.b16 %v1308, %v1307
      %v1321 = vpack.c.b16 %v1310, %v1309
      %v1322 = vpack.c.b16 %v1312, %v1311
      %v1323 = vpack.c.b16 %v1314, %v1313
      %v1324 = vpack.c.b16 %v1316, %v1315
      %1333 = vmatpush.bf16.msra.mxu0 %v1324
      %1334 = vmatpush.bf16.msra.mxu0 %v1323
      %1335 = vmatpush.bf16.msra.mxu0 %v1322
      %1336 = vmatpush.bf16.msra.mxu0 %v1321
      %1337 = vmatpush.bf16.msra.mxu0 %v1320
      %1338 = vmatpush.bf16.msra.mxu0 %v1319
      %1339 = vmatpush.bf16.msra.mxu0 %v1318
      %1340 = vmatpush.bf16.msra.mxu0 %v1317
      %1341 = vmatmul.bf16.gmra.mxu0 %v1281
      %v1342 = vpop.f32.mrf.mxu0
      %v1343 = vadd.f32 0.0, %v1342
      %v1344 = vpop.f32.mrf.mxu0
      %v1345 = vadd.f32 0.0, %v1344
      %1346 = vmatmul.bf16.gmra.mxu0 %v1282
      %v1347 = vpop.f32.mrf.mxu0
      %v1348 = vadd.f32 0.0, %v1347
      %v1349 = vpop.f32.mrf.mxu0
      %v1350 = vadd.f32 0.0, %v1349
      %1351 = vdwg.mxu0
      %v1352 = vadd.f32 %v1229, %v1343
      %v1353 = vadd.f32 %v1230, %v1345
      %v1354 = vadd.f32 %v1231, %v1348
      %v1355 = vadd.f32 %v1232, %v1350
      %s1356 = scalar_lea.vmem [#allocation2], 16
      %v1357 = vld [vmem:[%s1356] sm:$0xf]
      %v1358 = vld [vmem:[%s1356 + $0x8] sm:$0xf]
      %v1359 = vld [vmem:[%s1356 + $0x10] sm:$0xf]
      %v1360 = vld [vmem:[%s1356 + $0x18] sm:$0xf]
      %v1361 = vld [vmem:[%s4 + $0x180] sm:$0xf]
      %v1362 = vld [vmem:[%s4 + $0x184] sm:$0xf]
      %v1363 = vld [vmem:[%s4 + $0x188] sm:$0xf]
      %v1364 = vld [vmem:[%s4 + $0x18c] sm:$0xf]
      %v1365 = vld [vmem:[%s4 + $0x190] sm:$0xf]
      %v1366 = vld [vmem:[%s4 + $0x194] sm:$0xf]
      %v1367 = vld [vmem:[%s4 + $0x198] sm:$0xf]
      %v1368 = vld [vmem:[%s4 + $0x19c] sm:$0xf]
      %v1369 = vld [vmem:[%s4 + $0x1a0] sm:$0xf]
      %v1370 = vld [vmem:[%s4 + $0x1a4] sm:$0xf]
      %v1371 = vld [vmem:[%s4 + $0x1a8] sm:$0xf]
      %v1372 = vld [vmem:[%s4 + $0x1ac] sm:$0xf]
      %v1373 = vld [vmem:[%s4 + $0x1b0] sm:$0xf]
      %v1374 = vld [vmem:[%s4 + $0x1b4] sm:$0xf]
      %v1375 = vld [vmem:[%s4 + $0x1b8] sm:$0xf]
      %v1376 = vld [vmem:[%s4 + $0x1bc] sm:$0xf]
      %v1381 = vunpack.c.l.b16 %v1357
      %v1382 = vunpack.c.l.b16 %v1358
      %v1383 = vunpack.c.l.b16 %v1359
      %v1384 = vunpack.c.l.b16 %v1360
      %v1385 = vpack.c.b16 %v1382, %v1381
      %v1386 = vpack.c.b16 %v1384, %v1383
      %v1405 = vunpack.c.l.b16 %v1361
      %v1406 = vunpack.c.l.b16 %v1362
      %v1407 = vunpack.c.l.b16 %v1363
      %v1408 = vunpack.c.l.b16 %v1364
      %v1409 = vunpack.c.l.b16 %v1365
      %v1410 = vunpack.c.l.b16 %v1366
      %v1411 = vunpack.c.l.b16 %v1367
      %v1412 = vunpack.c.l.b16 %v1368
      %v1413 = vunpack.c.l.b16 %v1369
      %v1414 = vunpack.c.l.b16 %v1370
      %v1415 = vunpack.c.l.b16 %v1371
      %v1416 = vunpack.c.l.b16 %v1372
      %v1417 = vunpack.c.l.b16 %v1373
      %v1418 = vunpack.c.l.b16 %v1374
      %v1419 = vunpack.c.l.b16 %v1375
      %v1420 = vunpack.c.l.b16 %v1376
      %v1421 = vpack.c.b16 %v1406, %v1405
      %v1422 = vpack.c.b16 %v1408, %v1407
      %v1423 = vpack.c.b16 %v1410, %v1409
      %v1424 = vpack.c.b16 %v1412, %v1411
      %v1425 = vpack.c.b16 %v1414, %v1413
      %v1426 = vpack.c.b16 %v1416, %v1415
      %v1427 = vpack.c.b16 %v1418, %v1417
      %v1428 = vpack.c.b16 %v1420, %v1419
      %1437 = vmatpush.bf16.msra.mxu0 %v1428
      %1438 = vmatpush.bf16.msra.mxu0 %v1427
      %1439 = vmatpush.bf16.msra.mxu0 %v1426
      %1440 = vmatpush.bf16.msra.mxu0 %v1425
      %1441 = vmatpush.bf16.msra.mxu0 %v1424
      %1442 = vmatpush.bf16.msra.mxu0 %v1423
      %1443 = vmatpush.bf16.msra.mxu0 %v1422
      %1444 = vmatpush.bf16.msra.mxu0 %v1421
      %1445 = vmatmul.bf16.gmra.mxu0 %v1385
      %v1446 = vpop.f32.mrf.mxu0
      %v1447 = vadd.f32 0.0, %v1446
      %v1448 = vpop.f32.mrf.mxu0
      %v1449 = vadd.f32 0.0, %v1448
      %1450 = vmatmul.bf16.gmra.mxu0 %v1386
      %v1451 = vpop.f32.mrf.mxu0
      %v1452 = vadd.f32 0.0, %v1451
      %v1453 = vpop.f32.mrf.mxu0
      %v1454 = vadd.f32 0.0, %v1453
      %1455 = vdwg.mxu0
      %v1456 = vadd.f32 %v1352, %v1447
      %v1457 = vadd.f32 %v1353, %v1449
      %v1458 = vadd.f32 %v1354, %v1452
      %v1459 = vadd.f32 %v1355, %v1454
      %v1460 = vld [vmem:[%s1356] sm:$0xf]
      %v1461 = vld [vmem:[%s1356 + $0x4] sm:$0x1]
      %v1462 = vld [vmem:[%s1356 + $0x8] sm:$0xf]
      %v1463 = vld [vmem:[%s1356 + $0xc] sm:$0x1]
      %v1464 = vld [vmem:[%s1356 + $0x10] sm:$0xf]
      %v1465 = vld [vmem:[%s1356 + $0x14] sm:$0x1]
      %v1466 = vld [vmem:[%s1356 + $0x18] sm:$0xf]
      %v1467 = vld [vmem:[%s1356 + $0x1c] sm:$0x1]
      %v1469 = vshrl.u32 %v1460, 16
      %v1471 = vrot.slane %v1469, 4
      %v1472 = vshll.u32 %v1460, 16
      %v1474 = vrot.slane %v1472, 5
      %v1475 = vor.u32 %v1471, %v1474
      %v1476 = vrot.slane %v1475, 4
      %v1478 = vshll.u32 %v1461, 16
      %v1480 = vrot.slane %v1478, 5
      %v1481 = vsel %vm618, %v1476, %v1480
      %v1483 = vshrl.u32 %v1462, 16
      %v1485 = vrot.slane %v1483, 4
      %v1486 = vshll.u32 %v1462, 16
      %v1488 = vrot.slane %v1486, 5
      %v1489 = vor.u32 %v1485, %v1488
      %v1490 = vrot.slane %v1489, 4
      %v1492 = vshll.u32 %v1463, 16
      %v1494 = vrot.slane %v1492, 5
      %v1495 = vsel %vm618, %v1490, %v1494
      %v1497 = vshrl.u32 %v1464, 16
      %v1499 = vrot.slane %v1497, 4
      %v1500 = vshll.u32 %v1464, 16
      %v1502 = vrot.slane %v1500, 5
      %v1503 = vor.u32 %v1499, %v1502
      %v1504 = vrot.slane %v1503, 4
      %v1506 = vshll.u32 %v1465, 16
      %v1508 = vrot.slane %v1506, 5
      %v1509 = vsel %vm618, %v1504, %v1508
      %v1511 = vshrl.u32 %v1466, 16
      %v1513 = vrot.slane %v1511, 4
      %v1514 = vshll.u32 %v1466, 16
      %v1516 = vrot.slane %v1514, 5
      %v1517 = vor.u32 %v1513, %v1516
      %v1518 = vrot.slane %v1517, 4
      %v1520 = vshll.u32 %v1467, 16
      %v1522 = vrot.slane %v1520, 5
      %v1523 = vsel %vm618, %v1518, %v1522
      %v1524 = vld [vmem:[%s4 + $0x1c0] sm:$0xf]
      %v1525 = vld [vmem:[%s4 + $0x1c4] sm:$0xf]
      %v1526 = vld [vmem:[%s4 + $0x1c8] sm:$0xf]
      %v1527 = vld [vmem:[%s4 + $0x1cc] sm:$0xf]
      %v1528 = vld [vmem:[%s4 + $0x1d0] sm:$0xf]
      %v1529 = vld [vmem:[%s4 + $0x1d4] sm:$0xf]
      %v1530 = vld [vmem:[%s4 + $0x1d8] sm:$0xf]
      %v1531 = vld [vmem:[%s4 + $0x1dc] sm:$0xf]
      %v1532 = vld [vmem:[%s4 + $0x1e0] sm:$0xf]
      %v1533 = vld [vmem:[%s4 + $0x1e4] sm:$0xf]
      %v1534 = vld [vmem:[%s4 + $0x1e8] sm:$0xf]
      %v1535 = vld [vmem:[%s4 + $0x1ec] sm:$0xf]
      %v1536 = vld [vmem:[%s4 + $0x1f0] sm:$0xf]
      %v1537 = vld [vmem:[%s4 + $0x1f4] sm:$0xf]
      %v1538 = vld [vmem:[%s4 + $0x1f8] sm:$0xf]
      %v1539 = vld [vmem:[%s4 + $0x1fc] sm:$0xf]
      %v1540 = vunpack.c.l.b16 %v1481
      %v1541 = vunpack.c.l.b16 %v1495
      %v1542 = vunpack.c.l.b16 %v1509
      %v1543 = vunpack.c.l.b16 %v1523
      %v1544 = vpack.c.b16 %v1541, %v1540
      %v1545 = vpack.c.b16 %v1543, %v1542
      %v1564 = vunpack.c.l.b16 %v1524
      %v1565 = vunpack.c.l.b16 %v1525
      %v1566 = vunpack.c.l.b16 %v1526
      %v1567 = vunpack.c.l.b16 %v1527
      %v1568 = vunpack.c.l.b16 %v1528
      %v1569 = vunpack.c.l.b16 %v1529
      %v1570 = vunpack.c.l.b16 %v1530
      %v1571 = vunpack.c.l.b16 %v1531
      %v1572 = vunpack.c.l.b16 %v1532
      %v1573 = vunpack.c.l.b16 %v1533
      %v1574 = vunpack.c.l.b16 %v1534
      %v1575 = vunpack.c.l.b16 %v1535
      %v1576 = vunpack.c.l.b16 %v1536
      %v1577 = vunpack.c.l.b16 %v1537
      %v1578 = vunpack.c.l.b16 %v1538
      %v1579 = vunpack.c.l.b16 %v1539
      %v1580 = vpack.c.b16 %v1565, %v1564
      %v1581 = vpack.c.b16 %v1567, %v1566
      %v1582 = vpack.c.b16 %v1569, %v1568
      %v1583 = vpack.c.b16 %v1571, %v1570
      %v1584 = vpack.c.b16 %v1573, %v1572
      %v1585 = vpack.c.b16 %v1575, %v1574
      %v1586 = vpack.c.b16 %v1577, %v1576
      %v1587 = vpack.c.b16 %v1579, %v1578
      %1596 = vmatpush.bf16.msra.mxu0 %v1587
      %1597 = vmatpush.bf16.msra.mxu0 %v1586
      %1598 = vmatpush.bf16.msra.mxu0 %v1585
      %1599 = vmatpush.bf16.msra.mxu0 %v1584
      %1600 = vmatpush.bf16.msra.mxu0 %v1583
      %1601 = vmatpush.bf16.msra.mxu0 %v1582
      %1602 = vmatpush.bf16.msra.mxu0 %v1581
      %1603 = vmatpush.bf16.msra.mxu0 %v1580
      %1604 = vmatmul.bf16.gmra.mxu0 %v1544
      %v1605 = vpop.f32.mrf.mxu0
      %v1606 = vadd.f32 0.0, %v1605
      %v1607 = vpop.f32.mrf.mxu0
      %v1608 = vadd.f32 0.0, %v1607
      %1609 = vmatmul.bf16.gmra.mxu0 %v1545
      %v1610 = vpop.f32.mrf.mxu0
      %v1611 = vadd.f32 0.0, %v1610
      %v1612 = vpop.f32.mrf.mxu0
      %v1613 = vadd.f32 0.0, %v1612
      %1614 = vdwg.mxu0
      %v1615 = vadd.f32 %v1456, %v1606
      %v1616 = vadd.f32 %v1457, %v1608
      %v1617 = vadd.f32 %v1458, %v1611
      %v1618 = vadd.f32 %v1459, %v1613
      %v1619 = vld [vmem:[%s1356] sm:$0xe]
      %v1620 = vld [vmem:[%s1356 + $0x8] sm:$0xe]
      %v1621 = vld [vmem:[%s1356 + $0x10] sm:$0xe]
      %v1622 = vld [vmem:[%s1356 + $0x18] sm:$0xe]
      %v1631 = vrot.slane %v1619, 5
      %v1632 = vrot.slane %v1631, 4
      %v1633 = vrot.slane %v1461, 5
      %v1634 = vsel %vm859, %v1632, %v1633
      %v1635 = vrot.slane %v1620, 5
      %v1636 = vrot.slane %v1635, 4
      %v1637 = vrot.slane %v1463, 5
      %v1638 = vsel %vm859, %v1636, %v1637
      %v1639 = vrot.slane %v1621, 5
      %v1640 = vrot.slane %v1639, 4
      %v1641 = vrot.slane %v1465, 5
      %v1642 = vsel %vm859, %v1640, %v1641
      %v1643 = vrot.slane %v1622, 5
      %v1644 = vrot.slane %v1643, 4
      %v1645 = vrot.slane %v1467, 5
      %v1646 = vsel %vm859, %v1644, %v1645
      %v1647 = vld [vmem:[%s4 + $0x200] sm:$0xf]
      %v1648 = vld [vmem:[%s4 + $0x204] sm:$0xf]
      %v1649 = vld [vmem:[%s4 + $0x208] sm:$0xf]
      %v1650 = vld [vmem:[%s4 + $0x20c] sm:$0xf]
      %v1651 = vld [vmem:[%s4 + $0x210] sm:$0xf]
      %v1652 = vld [vmem:[%s4 + $0x214] sm:$0xf]
      %v1653 = vld [vmem:[%s4 + $0x218] sm:$0xf]
      %v1654 = vld [vmem:[%s4 + $0x21c] sm:$0xf]
      %v1655 = vld [vmem:[%s4 + $0x220] sm:$0xf]
      %v1656 = vld [vmem:[%s4 + $0x224] sm:$0xf]
      %v1657 = vld [vmem:[%s4 + $0x228] sm:$0xf]
      %v1658 = vld [vmem:[%s4 + $0x22c] sm:$0xf]
      %v1659 = vld [vmem:[%s4 + $0x230] sm:$0xf]
      %v1660 = vld [vmem:[%s4 + $0x234] sm:$0xf]
      %v1661 = vld [vmem:[%s4 + $0x238] sm:$0xf]
      %v1662 = vld [vmem:[%s4 + $0x23c] sm:$0xf]
      %v1663 = vunpack.c.l.b16 %v1634
      %v1664 = vunpack.c.l.b16 %v1638
      %v1665 = vunpack.c.l.b16 %v1642
      %v1666 = vunpack.c.l.b16 %v1646
      %v1667 = vpack.c.b16 %v1664, %v1663
      %v1668 = vpack.c.b16 %v1666, %v1665
      %v1687 = vunpack.c.l.b16 %v1647
      %v1688 = vunpack.c.l.b16 %v1648
      %v1689 = vunpack.c.l.b16 %v1649
      %v1690 = vunpack.c.l.b16 %v1650
      %v1691 = vunpack.c.l.b16 %v1651
      %v1692 = vunpack.c.l.b16 %v1652
      %v1693 = vunpack.c.l.b16 %v1653
      %v1694 = vunpack.c.l.b16 %v1654
      %v1695 = vunpack.c.l.b16 %v1655
      %v1696 = vunpack.c.l.b16 %v1656
      %v1697 = vunpack.c.l.b16 %v1657
      %v1698 = vunpack.c.l.b16 %v1658
      %v1699 = vunpack.c.l.b16 %v1659
      %v1700 = vunpack.c.l.b16 %v1660
      %v1701 = vunpack.c.l.b16 %v1661
      %v1702 = vunpack.c.l.b16 %v1662
      %v1703 = vpack.c.b16 %v1688, %v1687
      %v1704 = vpack.c.b16 %v1690, %v1689
      %v1705 = vpack.c.b16 %v1692, %v1691
      %v1706 = vpack.c.b16 %v1694, %v1693
      %v1707 = vpack.c.b16 %v1696, %v1695
      %v1708 = vpack.c.b16 %v1698, %v1697
      %v1709 = vpack.c.b16 %v1700, %v1699
      %v1710 = vpack.c.b16 %v1702, %v1701
      %1719 = vmatpush.bf16.msra.mxu0 %v1710
      %1720 = vmatpush.bf16.msra.mxu0 %v1709
      %1721 = vmatpush.bf16.msra.mxu0 %v1708
      %1722 = vmatpush.bf16.msra.mxu0 %v1707
      %1723 = vmatpush.bf16.msra.mxu0 %v1706
      %1724 = vmatpush.bf16.msra.mxu0 %v1705
      %1725 = vmatpush.bf16.msra.mxu0 %v1704
      %1726 = vmatpush.bf16.msra.mxu0 %v1703
      %1727 = vmatmul.bf16.gmra.mxu0 %v1667
      %v1728 = vpop.f32.mrf.mxu0
      %v1729 = vadd.f32 0.0, %v1728
      %v1730 = vpop.f32.mrf.mxu0
      %v1731 = vadd.f32 0.0, %v1730
      %1732 = vmatmul.bf16.gmra.mxu0 %v1668
      %v1733 = vpop.f32.mrf.mxu0
      %v1734 = vadd.f32 0.0, %v1733
      %v1735 = vpop.f32.mrf.mxu0
      %v1736 = vadd.f32 0.0, %v1735
      %1737 = vdwg.mxu0
      %v1738 = vadd.f32 %v1615, %v1729
      %v1739 = vadd.f32 %v1616, %v1731
      %v1740 = vadd.f32 %v1617, %v1734
      %v1741 = vadd.f32 %v1618, %v1736
      %v1742 = vpack.c.bf16 %v1738, %v1738
      %v1743 = vpack.c.bf16 %v1739, %v1739
      %v1744 = vpack.c.bf16 %v1740, %v1740
      %v1745 = vpack.c.bf16 %v1741, %v1741
      %1746 = vst [vmem:[%s414] sm:$0xf] %v1742
      %1747 = vst [vmem:[%s414 + $0x4] sm:$0xf] %v1743
      %1748 = vst [vmem:[%s414 + $0x8] sm:$0xf] %v1744
      %1749 = vst [vmem:[%s414 + $0xc] sm:$0xf] %v1745
      %v1750 = vld [vmem:[%s419] sm:$0x1]
      %v1751 = vadd.f32 %v1738, %v1739
      %v1752 = vadd.f32 %v1751, %v1740
      %v1753 = vadd.f32 %v1752, %v1741
      %v1754 = vrot.slane %v1753, 4
      %v1755 = vadd.f32 %v1753, %v1754
      %v1756 = vrot.slane %v1755, 2
      %v1757 = vadd.f32 %v1755, %v1756
      %v1758 = vrot.slane %v1757, 1
      %v1759 = vadd.f32 %v1757, %v1758
      %v1760 = vadd.f32 %v1750, %v1759
      %1761 = vst [vmem:[%s419] sm:$0x1] %v1760
      %v1762 = vld [vmem:[%s419 + $0x1] sm:$0x1]
      %v1763 = vmul.f32 %v1738, %v1738
      %v1764 = vmul.f32 %v1739, %v1739
      %v1765 = vmul.f32 %v1740, %v1740
      %v1766 = vmul.f32 %v1741, %v1741
      %v1767 = vadd.f32 %v1763, %v1764
      %v1768 = vadd.f32 %v1767, %v1765
      %v1769 = vadd.f32 %v1768, %v1766
      %v1770 = vrot.slane %v1769, 4
      %v1771 = vadd.f32 %v1769, %v1770
      %v1772 = vrot.slane %v1771, 2
      %v1773 = vadd.f32 %v1771, %v1772
      %v1774 = vrot.slane %v1773, 1
      %v1775 = vadd.f32 %v1773, %v1774
      %v1776 = vadd.f32 %v1762, %v1775
      %1777 = vst [vmem:[%s419 + $0x1] sm:$0x1] %v1776
      %s1778 = smul.u32 4, %s23
      %p1779 = scmp.lt.s32.totalorder %s22, 1
      %s1780 = scalar_select %p1779, %s22, 1
      %p1781 = scmp.lt.s32.totalorder %s1778, 7
      %s1782 = scalar_select %p1781, %s1778, 7
      %s1783 = smul.addr %s1780, 8
      %s1784 = sadd.s32 %s1782, %s1783
      %s1785 = smul.addr %s1784, 4
      %s1786 = scalar_lea.vmem %s5, %s1785
      %p1787 = scmp.lt.s32.totalorder %s22, 1
      %s1788 = scalar_select %p1787, %s22, 1
      %s1789 = smul.addr %s1788, 2
      %s1790 = scalar_lea.vmem %s6, %s1789
      // Predicated region
      $region45: #{_lambda_.4} parent=39 // pred_check
        %p1791 = pneg %p192
      $region46: #{_lambda_.4} parent=39 // pred_check_branch
        %1793 = sbr.rel (%p1791) target = $region48
      $region47: #{_lambda_.4} parent=39 // pred_region
        %s1794 = smul.u32 4, %s23
      $region48: #{_lambda_.4} parent=39 // pred_fallthru
        _
      // Predicated region
      $region49: #{_lambda_.4} parent=39 // pred_check
        %p1795 = pneg %p218
      $region50: #{_lambda_.4} parent=39 // pred_check_branch
        %1797 = sbr.rel (%p1795) target = $region52
      $region51: #{_lambda_.4} parent=39 // pred_region
        _
      $region52: #{_lambda_.4} parent=39 // pred_fallthru
        _
    $region40: #{_lambda_.4} parent=5 // pred_fallthru
      _
    %p1798 = scmp.le.s32.totalorder 2, %s13
    // Predicated region
    $region53: #{_lambda_.4} parent=5 // pred_check
      %p1799 = pneg %p1798
    $region54: #{_lambda_.4} parent=5 // pred_check_branch
      %1801 = sbr.rel (%p1799) target = $region56
    $region55: #{_lambda_.4} parent=5 // pred_region
      %s1802 = ssub.s32 %s13, 2
      // Predicated region
      $region57: #{_lambda_.4} parent=55 // pred_check
        %p1803 = pneg %p198
      $region58: #{_lambda_.4} parent=55 // pred_check_branch
        %1805 = sbr.rel (%p1803) target = $region60
      $region59: #{_lambda_.4} parent=55 // pred_region
        %s1806 = smul.u32 4, %s25
        %p1807 = scmp.lt.s32.totalorder %s24, 1
        %s1808 = scalar_select %p1807, %s24, 1
        %p1809 = scmp.lt.s32.totalorder %s1806, 7
        %s1810 = scalar_select %p1809, %s1806, 7
        %s1811 = smul.addr %s1808, 8
        %s1812 = sadd.s32 %s1810, %s1811
        %s1813 = smul.addr %s1812, 4
        %s1814 = scalar_lea.vmem %s5, %s1813
      $region60: #{_lambda_.4} parent=55 // pred_fallthru
        _
      // Predicated region
      $region61: #{_lambda_.4} parent=55 // pred_check
        %p1815 = pneg %p224
      $region62: #{_lambda_.4} parent=55 // pred_check_branch
        %1817 = sbr.rel (%p1815) target = $region64
      $region63: #{_lambda_.4} parent=55 // pred_region
        %p1818 = scmp.lt.s32.totalorder %s24, 1
        %s1819 = scalar_select %p1818, %s24, 1
        %s1820 = smul.addr %s1819, 2
        %s1821 = scalar_lea.vmem %s6, %s1820
      $region64: #{_lambda_.4} parent=55 // pred_fallthru
        _
    $region56: #{_lambda_.4} parent=5 // pred_fallthru
      _
  $region6: #{_lambda_.4} parent=0 // loop_footer
    %s17 = sadd.s32 1, %s13
  $region7: #{_lambda_.4} parent=0 // loop_footer_branch
    %12 = sbr.rel target = $region3
  $region8: #{_lambda_.4} parent=0 // loop_exit
    _

</llo_original>
